<compile_context>
chip_gen: v7x
topology: tpu7x:2x2x1
jax: 0.10.0
libtpu: 0.0.40
codegen_flags: <defaults>
</compile_context>

<pallas_src>
import math

import jax
import jax.numpy as jnp
from jax.experimental import pallas as pl
from jax.experimental.pallas import tpu as pltpu

_SLOPE = 0.3
_BN_EPS = 1e-5
_BN_SCALE = 1.0 / math.sqrt(1.0 + _BN_EPS)   # eval BN: (x - 0)/sqrt(1 + eps) * 1 + 1

# ----------------------------------------------------------------------------
# Weight slab layout (bf16 pointwise/linear weights packed along rows; all row
# counts are multiples of 8 so every slice stays sublane/row-pair aligned).
# ----------------------------------------------------------------------------
_WSPEC = (
    ("stem",    32, 32),                      # 27 real rows + 5 zero rows
    ("b0_pw1a", 32, 128), ("b0_pw2a", 128, 32), ("b0_pw1b", 32, 128), ("b0_pwf", 128, 16),
    ("b2_pw1a", 16, 64),  ("b2_pw2a", 64, 16),  ("b2_pw1b", 16, 64),  ("b2_pwf", 64, 16),
    ("b3_pw1a", 16, 64),  ("b3_pw2a", 64, 16),  ("b3_pw1b", 16, 64),  ("b3_pwf", 64, 24),
    ("l1",      24, 16),  ("l2",      16, 10),
)
_WOFF, _WDIM = {}, {}
_off = 0
for _n, _k, _m in _WSPEC:
    _WOFF[_n] = _off
    _WDIM[_n] = (_k, _m)
    _off += _k
_WROWS = _off                                  # 712

_DWIDX = {"b0a": 0, "b0b": 1, "b2a": 2, "b2b": 3, "b3a": 4, "b3b": 5}


# ----------------------------------------------------------------------------
# The single fused Pallas kernel (whole network forward)
# ----------------------------------------------------------------------------
def _net_fused_kernel(x_ref, w_ref, dw_ref, out_ref, pad0, pad2, pad3):
    """Whole `net` forward; all activations/weights stay resident in VMEM."""
    B = out_ref.shape[0]            # spatial pyramid 8 -> 4 -> 2 is hard-coded (16x16 in)

    def lrelu(v):
        return jnp.where(v > 0, v, _SLOPE * v)

    def wmat(name):
        off = _WOFF[name]
        k, n = _WDIM[name]
        return w_ref[off:off + k, 0:n]                       # bf16 (k, n) slab slice

    def mm(x2d, name):
        # MXU matmul: bf16 inputs, f32 accumulation.  (.astype is a no-op if already bf16.)
        return jnp.dot(x2d.astype(jnp.bfloat16), wmat(name),
                       preferred_element_type=jnp.float32)

    def pw(x2d, name):
        # pointwise conv (BN scale folded into w) + BN shift (+1) + LeakyReLU(0.3)
        return lrelu(mm(x2d, name) + 1.0)

    def dw3x3(rows, dw_idx, pad_ref, H, W, C):
        # depthwise 3x3 'same' conv (+ folded BN + LeakyReLU(0.3)).
        # One 4D interior store; 9 taps read straight from the padded ref at static
        # offsets (the 1-pixel zero border provides the 'same' padding).
        pad_ref[:, 1:1 + H, 1:1 + W, :] = rows.reshape(B, H, W, C)
        w = dw_ref[dw_idx]                                   # (9, 128) f32, BN folded
        acc = pad_ref[:, 0:H, 0:W, :] * w[0:1, 0:C]
        for t in range(1, 9):
            dy, dx = divmod(t, 3)
            acc = acc + pad_ref[:, dy:dy + H, dx:dx + W, :] * w[t:t + 1, 0:C]
        return lrelu(acc + 1.0)                              # (B, H, W, C)

    def maxpool2x2(h4d, H, W, C):
        # 2x2/stride-2 max pool, vectorized: row pairs via an outer-dim split (free
        # reshape) + whole-vreg max; column pairs via Wp tiny sublane slices + max.
        Hp, Wp = H // 2, W // 2
        h5 = h4d.reshape(B, Hp, 2, W, C)
        vmax = jnp.maximum(h5[:, :, 0], h5[:, :, 1])         # (B, Hp, W, C)
        cols = [jnp.maximum(vmax[:, :, 2 * j:2 * j + 1, :],
                            vmax[:, :, 2 * j + 1:2 * j + 2, :]) for j in range(Wp)]
        pooled = jnp.concatenate(cols, axis=2)               # (B, Hp, Wp, C)
        return pooled.reshape(B * Hp * Wp, C)

    def gap(h4d):
        # AdaptiveAvgPool2d(1) on a 2x2 map -> (B, C), fully vectorized.
        return (h4d[:, 0, 0, :] + h4d[:, 0, 1, :] +
                h4d[:, 1, 0, :] + h4d[:, 1, 1, :]) * 0.25

    # Zero the padded depthwise tiles once; interiors are rewritten on each use,
    # the 1-pixel borders stay zero ('same' padding).
    pad0[...] = jnp.zeros_like(pad0)
    pad2[...] = jnp.zeros_like(pad2)
    pad3[...] = jnp.zeros_like(pad3)

    # --- stem (in-kernel): ZeroPad2d(1) + conv3x3 s2 + BN + LeakyReLU + my_relu6.
    # x_ref holds the zero-padded 18x18x3 image in parity-split layout
    # (B, 9, 2, 9, 6): [b, r//2, r%2, c//2, (c%2)*3 + ch] so every stride-2 tap is an
    # UNSTRIDED slice.  Tap (dy,dx) for output (i,j) reads padded pixel (2i+dy, 2j+dx).
    taps = []
    for gr, pr in ((slice(0, 8), 0), (slice(0, 8), 1), (slice(1, 9), 0)):      # dy=0,1,2
        for gc, c0 in ((slice(0, 8), 0), (slice(0, 8), 3), (slice(1, 9), 0)):  # dx=0,1,2
            t = x_ref[:, gr, pr:pr + 1, gc, c0:c0 + 3]       # (B, 8, 1, 8, 3)
            taps.append(t.reshape(B, 8, 8, 3))
    taps.append(jnp.zeros((B, 8, 8, 5), jnp.float32))        # pad contraction 27 -> 32
    patches = jnp.concatenate(taps, axis=-1).reshape(B * 64, 32)
    x = mm(patches, "stem") + 1.0
    # Two LeakyReLU(0.3) in a row == one select with slope 0.3**2 (exact).
    x = jnp.where(x > 0, x, (_SLOPE * _SLOPE) * x)           # (B*64, 32)

    # --- b0: MBblock(2, 32, 16): expand -> 128 ch, 8x8 spatial, 2x2 max pool
    h = dw3x3(pw(x, "b0_pw1a"), _DWIDX["b0a"], pad0, 8, 8, 128)
    x = pw(h.reshape(B * 64, 128), "b0_pw2a") + x            # repeat-0 skip connection
    h = dw3x3(pw(x, "b0_pw1b"), _DWIDX["b0b"], pad0, 8, 8, 128)
    x = pw(maxpool2x2(h, 8, 8, 128), "b0_pwf")               # (B*16, 16)

    # --- b2: MBblock(2, 16, 16): expand -> 64 ch, 4x4 spatial, 2x2 max pool
    h = dw3x3(pw(x, "b2_pw1a"), _DWIDX["b2a"], pad2, 4, 4, 64)
    x = pw(h.reshape(B * 16, 64), "b2_pw2a") + x
    h = dw3x3(pw(x, "b2_pw1b"), _DWIDX["b2b"], pad2, 4, 4, 64)
    x = pw(maxpool2x2(h, 4, 4, 64), "b2_pwf")                # (B*4, 16)

    # --- b3: MBblock(2, 16, 24): expand -> 64 ch, 2x2 spatial, global avg pool
    h = dw3x3(pw(x, "b3_pw1a"), _DWIDX["b3a"], pad3, 2, 2, 64)
    x = pw(h.reshape(B * 4, 64), "b3_pw2a") + x
    h = dw3x3(pw(x, "b3_pw1b"), _DWIDX["b3b"], pad3, 2, 2, 64)
    x = pw(gap(h), "b3_pwf")                                 # (B, 24)

    # --- head: myLinar(24,16,no bias) + BN1d(+1) + LeakyReLU, then myLinar(16,10)+bias(=0)
    x = lrelu(mm(x, "l1") + 1.0)
    out_ref[...] = mm(x, "l2").astype(out_ref.dtype)


def _fused_forward(x_par, wslab, dwslab):
    B = x_par.shape[0]
    vmem = pl.BlockSpec(memory_space=pltpu.MemorySpace.VMEM)
    return pl.pallas_call(
        _net_fused_kernel,
        out_shape=jax.ShapeDtypeStruct((B, 10), jnp.float32),
        in_specs=[vmem, vmem, vmem],
        out_specs=vmem,
        scratch_shapes=[
            pltpu.VMEM((B, 10, 10, 128), jnp.float32),   # padded tile, b0 depthwise
            pltpu.VMEM((B, 6, 6, 64), jnp.float32),      # padded tile, b2 depthwise
            pltpu.VMEM((B, 4, 4, 64), jnp.float32),      # padded tile, b3 depthwise
        ],
    )(x_par, wslab, dwslab)


# ----------------------------------------------------------------------------
# Parameter construction (deterministic, synthetic) with BN folded into weights.
# All pointwise/linear weights go into one bf16 slab; depthwise weights into one
# f32 slab (3 input DMAs total at kernel entry).
# ----------------------------------------------------------------------------
def _kaiming(key, shape):
    bound = math.sqrt(6.0 / shape[0])
    return jax.random.uniform(key, shape, jnp.float32, -bound, bound)


def _orth(w):
    """myMatmul's eval-time SVD orthogonalization (svd=True, nNorm=True)."""
    u, _, vh = jnp.linalg.svd(w, full_matrices=False)
    m = u @ vh
    if w.shape[1] > w.shape[0]:
        m = m / (jnp.linalg.norm(m, axis=0, keepdims=True) + 1e-10)
    return m


def make_params(seed=1):
    """Synthetic params with eval-BN scale (1/sqrt(1+eps)) folded into the weights."""
    keys = iter(jax.random.split(jax.random.PRNGKey(seed), 32))
    s = _BN_SCALE
    wslab = jnp.zeros((_WROWS, 128), jnp.float32)
    dwslab = jnp.zeros((6, 9, 128), jnp.float32)

    def put(slab, name, w):
        off = _WOFF[name]
        k, n = w.shape
        return slab.at[off:off + k, 0:n].set(w)

    # stem conv (conv_svd=False -> no orthogonalization), laid out (kh*kw*cin, cout)
    # = (27, 32), zero-padded to 32 rows; BN scale folded.
    w_stem = (jax.random.normal(next(keys), (3, 3, 3, 32), jnp.float32)
              / math.sqrt(27.0)).reshape(27, 32) * s
    wslab = put(wslab, "stem", jnp.pad(w_stem, ((0, 5), (0, 0))))

    def block(tag, cin, cout, expand=4):
        nonlocal wslab, dwslab
        ce = cin * expand
        for r in ("a", "b"):
            wslab = put(wslab, f"{tag}_pw1{r}", _orth(_kaiming(next(keys), (cin, ce))) * s)
            dwslab = dwslab.at[_DWIDX[f"{tag}{r}"], :, 0:ce].set(
                jax.random.normal(next(keys), (9, ce), jnp.float32) / 3.0 * s)
        wslab = put(wslab, f"{tag}_pw2a", _orth(_kaiming(next(keys), (ce, cin))) * s)
        wslab = put(wslab, f"{tag}_pwf", _orth(_kaiming(next(keys), (ce, cout))) * s)

    block("b0", 32, 16)
    block("b2", 16, 16)
    block("b3", 16, 24)
    wslab = put(wslab, "l1", _orth(_kaiming(next(keys), (24, 16))) * s)   # BN1d folded
    wslab = put(wslab, "l2", _orth(_kaiming(next(keys), (16, 10))))        # bias == 0
    return wslab.astype(jnp.bfloat16), dwslab


# ----------------------------------------------------------------------------
# Model forward (minimal boundary glue + the single fused kernel)
# ----------------------------------------------------------------------------
@jax.jit
def net_forward(x_nchw, params):
    # TODO(synk): the NCHW->NHWC transpose + ZeroPad2d(1) stay as (one fused) XLA op in
    # front of the kernel; everything else (stem conv, blocks, pools, head) is in-kernel.
    wslab, dwslab = params
    x = jnp.transpose(x_nchw, (0, 2, 3, 1)).astype(jnp.float32)    # NCHW -> NHWC
    B, H, W, Cin = x.shape          # kernel assumes a 16x16x3 input -> 8/4/2 pyramid
    xp = jnp.pad(x, ((0, 0), (1, 1), (1, 1), (0, 0)))              # (B, 18, 18, 3)
    # Free contiguous reshape into row/col parity-split layout for the in-kernel
    # stride-2 stem conv: [b, r//2, r%2, c//2, (c%2)*3 + ch]
    x_par = xp.reshape(B, (H + 2) // 2, 2, (W + 2) // 2, 2 * Cin)
    return _fused_forward(x_par, wslab, dwslab)


if __name__ == "__main__":
    x = jax.random.normal(jax.random.PRNGKey(0), (2, 3, 16, 16), jnp.float32)
    params = make_params(seed=1)
    out = net_forward(x, params)
    out = jax.block_until_ready(out)
    assert out.shape == (2, 10) and out.dtype == jnp.float32
    assert bool(jnp.all(jnp.isfinite(out)))
    print("KERNEL_OK")
</pallas_src>

<mosaic_0001>
module attributes {stable_mosaic.version = 11 : i64} {
  func.func @_net_fused_kernel(%arg0: memref<2x9x2x9x6xf32, #tpu.memory_space<vmem>>, %arg1: memref<712x128xbf16, #tpu.memory_space<vmem>>, %arg2: memref<6x9x128xf32, #tpu.memory_space<vmem>>, %arg3: memref<2x10xf32, #tpu.memory_space<vmem>>, %arg4: memref<2x10x10x128xf32, #tpu.memory_space<vmem>>, %arg5: memref<2x6x6x64xf32, #tpu.memory_space<vmem>>, %arg6: memref<2x4x4x64xf32, #tpu.memory_space<vmem>>) attributes {dimension_semantics = [], scalar_prefetch = 0 : i64, scratch_operands = 3 : i64, tpu.core_type = #tpu.core_type<tc>} {
    %cst = arith.constant 0.000000e+00 : f32
    %0 = vector.broadcast %cst : f32 to vector<2x10x10x128xf32>
    %c0 = arith.constant 0 : index
    %c0_0 = arith.constant 0 : index
    %c0_1 = arith.constant 0 : index
    %c0_2 = arith.constant 0 : index
    %1 = vector.load %arg4[%c0, %c0_0, %c0_1, %c0_2] : memref<2x10x10x128xf32, #tpu.memory_space<vmem>>, vector<2x10x10x128xf32>
    tpu.vector_store %arg4[%c0, %c0_0, %c0_1, %c0_2], %0 {strides = array<i32>} : memref<2x10x10x128xf32, #tpu.memory_space<vmem>>, vector<2x10x10x128xf32>,
    %cst_3 = arith.constant 0.000000e+00 : f32
    %2 = vector.broadcast %cst_3 : f32 to vector<2x6x6x64xf32>
    %c0_4 = arith.constant 0 : index
    %c0_5 = arith.constant 0 : index
    %c0_6 = arith.constant 0 : index
    %c0_7 = arith.constant 0 : index
    %3 = vector.load %arg5[%c0_4, %c0_5, %c0_6, %c0_7] : memref<2x6x6x64xf32, #tpu.memory_space<vmem>>, vector<2x6x6x64xf32>
    tpu.vector_store %arg5[%c0_4, %c0_5, %c0_6, %c0_7], %2 {strides = array<i32>} : memref<2x6x6x64xf32, #tpu.memory_space<vmem>>, vector<2x6x6x64xf32>,
    %cst_8 = arith.constant 0.000000e+00 : f32
    %4 = vector.broadcast %cst_8 : f32 to vector<2x4x4x64xf32>
    %c0_9 = arith.constant 0 : index
    %c0_10 = arith.constant 0 : index
    %c0_11 = arith.constant 0 : index
    %c0_12 = arith.constant 0 : index
    %5 = vector.load %arg6[%c0_9, %c0_10, %c0_11, %c0_12] : memref<2x4x4x64xf32, #tpu.memory_space<vmem>>, vector<2x4x4x64xf32>
    tpu.vector_store %arg6[%c0_9, %c0_10, %c0_11, %c0_12], %4 {strides = array<i32>} : memref<2x4x4x64xf32, #tpu.memory_space<vmem>>, vector<2x4x4x64xf32>,
    %c0_13 = arith.constant 0 : index
    %c0_14 = arith.constant 0 : index
    %c0_15 = arith.constant 0 : index
    %c0_16 = arith.constant 0 : index
    %c0_17 = arith.constant 0 : index
    %6 = vector.load %arg0[%c0_13, %c0_14, %c0_15, %c0_16, %c0_17] : memref<2x9x2x9x6xf32, #tpu.memory_space<vmem>>, vector<2x8x1x8x3xf32>
    %7 = vector.shape_cast %6 : vector<2x8x1x8x3xf32> to vector<2x8x8x3xf32>
    %c0_18 = arith.constant 0 : index
    %c0_19 = arith.constant 0 : index
    %c0_20 = arith.constant 0 : index
    %c0_21 = arith.constant 0 : index
    %c3 = arith.constant 3 : index
    %8 = vector.load %arg0[%c0_18, %c0_19, %c0_20, %c0_21, %c3] : memref<2x9x2x9x6xf32, #tpu.memory_space<vmem>>, vector<2x8x1x8x3xf32>
    %9 = vector.shape_cast %8 : vector<2x8x1x8x3xf32> to vector<2x8x8x3xf32>
    %c0_22 = arith.constant 0 : index
    %c0_23 = arith.constant 0 : index
    %c0_24 = arith.constant 0 : index
    %c1 = arith.constant 1 : index
    %c0_25 = arith.constant 0 : index
    %10 = vector.load %arg0[%c0_22, %c0_23, %c0_24, %c1, %c0_25] : memref<2x9x2x9x6xf32, #tpu.memory_space<vmem>>, vector<2x8x1x8x3xf32>
    %11 = vector.shape_cast %10 : vector<2x8x1x8x3xf32> to vector<2x8x8x3xf32>
    %c0_26 = arith.constant 0 : index
    %c0_27 = arith.constant 0 : index
    %c1_28 = arith.constant 1 : index
    %c0_29 = arith.constant 0 : index
    %c0_30 = arith.constant 0 : index
    %12 = vector.load %arg0[%c0_26, %c0_27, %c1_28, %c0_29, %c0_30] : memref<2x9x2x9x6xf32, #tpu.memory_space<vmem>>, vector<2x8x1x8x3xf32>
    %13 = vector.shape_cast %12 : vector<2x8x1x8x3xf32> to vector<2x8x8x3xf32>
    %c0_31 = arith.constant 0 : index
    %c0_32 = arith.constant 0 : index
    %c1_33 = arith.constant 1 : index
    %c0_34 = arith.constant 0 : index
    %c3_35 = arith.constant 3 : index
    %14 = vector.load %arg0[%c0_31, %c0_32, %c1_33, %c0_34, %c3_35] : memref<2x9x2x9x6xf32, #tpu.memory_space<vmem>>, vector<2x8x1x8x3xf32>
    %15 = vector.shape_cast %14 : vector<2x8x1x8x3xf32> to vector<2x8x8x3xf32>
    %c0_36 = arith.constant 0 : index
    %c0_37 = arith.constant 0 : index
    %c1_38 = arith.constant 1 : index
    %c1_39 = arith.constant 1 : index
    %c0_40 = arith.constant 0 : index
    %16 = vector.load %arg0[%c0_36, %c0_37, %c1_38, %c1_39, %c0_40] : memref<2x9x2x9x6xf32, #tpu.memory_space<vmem>>, vector<2x8x1x8x3xf32>
    %17 = vector.shape_cast %16 : vector<2x8x1x8x3xf32> to vector<2x8x8x3xf32>
    %c0_41 = arith.constant 0 : index
    %c1_42 = arith.constant 1 : index
    %c0_43 = arith.constant 0 : index
    %c0_44 = arith.constant 0 : index
    %c0_45 = arith.constant 0 : index
    %18 = vector.load %arg0[%c0_41, %c1_42, %c0_43, %c0_44, %c0_45] : memref<2x9x2x9x6xf32, #tpu.memory_space<vmem>>, vector<2x8x1x8x3xf32>
    %19 = vector.shape_cast %18 : vector<2x8x1x8x3xf32> to vector<2x8x8x3xf32>
    %c0_46 = arith.constant 0 : index
    %c1_47 = arith.constant 1 : index
    %c0_48 = arith.constant 0 : index
    %c0_49 = arith.constant 0 : index
    %c3_50 = arith.constant 3 : index
    %20 = vector.load %arg0[%c0_46, %c1_47, %c0_48, %c0_49, %c3_50] : memref<2x9x2x9x6xf32, #tpu.memory_space<vmem>>, vector<2x8x1x8x3xf32>
    %21 = vector.shape_cast %20 : vector<2x8x1x8x3xf32> to vector<2x8x8x3xf32>
    %c0_51 = arith.constant 0 : index
    %c1_52 = arith.constant 1 : index
    %c0_53 = arith.constant 0 : index
    %c1_54 = arith.constant 1 : index
    %c0_55 = arith.constant 0 : index
    %22 = vector.load %arg0[%c0_51, %c1_52, %c0_53, %c1_54, %c0_55] : memref<2x9x2x9x6xf32, #tpu.memory_space<vmem>>, vector<2x8x1x8x3xf32>
    %23 = vector.shape_cast %22 : vector<2x8x1x8x3xf32> to vector<2x8x8x3xf32>
    %cst_56 = arith.constant 0.000000e+00 : f32
    %24 = vector.broadcast %cst_56 : f32 to vector<2x8x8x5xf32>
    %25 = tpu.concatenate %7, %9, %11, %13, %15, %17, %19, %21, %23, %24 in 3 : vector<2x8x8x3xf32>, vector<2x8x8x3xf32>, vector<2x8x8x3xf32>, vector<2x8x8x3xf32>, vector<2x8x8x3xf32>, vector<2x8x8x3xf32>, vector<2x8x8x3xf32>, vector<2x8x8x3xf32>, vector<2x8x8x3xf32>, vector<2x8x8x5xf32> -> vector<2x8x8x32xf32>
    %26 = vector.shape_cast %25 : vector<2x8x8x32xf32> to vector<128x32xf32>
    %27 = arith.truncf %26 : vector<128x32xf32> to vector<128x32xbf16>
    %c0_57 = arith.constant 0 : index
    %c0_58 = arith.constant 0 : index
    %28 = vector.load %arg1[%c0_57, %c0_58] : memref<712x128xbf16, #tpu.memory_space<vmem>>, vector<32x32xbf16>
    %cst_59 = arith.constant dense<0.000000e+00> : vector<128x32xf32>
    %29 = tpu.matmul %27, %28, %cst_59 {dimension_numbers = #tpu.dot_dimension_numbers<[1], [0], [0], [1], [0, 0, 1, 1], [], []>} : vector<128x32xbf16>, vector<32x32xbf16>, vector<128x32xf32> -> vector<128x32xf32>
    %cst_60 = arith.constant 1.000000e+00 : f32
    %30 = vector.broadcast %cst_60 : f32 to vector<128x32xf32>
    %31 = arith.addf %29, %30 : vector<128x32xf32>
    %cst_61 = arith.constant 0.000000e+00 : f32
    %32 = vector.broadcast %cst_61 : f32 to vector<128x32xf32>
    %33 = arith.cmpf ogt, %31, %32 : vector<128x32xf32>
    %cst_62 = arith.constant 9.000000e-02 : f32
    %34 = vector.broadcast %cst_62 : f32 to vector<128x32xf32>
    %35 = arith.mulf %34, %31 : vector<128x32xf32>
    %36 = arith.select %33, %31, %35 : vector<128x32xi1>, vector<128x32xf32>
    %37 = arith.truncf %36 : vector<128x32xf32> to vector<128x32xbf16>
    %c32 = arith.constant 32 : index
    %c0_63 = arith.constant 0 : index
    %38 = vector.load %arg1[%c32, %c0_63] : memref<712x128xbf16, #tpu.memory_space<vmem>>, vector<32x128xbf16>
    %cst_64 = arith.constant dense<0.000000e+00> : vector<128x128xf32>
    %39 = tpu.matmul %37, %38, %cst_64 {dimension_numbers = #tpu.dot_dimension_numbers<[1], [0], [0], [1], [0, 0, 1, 1], [], []>} : vector<128x32xbf16>, vector<32x128xbf16>, vector<128x128xf32> -> vector<128x128xf32>
    %cst_65 = arith.constant 1.000000e+00 : f32
    %40 = vector.broadcast %cst_65 : f32 to vector<128x128xf32>
    %41 = arith.addf %39, %40 : vector<128x128xf32>
    %cst_66 = arith.constant 0.000000e+00 : f32
    %42 = vector.broadcast %cst_66 : f32 to vector<128x128xf32>
    %43 = arith.cmpf ogt, %41, %42 : vector<128x128xf32>
    %cst_67 = arith.constant 3.000000e-01 : f32
    %44 = vector.broadcast %cst_67 : f32 to vector<128x128xf32>
    %45 = arith.mulf %44, %41 : vector<128x128xf32>
    %46 = arith.select %43, %41, %45 : vector<128x128xi1>, vector<128x128xf32>
    %47 = vector.shape_cast %46 : vector<128x128xf32> to vector<2x8x8x128xf32>
    %c0_68 = arith.constant 0 : index
    %c1_69 = arith.constant 1 : index
    %c1_70 = arith.constant 1 : index
    %c0_71 = arith.constant 0 : index
    %48 = vector.load %arg4[%c0_68, %c1_69, %c1_70, %c0_71] : memref<2x10x10x128xf32, #tpu.memory_space<vmem>>, vector<2x8x8x128xf32>
    tpu.vector_store %arg4[%c0_68, %c1_69, %c1_70, %c0_71], %47 {strides = array<i32>} : memref<2x10x10x128xf32, #tpu.memory_space<vmem>>, vector<2x8x8x128xf32>,
    %c0_72 = arith.constant 0 : index
    %c0_73 = arith.constant 0 : index
    %c0_74 = arith.constant 0 : index
    %49 = vector.load %arg2[%c0_72, %c0_73, %c0_74] : memref<6x9x128xf32, #tpu.memory_space<vmem>>, vector<1x9x128xf32>
    %50 = vector.shape_cast %49 : vector<1x9x128xf32> to vector<9x128xf32>
    %c0_75 = arith.constant 0 : index
    %c0_76 = arith.constant 0 : index
    %c0_77 = arith.constant 0 : index
    %c0_78 = arith.constant 0 : index
    %51 = vector.load %arg4[%c0_75, %c0_76, %c0_77, %c0_78] : memref<2x10x10x128xf32, #tpu.memory_space<vmem>>, vector<2x8x8x128xf32>
    %52 = vector.extract_strided_slice %50 {offsets = [0, 0], sizes = [1, 128], strides = [1, 1]} : vector<9x128xf32> to vector<1x128xf32>
    %53 = vector.shape_cast %52 : vector<1x128xf32> to vector<1x1x1x128xf32>
    %54 = vector.broadcast %53 : vector<1x1x1x128xf32> to vector<2x8x8x128xf32>
    %55 = arith.mulf %51, %54 : vector<2x8x8x128xf32>
    %c0_79 = arith.constant 0 : index
    %c0_80 = arith.constant 0 : index
    %c1_81 = arith.constant 1 : index
    %c0_82 = arith.constant 0 : index
    %56 = vector.load %arg4[%c0_79, %c0_80, %c1_81, %c0_82] : memref<2x10x10x128xf32, #tpu.memory_space<vmem>>, vector<2x8x8x128xf32>
    %57 = vector.extract_strided_slice %50 {offsets = [1, 0], sizes = [1, 128], strides = [1, 1]} : vector<9x128xf32> to vector<1x128xf32>
    %58 = vector.shape_cast %57 : vector<1x128xf32> to vector<1x1x1x128xf32>
    %59 = vector.broadcast %58 : vector<1x1x1x128xf32> to vector<2x8x8x128xf32>
    %60 = arith.mulf %56, %59 : vector<2x8x8x128xf32>
    %61 = arith.addf %55, %60 : vector<2x8x8x128xf32>
    %c0_83 = arith.constant 0 : index
    %c0_84 = arith.constant 0 : index
    %c2 = arith.constant 2 : index
    %c0_85 = arith.constant 0 : index
    %62 = vector.load %arg4[%c0_83, %c0_84, %c2, %c0_85] : memref<2x10x10x128xf32, #tpu.memory_space<vmem>>, vector<2x8x8x128xf32>
    %63 = vector.extract_strided_slice %50 {offsets = [2, 0], sizes = [1, 128], strides = [1, 1]} : vector<9x128xf32> to vector<1x128xf32>
    %64 = vector.shape_cast %63 : vector<1x128xf32> to vector<1x1x1x128xf32>
    %65 = vector.broadcast %64 : vector<1x1x1x128xf32> to vector<2x8x8x128xf32>
    %66 = arith.mulf %62, %65 : vector<2x8x8x128xf32>
    %67 = arith.addf %61, %66 : vector<2x8x8x128xf32>
    %c0_86 = arith.constant 0 : index
    %c1_87 = arith.constant 1 : index
    %c0_88 = arith.constant 0 : index
    %c0_89 = arith.constant 0 : index
    %68 = vector.load %arg4[%c0_86, %c1_87, %c0_88, %c0_89] : memref<2x10x10x128xf32, #tpu.memory_space<vmem>>, vector<2x8x8x128xf32>
    %69 = vector.extract_strided_slice %50 {offsets = [3, 0], sizes = [1, 128], strides = [1, 1]} : vector<9x128xf32> to vector<1x128xf32>
    %70 = vector.shape_cast %69 : vector<1x128xf32> to vector<1x1x1x128xf32>
    %71 = vector.broadcast %70 : vector<1x1x1x128xf32> to vector<2x8x8x128xf32>
    %72 = arith.mulf %68, %71 : vector<2x8x8x128xf32>
    %73 = arith.addf %67, %72 : vector<2x8x8x128xf32>
    %c0_90 = arith.constant 0 : index
    %c1_91 = arith.constant 1 : index
    %c1_92 = arith.constant 1 : index
    %c0_93 = arith.constant 0 : index
    %74 = vector.load %arg4[%c0_90, %c1_91, %c1_92, %c0_93] : memref<2x10x10x128xf32, #tpu.memory_space<vmem>>, vector<2x8x8x128xf32>
    %75 = vector.extract_strided_slice %50 {offsets = [4, 0], sizes = [1, 128], strides = [1, 1]} : vector<9x128xf32> to vector<1x128xf32>
    %76 = vector.shape_cast %75 : vector<1x128xf32> to vector<1x1x1x128xf32>
    %77 = vector.broadcast %76 : vector<1x1x1x128xf32> to vector<2x8x8x128xf32>
    %78 = arith.mulf %74, %77 : vector<2x8x8x128xf32>
    %79 = arith.addf %73, %78 : vector<2x8x8x128xf32>
    %c0_94 = arith.constant 0 : index
    %c1_95 = arith.constant 1 : index
    %c2_96 = arith.constant 2 : index
    %c0_97 = arith.constant 0 : index
    %80 = vector.load %arg4[%c0_94, %c1_95, %c2_96, %c0_97] : memref<2x10x10x128xf32, #tpu.memory_space<vmem>>, vector<2x8x8x128xf32>
    %81 = vector.extract_strided_slice %50 {offsets = [5, 0], sizes = [1, 128], strides = [1, 1]} : vector<9x128xf32> to vector<1x128xf32>
    %82 = vector.shape_cast %81 : vector<1x128xf32> to vector<1x1x1x128xf32>
    %83 = vector.broadcast %82 : vector<1x1x1x128xf32> to vector<2x8x8x128xf32>
    %84 = arith.mulf %80, %83 : vector<2x8x8x128xf32>
    %85 = arith.addf %79, %84 : vector<2x8x8x128xf32>
    %c0_98 = arith.constant 0 : index
    %c2_99 = arith.constant 2 : index
    %c0_100 = arith.constant 0 : index
    %c0_101 = arith.constant 0 : index
    %86 = vector.load %arg4[%c0_98, %c2_99, %c0_100, %c0_101] : memref<2x10x10x128xf32, #tpu.memory_space<vmem>>, vector<2x8x8x128xf32>
    %87 = vector.extract_strided_slice %50 {offsets = [6, 0], sizes = [1, 128], strides = [1, 1]} : vector<9x128xf32> to vector<1x128xf32>
    %88 = vector.shape_cast %87 : vector<1x128xf32> to vector<1x1x1x128xf32>
    %89 = vector.broadcast %88 : vector<1x1x1x128xf32> to vector<2x8x8x128xf32>
    %90 = arith.mulf %86, %89 : vector<2x8x8x128xf32>
    %91 = arith.addf %85, %90 : vector<2x8x8x128xf32>
    %c0_102 = arith.constant 0 : index
    %c2_103 = arith.constant 2 : index
    %c1_104 = arith.constant 1 : index
    %c0_105 = arith.constant 0 : index
    %92 = vector.load %arg4[%c0_102, %c2_103, %c1_104, %c0_105] : memref<2x10x10x128xf32, #tpu.memory_space<vmem>>, vector<2x8x8x128xf32>
    %93 = vector.extract_strided_slice %50 {offsets = [7, 0], sizes = [1, 128], strides = [1, 1]} : vector<9x128xf32> to vector<1x128xf32>
    %94 = vector.shape_cast %93 : vector<1x128xf32> to vector<1x1x1x128xf32>
    %95 = vector.broadcast %94 : vector<1x1x1x128xf32> to vector<2x8x8x128xf32>
    %96 = arith.mulf %92, %95 : vector<2x8x8x128xf32>
    %97 = arith.addf %91, %96 : vector<2x8x8x128xf32>
    %c0_106 = arith.constant 0 : index
    %c2_107 = arith.constant 2 : index
    %c2_108 = arith.constant 2 : index
    %c0_109 = arith.constant 0 : index
    %98 = vector.load %arg4[%c0_106, %c2_107, %c2_108, %c0_109] : memref<2x10x10x128xf32, #tpu.memory_space<vmem>>, vector<2x8x8x128xf32>
    %99 = vector.extract_strided_slice %50 {offsets = [8, 0], sizes = [1, 128], strides = [1, 1]} : vector<9x128xf32> to vector<1x128xf32>
    %100 = vector.shape_cast %99 : vector<1x128xf32> to vector<1x1x1x128xf32>
    %101 = vector.broadcast %100 : vector<1x1x1x128xf32> to vector<2x8x8x128xf32>
    %102 = arith.mulf %98, %101 : vector<2x8x8x128xf32>
    %103 = arith.addf %97, %102 : vector<2x8x8x128xf32>
    %cst_110 = arith.constant 1.000000e+00 : f32
    %104 = vector.broadcast %cst_110 : f32 to vector<2x8x8x128xf32>
    %105 = arith.addf %103, %104 : vector<2x8x8x128xf32>
    %cst_111 = arith.constant 0.000000e+00 : f32
    %106 = vector.broadcast %cst_111 : f32 to vector<2x8x8x128xf32>
    %107 = arith.cmpf ogt, %105, %106 : vector<2x8x8x128xf32>
    %cst_112 = arith.constant 3.000000e-01 : f32
    %108 = vector.broadcast %cst_112 : f32 to vector<2x8x8x128xf32>
    %109 = arith.mulf %108, %105 : vector<2x8x8x128xf32>
    %110 = arith.select %107, %105, %109 : vector<2x8x8x128xi1>, vector<2x8x8x128xf32>
    %111 = vector.shape_cast %110 : vector<2x8x8x128xf32> to vector<128x128xf32>
    %112 = arith.truncf %111 : vector<128x128xf32> to vector<128x128xbf16>
    %c64 = arith.constant 64 : index
    %c0_113 = arith.constant 0 : index
    %113 = vector.load %arg1[%c64, %c0_113] : memref<712x128xbf16, #tpu.memory_space<vmem>>, vector<128x32xbf16>
    %cst_114 = arith.constant dense<0.000000e+00> : vector<128x32xf32>
    %114 = tpu.matmul %112, %113, %cst_114 {dimension_numbers = #tpu.dot_dimension_numbers<[1], [0], [0], [1], [0, 0, 1, 1], [], []>} : vector<128x128xbf16>, vector<128x32xbf16>, vector<128x32xf32> -> vector<128x32xf32>
    %cst_115 = arith.constant 1.000000e+00 : f32
    %115 = vector.broadcast %cst_115 : f32 to vector<128x32xf32>
    %116 = arith.addf %114, %115 : vector<128x32xf32>
    %cst_116 = arith.constant 0.000000e+00 : f32
    %117 = vector.broadcast %cst_116 : f32 to vector<128x32xf32>
    %118 = arith.cmpf ogt, %116, %117 : vector<128x32xf32>
    %cst_117 = arith.constant 3.000000e-01 : f32
    %119 = vector.broadcast %cst_117 : f32 to vector<128x32xf32>
    %120 = arith.mulf %119, %116 : vector<128x32xf32>
    %121 = arith.select %118, %116, %120 : vector<128x32xi1>, vector<128x32xf32>
    %122 = arith.addf %121, %36 : vector<128x32xf32>
    %123 = arith.truncf %122 : vector<128x32xf32> to vector<128x32xbf16>
    %c192 = arith.constant 192 : index
    %c0_118 = arith.constant 0 : index
    %124 = vector.load %arg1[%c192, %c0_118] : memref<712x128xbf16, #tpu.memory_space<vmem>>, vector<32x128xbf16>
    %cst_119 = arith.constant dense<0.000000e+00> : vector<128x128xf32>
    %125 = tpu.matmul %123, %124, %cst_119 {dimension_numbers = #tpu.dot_dimension_numbers<[1], [0], [0], [1], [0, 0, 1, 1], [], []>} : vector<128x32xbf16>, vector<32x128xbf16>, vector<128x128xf32> -> vector<128x128xf32>
    %cst_120 = arith.constant 1.000000e+00 : f32
    %126 = vector.broadcast %cst_120 : f32 to vector<128x128xf32>
    %127 = arith.addf %125, %126 : vector<128x128xf32>
    %cst_121 = arith.constant 0.000000e+00 : f32
    %128 = vector.broadcast %cst_121 : f32 to vector<128x128xf32>
    %129 = arith.cmpf ogt, %127, %128 : vector<128x128xf32>
    %cst_122 = arith.constant 3.000000e-01 : f32
    %130 = vector.broadcast %cst_122 : f32 to vector<128x128xf32>
    %131 = arith.mulf %130, %127 : vector<128x128xf32>
    %132 = arith.select %129, %127, %131 : vector<128x128xi1>, vector<128x128xf32>
    %133 = vector.shape_cast %132 : vector<128x128xf32> to vector<2x8x8x128xf32>
    %c0_123 = arith.constant 0 : index
    %c1_124 = arith.constant 1 : index
    %c1_125 = arith.constant 1 : index
    %c0_126 = arith.constant 0 : index
    %134 = vector.load %arg4[%c0_123, %c1_124, %c1_125, %c0_126] : memref<2x10x10x128xf32, #tpu.memory_space<vmem>>, vector<2x8x8x128xf32>
    tpu.vector_store %arg4[%c0_123, %c1_124, %c1_125, %c0_126], %133 {strides = array<i32>} : memref<2x10x10x128xf32, #tpu.memory_space<vmem>>, vector<2x8x8x128xf32>,
    %c1_127 = arith.constant 1 : index
    %c0_128 = arith.constant 0 : index
    %c0_129 = arith.constant 0 : index
    %135 = vector.load %arg2[%c1_127, %c0_128, %c0_129] : memref<6x9x128xf32, #tpu.memory_space<vmem>>, vector<1x9x128xf32>
    %136 = vector.shape_cast %135 : vector<1x9x128xf32> to vector<9x128xf32>
    %c0_130 = arith.constant 0 : index
    %c0_131 = arith.constant 0 : index
    %c0_132 = arith.constant 0 : index
    %c0_133 = arith.constant 0 : index
    %137 = vector.load %arg4[%c0_130, %c0_131, %c0_132, %c0_133] : memref<2x10x10x128xf32, #tpu.memory_space<vmem>>, vector<2x8x8x128xf32>
    %138 = vector.extract_strided_slice %136 {offsets = [0, 0], sizes = [1, 128], strides = [1, 1]} : vector<9x128xf32> to vector<1x128xf32>
    %139 = vector.shape_cast %138 : vector<1x128xf32> to vector<1x1x1x128xf32>
    %140 = vector.broadcast %139 : vector<1x1x1x128xf32> to vector<2x8x8x128xf32>
    %141 = arith.mulf %137, %140 : vector<2x8x8x128xf32>
    %c0_134 = arith.constant 0 : index
    %c0_135 = arith.constant 0 : index
    %c1_136 = arith.constant 1 : index
    %c0_137 = arith.constant 0 : index
    %142 = vector.load %arg4[%c0_134, %c0_135, %c1_136, %c0_137] : memref<2x10x10x128xf32, #tpu.memory_space<vmem>>, vector<2x8x8x128xf32>
    %143 = vector.extract_strided_slice %136 {offsets = [1, 0], sizes = [1, 128], strides = [1, 1]} : vector<9x128xf32> to vector<1x128xf32>
    %144 = vector.shape_cast %143 : vector<1x128xf32> to vector<1x1x1x128xf32>
    %145 = vector.broadcast %144 : vector<1x1x1x128xf32> to vector<2x8x8x128xf32>
    %146 = arith.mulf %142, %145 : vector<2x8x8x128xf32>
    %147 = arith.addf %141, %146 : vector<2x8x8x128xf32>
    %c0_138 = arith.constant 0 : index
    %c0_139 = arith.constant 0 : index
    %c2_140 = arith.constant 2 : index
    %c0_141 = arith.constant 0 : index
    %148 = vector.load %arg4[%c0_138, %c0_139, %c2_140, %c0_141] : memref<2x10x10x128xf32, #tpu.memory_space<vmem>>, vector<2x8x8x128xf32>
    %149 = vector.extract_strided_slice %136 {offsets = [2, 0], sizes = [1, 128], strides = [1, 1]} : vector<9x128xf32> to vector<1x128xf32>
    %150 = vector.shape_cast %149 : vector<1x128xf32> to vector<1x1x1x128xf32>
    %151 = vector.broadcast %150 : vector<1x1x1x128xf32> to vector<2x8x8x128xf32>
    %152 = arith.mulf %148, %151 : vector<2x8x8x128xf32>
    %153 = arith.addf %147, %152 : vector<2x8x8x128xf32>
    %c0_142 = arith.constant 0 : index
    %c1_143 = arith.constant 1 : index
    %c0_144 = arith.constant 0 : index
    %c0_145 = arith.constant 0 : index
    %154 = vector.load %arg4[%c0_142, %c1_143, %c0_144, %c0_145] : memref<2x10x10x128xf32, #tpu.memory_space<vmem>>, vector<2x8x8x128xf32>
    %155 = vector.extract_strided_slice %136 {offsets = [3, 0], sizes = [1, 128], strides = [1, 1]} : vector<9x128xf32> to vector<1x128xf32>
    %156 = vector.shape_cast %155 : vector<1x128xf32> to vector<1x1x1x128xf32>
    %157 = vector.broadcast %156 : vector<1x1x1x128xf32> to vector<2x8x8x128xf32>
    %158 = arith.mulf %154, %157 : vector<2x8x8x128xf32>
    %159 = arith.addf %153, %158 : vector<2x8x8x128xf32>
    %c0_146 = arith.constant 0 : index
    %c1_147 = arith.constant 1 : index
    %c1_148 = arith.constant 1 : index
    %c0_149 = arith.constant 0 : index
    %160 = vector.load %arg4[%c0_146, %c1_147, %c1_148, %c0_149] : memref<2x10x10x128xf32, #tpu.memory_space<vmem>>, vector<2x8x8x128xf32>
    %161 = vector.extract_strided_slice %136 {offsets = [4, 0], sizes = [1, 128], strides = [1, 1]} : vector<9x128xf32> to vector<1x128xf32>
    %162 = vector.shape_cast %161 : vector<1x128xf32> to vector<1x1x1x128xf32>
    %163 = vector.broadcast %162 : vector<1x1x1x128xf32> to vector<2x8x8x128xf32>
    %164 = arith.mulf %160, %163 : vector<2x8x8x128xf32>
    %165 = arith.addf %159, %164 : vector<2x8x8x128xf32>
    %c0_150 = arith.constant 0 : index
    %c1_151 = arith.constant 1 : index
    %c2_152 = arith.constant 2 : index
    %c0_153 = arith.constant 0 : index
    %166 = vector.load %arg4[%c0_150, %c1_151, %c2_152, %c0_153] : memref<2x10x10x128xf32, #tpu.memory_space<vmem>>, vector<2x8x8x128xf32>
    %167 = vector.extract_strided_slice %136 {offsets = [5, 0], sizes = [1, 128], strides = [1, 1]} : vector<9x128xf32> to vector<1x128xf32>
    %168 = vector.shape_cast %167 : vector<1x128xf32> to vector<1x1x1x128xf32>
    %169 = vector.broadcast %168 : vector<1x1x1x128xf32> to vector<2x8x8x128xf32>
    %170 = arith.mulf %166, %169 : vector<2x8x8x128xf32>
    %171 = arith.addf %165, %170 : vector<2x8x8x128xf32>
    %c0_154 = arith.constant 0 : index
    %c2_155 = arith.constant 2 : index
    %c0_156 = arith.constant 0 : index
    %c0_157 = arith.constant 0 : index
    %172 = vector.load %arg4[%c0_154, %c2_155, %c0_156, %c0_157] : memref<2x10x10x128xf32, #tpu.memory_space<vmem>>, vector<2x8x8x128xf32>
    %173 = vector.extract_strided_slice %136 {offsets = [6, 0], sizes = [1, 128], strides = [1, 1]} : vector<9x128xf32> to vector<1x128xf32>
    %174 = vector.shape_cast %173 : vector<1x128xf32> to vector<1x1x1x128xf32>
    %175 = vector.broadcast %174 : vector<1x1x1x128xf32> to vector<2x8x8x128xf32>
    %176 = arith.mulf %172, %175 : vector<2x8x8x128xf32>
    %177 = arith.addf %171, %176 : vector<2x8x8x128xf32>
    %c0_158 = arith.constant 0 : index
    %c2_159 = arith.constant 2 : index
    %c1_160 = arith.constant 1 : index
    %c0_161 = arith.constant 0 : index
    %178 = vector.load %arg4[%c0_158, %c2_159, %c1_160, %c0_161] : memref<2x10x10x128xf32, #tpu.memory_space<vmem>>, vector<2x8x8x128xf32>
    %179 = vector.extract_strided_slice %136 {offsets = [7, 0], sizes = [1, 128], strides = [1, 1]} : vector<9x128xf32> to vector<1x128xf32>
    %180 = vector.shape_cast %179 : vector<1x128xf32> to vector<1x1x1x128xf32>
    %181 = vector.broadcast %180 : vector<1x1x1x128xf32> to vector<2x8x8x128xf32>
    %182 = arith.mulf %178, %181 : vector<2x8x8x128xf32>
    %183 = arith.addf %177, %182 : vector<2x8x8x128xf32>
    %c0_162 = arith.constant 0 : index
    %c2_163 = arith.constant 2 : index
    %c2_164 = arith.constant 2 : index
    %c0_165 = arith.constant 0 : index
    %184 = vector.load %arg4[%c0_162, %c2_163, %c2_164, %c0_165] : memref<2x10x10x128xf32, #tpu.memory_space<vmem>>, vector<2x8x8x128xf32>
    %185 = vector.extract_strided_slice %136 {offsets = [8, 0], sizes = [1, 128], strides = [1, 1]} : vector<9x128xf32> to vector<1x128xf32>
    %186 = vector.shape_cast %185 : vector<1x128xf32> to vector<1x1x1x128xf32>
    %187 = vector.broadcast %186 : vector<1x1x1x128xf32> to vector<2x8x8x128xf32>
    %188 = arith.mulf %184, %187 : vector<2x8x8x128xf32>
    %189 = arith.addf %183, %188 : vector<2x8x8x128xf32>
    %cst_166 = arith.constant 1.000000e+00 : f32
    %190 = vector.broadcast %cst_166 : f32 to vector<2x8x8x128xf32>
    %191 = arith.addf %189, %190 : vector<2x8x8x128xf32>
    %cst_167 = arith.constant 0.000000e+00 : f32
    %192 = vector.broadcast %cst_167 : f32 to vector<2x8x8x128xf32>
    %193 = arith.cmpf ogt, %191, %192 : vector<2x8x8x128xf32>
    %cst_168 = arith.constant 3.000000e-01 : f32
    %194 = vector.broadcast %cst_168 : f32 to vector<2x8x8x128xf32>
    %195 = arith.mulf %194, %191 : vector<2x8x8x128xf32>
    %196 = arith.select %193, %191, %195 : vector<2x8x8x128xi1>, vector<2x8x8x128xf32>
    %197 = vector.shape_cast %196 : vector<2x8x8x128xf32> to vector<2x4x2x8x128xf32>
    %198 = vector.extract_strided_slice %197 {offsets = [0, 0, 0, 0, 0], sizes = [2, 4, 1, 8, 128], strides = [1, 1, 1, 1, 1]} : vector<2x4x2x8x128xf32> to vector<2x4x1x8x128xf32>
    %199 = vector.shape_cast %198 : vector<2x4x1x8x128xf32> to vector<2x4x8x128xf32>
    %200 = vector.extract_strided_slice %197 {offsets = [0, 0, 1, 0, 0], sizes = [2, 4, 1, 8, 128], strides = [1, 1, 1, 1, 1]} : vector<2x4x2x8x128xf32> to vector<2x4x1x8x128xf32>
    %201 = vector.shape_cast %200 : vector<2x4x1x8x128xf32> to vector<2x4x8x128xf32>
    %202 = arith.maximumf %199, %201 : vector<2x4x8x128xf32>
    %203 = vector.extract_strided_slice %202 {offsets = [0, 0, 0, 0], sizes = [2, 4, 1, 128], strides = [1, 1, 1, 1]} : vector<2x4x8x128xf32> to vector<2x4x1x128xf32>
    %204 = vector.extract_strided_slice %202 {offsets = [0, 0, 1, 0], sizes = [2, 4, 1, 128], strides = [1, 1, 1, 1]} : vector<2x4x8x128xf32> to vector<2x4x1x128xf32>
    %205 = arith.maximumf %203, %204 : vector<2x4x1x128xf32>
    %206 = vector.extract_strided_slice %202 {offsets = [0, 0, 2, 0], sizes = [2, 4, 1, 128], strides = [1, 1, 1, 1]} : vector<2x4x8x128xf32> to vector<2x4x1x128xf32>
    %207 = vector.extract_strided_slice %202 {offsets = [0, 0, 3, 0], sizes = [2, 4, 1, 128], strides = [1, 1, 1, 1]} : vector<2x4x8x128xf32> to vector<2x4x1x128xf32>
    %208 = arith.maximumf %206, %207 : vector<2x4x1x128xf32>
    %209 = vector.extract_strided_slice %202 {offsets = [0, 0, 4, 0], sizes = [2, 4, 1, 128], strides = [1, 1, 1, 1]} : vector<2x4x8x128xf32> to vector<2x4x1x128xf32>
    %210 = vector.extract_strided_slice %202 {offsets = [0, 0, 5, 0], sizes = [2, 4, 1, 128], strides = [1, 1, 1, 1]} : vector<2x4x8x128xf32> to vector<2x4x1x128xf32>
    %211 = arith.maximumf %209, %210 : vector<2x4x1x128xf32>
    %212 = vector.extract_strided_slice %202 {offsets = [0, 0, 6, 0], sizes = [2, 4, 1, 128], strides = [1, 1, 1, 1]} : vector<2x4x8x128xf32> to vector<2x4x1x128xf32>
    %213 = vector.extract_strided_slice %202 {offsets = [0, 0, 7, 0], sizes = [2, 4, 1, 128], strides = [1, 1, 1, 1]} : vector<2x4x8x128xf32> to vector<2x4x1x128xf32>
    %214 = arith.maximumf %212, %213 : vector<2x4x1x128xf32>
    %215 = tpu.concatenate %205, %208, %211, %214 in 2 : vector<2x4x1x128xf32>, vector<2x4x1x128xf32>, vector<2x4x1x128xf32>, vector<2x4x1x128xf32> -> vector<2x4x4x128xf32>
    %216 = vector.shape_cast %215 : vector<2x4x4x128xf32> to vector<32x128xf32>
    %217 = arith.truncf %216 : vector<32x128xf32> to vector<32x128xbf16>
    %c224 = arith.constant 224 : index
    %c0_169 = arith.constant 0 : index
    %218 = vector.load %arg1[%c224, %c0_169] : memref<712x128xbf16, #tpu.memory_space<vmem>>, vector<128x16xbf16>
    %cst_170 = arith.constant dense<0.000000e+00> : vector<32x16xf32>
    %219 = tpu.matmul %217, %218, %cst_170 {dimension_numbers = #tpu.dot_dimension_numbers<[1], [0], [0], [1], [0, 0, 1, 1], [], []>} : vector<32x128xbf16>, vector<128x16xbf16>, vector<32x16xf32> -> vector<32x16xf32>
    %cst_171 = arith.constant 1.000000e+00 : f32
    %220 = vector.broadcast %cst_171 : f32 to vector<32x16xf32>
    %221 = arith.addf %219, %220 : vector<32x16xf32>
    %cst_172 = arith.constant 0.000000e+00 : f32
    %222 = vector.broadcast %cst_172 : f32 to vector<32x16xf32>
    %223 = arith.cmpf ogt, %221, %222 : vector<32x16xf32>
    %cst_173 = arith.constant 3.000000e-01 : f32
    %224 = vector.broadcast %cst_173 : f32 to vector<32x16xf32>
    %225 = arith.mulf %224, %221 : vector<32x16xf32>
    %226 = arith.select %223, %221, %225 : vector<32x16xi1>, vector<32x16xf32>
    %227 = arith.truncf %226 : vector<32x16xf32> to vector<32x16xbf16>
    %c352 = arith.constant 352 : index
    %c0_174 = arith.constant 0 : index
    %228 = vector.load %arg1[%c352, %c0_174] : memref<712x128xbf16, #tpu.memory_space<vmem>>, vector<16x64xbf16>
    %cst_175 = arith.constant dense<0.000000e+00> : vector<32x64xf32>
    %229 = tpu.matmul %227, %228, %cst_175 {dimension_numbers = #tpu.dot_dimension_numbers<[1], [0], [0], [1], [0, 0, 1, 1], [], []>} : vector<32x16xbf16>, vector<16x64xbf16>, vector<32x64xf32> -> vector<32x64xf32>
    %cst_176 = arith.constant 1.000000e+00 : f32
    %230 = vector.broadcast %cst_176 : f32 to vector<32x64xf32>
    %231 = arith.addf %229, %230 : vector<32x64xf32>
    %cst_177 = arith.constant 0.000000e+00 : f32
    %232 = vector.broadcast %cst_177 : f32 to vector<32x64xf32>
    %233 = arith.cmpf ogt, %231, %232 : vector<32x64xf32>
    %cst_178 = arith.constant 3.000000e-01 : f32
    %234 = vector.broadcast %cst_178 : f32 to vector<32x64xf32>
    %235 = arith.mulf %234, %231 : vector<32x64xf32>
    %236 = arith.select %233, %231, %235 : vector<32x64xi1>, vector<32x64xf32>
    %237 = vector.shape_cast %236 : vector<32x64xf32> to vector<2x4x4x64xf32>
    %c0_179 = arith.constant 0 : index
    %c1_180 = arith.constant 1 : index
    %c1_181 = arith.constant 1 : index
    %c0_182 = arith.constant 0 : index
    %238 = vector.load %arg5[%c0_179, %c1_180, %c1_181, %c0_182] : memref<2x6x6x64xf32, #tpu.memory_space<vmem>>, vector<2x4x4x64xf32>
    tpu.vector_store %arg5[%c0_179, %c1_180, %c1_181, %c0_182], %237 {strides = array<i32>} : memref<2x6x6x64xf32, #tpu.memory_space<vmem>>, vector<2x4x4x64xf32>,
    %c2_183 = arith.constant 2 : index
    %c0_184 = arith.constant 0 : index
    %c0_185 = arith.constant 0 : index
    %239 = vector.load %arg2[%c2_183, %c0_184, %c0_185] : memref<6x9x128xf32, #tpu.memory_space<vmem>>, vector<1x9x128xf32>
    %240 = vector.shape_cast %239 : vector<1x9x128xf32> to vector<9x128xf32>
    %c0_186 = arith.constant 0 : index
    %c0_187 = arith.constant 0 : index
    %c0_188 = arith.constant 0 : index
    %c0_189 = arith.constant 0 : index
    %241 = vector.load %arg5[%c0_186, %c0_187, %c0_188, %c0_189] : memref<2x6x6x64xf32, #tpu.memory_space<vmem>>, vector<2x4x4x64xf32>
    %242 = vector.extract_strided_slice %240 {offsets = [0, 0], sizes = [1, 64], strides = [1, 1]} : vector<9x128xf32> to vector<1x64xf32>
    %243 = vector.shape_cast %242 : vector<1x64xf32> to vector<1x1x1x64xf32>
    %244 = vector.broadcast %243 : vector<1x1x1x64xf32> to vector<2x4x4x64xf32>
    %245 = arith.mulf %241, %244 : vector<2x4x4x64xf32>
    %c0_190 = arith.constant 0 : index
    %c0_191 = arith.constant 0 : index
    %c1_192 = arith.constant 1 : index
    %c0_193 = arith.constant 0 : index
    %246 = vector.load %arg5[%c0_190, %c0_191, %c1_192, %c0_193] : memref<2x6x6x64xf32, #tpu.memory_space<vmem>>, vector<2x4x4x64xf32>
    %247 = vector.extract_strided_slice %240 {offsets = [1, 0], sizes = [1, 64], strides = [1, 1]} : vector<9x128xf32> to vector<1x64xf32>
    %248 = vector.shape_cast %247 : vector<1x64xf32> to vector<1x1x1x64xf32>
    %249 = vector.broadcast %248 : vector<1x1x1x64xf32> to vector<2x4x4x64xf32>
    %250 = arith.mulf %246, %249 : vector<2x4x4x64xf32>
    %251 = arith.addf %245, %250 : vector<2x4x4x64xf32>
    %c0_194 = arith.constant 0 : index
    %c0_195 = arith.constant 0 : index
    %c2_196 = arith.constant 2 : index
    %c0_197 = arith.constant 0 : index
    %252 = vector.load %arg5[%c0_194, %c0_195, %c2_196, %c0_197] : memref<2x6x6x64xf32, #tpu.memory_space<vmem>>, vector<2x4x4x64xf32>
    %253 = vector.extract_strided_slice %240 {offsets = [2, 0], sizes = [1, 64], strides = [1, 1]} : vector<9x128xf32> to vector<1x64xf32>
    %254 = vector.shape_cast %253 : vector<1x64xf32> to vector<1x1x1x64xf32>
    %255 = vector.broadcast %254 : vector<1x1x1x64xf32> to vector<2x4x4x64xf32>
    %256 = arith.mulf %252, %255 : vector<2x4x4x64xf32>
    %257 = arith.addf %251, %256 : vector<2x4x4x64xf32>
    %c0_198 = arith.constant 0 : index
    %c1_199 = arith.constant 1 : index
    %c0_200 = arith.constant 0 : index
    %c0_201 = arith.constant 0 : index
    %258 = vector.load %arg5[%c0_198, %c1_199, %c0_200, %c0_201] : memref<2x6x6x64xf32, #tpu.memory_space<vmem>>, vector<2x4x4x64xf32>
    %259 = vector.extract_strided_slice %240 {offsets = [3, 0], sizes = [1, 64], strides = [1, 1]} : vector<9x128xf32> to vector<1x64xf32>
    %260 = vector.shape_cast %259 : vector<1x64xf32> to vector<1x1x1x64xf32>
    %261 = vector.broadcast %260 : vector<1x1x1x64xf32> to vector<2x4x4x64xf32>
    %262 = arith.mulf %258, %261 : vector<2x4x4x64xf32>
    %263 = arith.addf %257, %262 : vector<2x4x4x64xf32>
    %c0_202 = arith.constant 0 : index
    %c1_203 = arith.constant 1 : index
    %c1_204 = arith.constant 1 : index
    %c0_205 = arith.constant 0 : index
    %264 = vector.load %arg5[%c0_202, %c1_203, %c1_204, %c0_205] : memref<2x6x6x64xf32, #tpu.memory_space<vmem>>, vector<2x4x4x64xf32>
    %265 = vector.extract_strided_slice %240 {offsets = [4, 0], sizes = [1, 64], strides = [1, 1]} : vector<9x128xf32> to vector<1x64xf32>
    %266 = vector.shape_cast %265 : vector<1x64xf32> to vector<1x1x1x64xf32>
    %267 = vector.broadcast %266 : vector<1x1x1x64xf32> to vector<2x4x4x64xf32>
    %268 = arith.mulf %264, %267 : vector<2x4x4x64xf32>
    %269 = arith.addf %263, %268 : vector<2x4x4x64xf32>
    %c0_206 = arith.constant 0 : index
    %c1_207 = arith.constant 1 : index
    %c2_208 = arith.constant 2 : index
    %c0_209 = arith.constant 0 : index
    %270 = vector.load %arg5[%c0_206, %c1_207, %c2_208, %c0_209] : memref<2x6x6x64xf32, #tpu.memory_space<vmem>>, vector<2x4x4x64xf32>
    %271 = vector.extract_strided_slice %240 {offsets = [5, 0], sizes = [1, 64], strides = [1, 1]} : vector<9x128xf32> to vector<1x64xf32>
    %272 = vector.shape_cast %271 : vector<1x64xf32> to vector<1x1x1x64xf32>
    %273 = vector.broadcast %272 : vector<1x1x1x64xf32> to vector<2x4x4x64xf32>
    %274 = arith.mulf %270, %273 : vector<2x4x4x64xf32>
    %275 = arith.addf %269, %274 : vector<2x4x4x64xf32>
    %c0_210 = arith.constant 0 : index
    %c2_211 = arith.constant 2 : index
    %c0_212 = arith.constant 0 : index
    %c0_213 = arith.constant 0 : index
    %276 = vector.load %arg5[%c0_210, %c2_211, %c0_212, %c0_213] : memref<2x6x6x64xf32, #tpu.memory_space<vmem>>, vector<2x4x4x64xf32>
    %277 = vector.extract_strided_slice %240 {offsets = [6, 0], sizes = [1, 64], strides = [1, 1]} : vector<9x128xf32> to vector<1x64xf32>
    %278 = vector.shape_cast %277 : vector<1x64xf32> to vector<1x1x1x64xf32>
    %279 = vector.broadcast %278 : vector<1x1x1x64xf32> to vector<2x4x4x64xf32>
    %280 = arith.mulf %276, %279 : vector<2x4x4x64xf32>
    %281 = arith.addf %275, %280 : vector<2x4x4x64xf32>
    %c0_214 = arith.constant 0 : index
    %c2_215 = arith.constant 2 : index
    %c1_216 = arith.constant 1 : index
    %c0_217 = arith.constant 0 : index
    %282 = vector.load %arg5[%c0_214, %c2_215, %c1_216, %c0_217] : memref<2x6x6x64xf32, #tpu.memory_space<vmem>>, vector<2x4x4x64xf32>
    %283 = vector.extract_strided_slice %240 {offsets = [7, 0], sizes = [1, 64], strides = [1, 1]} : vector<9x128xf32> to vector<1x64xf32>
    %284 = vector.shape_cast %283 : vector<1x64xf32> to vector<1x1x1x64xf32>
    %285 = vector.broadcast %284 : vector<1x1x1x64xf32> to vector<2x4x4x64xf32>
    %286 = arith.mulf %282, %285 : vector<2x4x4x64xf32>
    %287 = arith.addf %281, %286 : vector<2x4x4x64xf32>
    %c0_218 = arith.constant 0 : index
    %c2_219 = arith.constant 2 : index
    %c2_220 = arith.constant 2 : index
    %c0_221 = arith.constant 0 : index
    %288 = vector.load %arg5[%c0_218, %c2_219, %c2_220, %c0_221] : memref<2x6x6x64xf32, #tpu.memory_space<vmem>>, vector<2x4x4x64xf32>
    %289 = vector.extract_strided_slice %240 {offsets = [8, 0], sizes = [1, 64], strides = [1, 1]} : vector<9x128xf32> to vector<1x64xf32>
    %290 = vector.shape_cast %289 : vector<1x64xf32> to vector<1x1x1x64xf32>
    %291 = vector.broadcast %290 : vector<1x1x1x64xf32> to vector<2x4x4x64xf32>
    %292 = arith.mulf %288, %291 : vector<2x4x4x64xf32>
    %293 = arith.addf %287, %292 : vector<2x4x4x64xf32>
    %cst_222 = arith.constant 1.000000e+00 : f32
    %294 = vector.broadcast %cst_222 : f32 to vector<2x4x4x64xf32>
    %295 = arith.addf %293, %294 : vector<2x4x4x64xf32>
    %cst_223 = arith.constant 0.000000e+00 : f32
    %296 = vector.broadcast %cst_223 : f32 to vector<2x4x4x64xf32>
    %297 = arith.cmpf ogt, %295, %296 : vector<2x4x4x64xf32>
    %cst_224 = arith.constant 3.000000e-01 : f32
    %298 = vector.broadcast %cst_224 : f32 to vector<2x4x4x64xf32>
    %299 = arith.mulf %298, %295 : vector<2x4x4x64xf32>
    %300 = arith.select %297, %295, %299 : vector<2x4x4x64xi1>, vector<2x4x4x64xf32>
    %301 = vector.shape_cast %300 : vector<2x4x4x64xf32> to vector<32x64xf32>
    %302 = arith.truncf %301 : vector<32x64xf32> to vector<32x64xbf16>
    %c368 = arith.constant 368 : index
    %c0_225 = arith.constant 0 : index
    %303 = vector.load %arg1[%c368, %c0_225] : memref<712x128xbf16, #tpu.memory_space<vmem>>, vector<64x16xbf16>
    %cst_226 = arith.constant dense<0.000000e+00> : vector<32x16xf32>
    %304 = tpu.matmul %302, %303, %cst_226 {dimension_numbers = #tpu.dot_dimension_numbers<[1], [0], [0], [1], [0, 0, 1, 1], [], []>} : vector<32x64xbf16>, vector<64x16xbf16>, vector<32x16xf32> -> vector<32x16xf32>
    %cst_227 = arith.constant 1.000000e+00 : f32
    %305 = vector.broadcast %cst_227 : f32 to vector<32x16xf32>
    %306 = arith.addf %304, %305 : vector<32x16xf32>
    %cst_228 = arith.constant 0.000000e+00 : f32
    %307 = vector.broadcast %cst_228 : f32 to vector<32x16xf32>
    %308 = arith.cmpf ogt, %306, %307 : vector<32x16xf32>
    %cst_229 = arith.constant 3.000000e-01 : f32
    %309 = vector.broadcast %cst_229 : f32 to vector<32x16xf32>
    %310 = arith.mulf %309, %306 : vector<32x16xf32>
    %311 = arith.select %308, %306, %310 : vector<32x16xi1>, vector<32x16xf32>
    %312 = arith.addf %311, %226 : vector<32x16xf32>
    %313 = arith.truncf %312 : vector<32x16xf32> to vector<32x16xbf16>
    %c432 = arith.constant 432 : index
    %c0_230 = arith.constant 0 : index
    %314 = vector.load %arg1[%c432, %c0_230] : memref<712x128xbf16, #tpu.memory_space<vmem>>, vector<16x64xbf16>
    %cst_231 = arith.constant dense<0.000000e+00> : vector<32x64xf32>
    %315 = tpu.matmul %313, %314, %cst_231 {dimension_numbers = #tpu.dot_dimension_numbers<[1], [0], [0], [1], [0, 0, 1, 1], [], []>} : vector<32x16xbf16>, vector<16x64xbf16>, vector<32x64xf32> -> vector<32x64xf32>
    %cst_232 = arith.constant 1.000000e+00 : f32
    %316 = vector.broadcast %cst_232 : f32 to vector<32x64xf32>
    %317 = arith.addf %315, %316 : vector<32x64xf32>
    %cst_233 = arith.constant 0.000000e+00 : f32
    %318 = vector.broadcast %cst_233 : f32 to vector<32x64xf32>
    %319 = arith.cmpf ogt, %317, %318 : vector<32x64xf32>
    %cst_234 = arith.constant 3.000000e-01 : f32
    %320 = vector.broadcast %cst_234 : f32 to vector<32x64xf32>
    %321 = arith.mulf %320, %317 : vector<32x64xf32>
    %322 = arith.select %319, %317, %321 : vector<32x64xi1>, vector<32x64xf32>
    %323 = vector.shape_cast %322 : vector<32x64xf32> to vector<2x4x4x64xf32>
    %c0_235 = arith.constant 0 : index
    %c1_236 = arith.constant 1 : index
    %c1_237 = arith.constant 1 : index
    %c0_238 = arith.constant 0 : index
    %324 = vector.load %arg5[%c0_235, %c1_236, %c1_237, %c0_238] : memref<2x6x6x64xf32, #tpu.memory_space<vmem>>, vector<2x4x4x64xf32>
    tpu.vector_store %arg5[%c0_235, %c1_236, %c1_237, %c0_238], %323 {strides = array<i32>} : memref<2x6x6x64xf32, #tpu.memory_space<vmem>>, vector<2x4x4x64xf32>,
    %c3_239 = arith.constant 3 : index
    %c0_240 = arith.constant 0 : index
    %c0_241 = arith.constant 0 : index
    %325 = vector.load %arg2[%c3_239, %c0_240, %c0_241] : memref<6x9x128xf32, #tpu.memory_space<vmem>>, vector<1x9x128xf32>
    %326 = vector.shape_cast %325 : vector<1x9x128xf32> to vector<9x128xf32>
    %c0_242 = arith.constant 0 : index
    %c0_243 = arith.constant 0 : index
    %c0_244 = arith.constant 0 : index
    %c0_245 = arith.constant 0 : index
    %327 = vector.load %arg5[%c0_242, %c0_243, %c0_244, %c0_245] : memref<2x6x6x64xf32, #tpu.memory_space<vmem>>, vector<2x4x4x64xf32>
    %328 = vector.extract_strided_slice %326 {offsets = [0, 0], sizes = [1, 64], strides = [1, 1]} : vector<9x128xf32> to vector<1x64xf32>
    %329 = vector.shape_cast %328 : vector<1x64xf32> to vector<1x1x1x64xf32>
    %330 = vector.broadcast %329 : vector<1x1x1x64xf32> to vector<2x4x4x64xf32>
    %331 = arith.mulf %327, %330 : vector<2x4x4x64xf32>
    %c0_246 = arith.constant 0 : index
    %c0_247 = arith.constant 0 : index
    %c1_248 = arith.constant 1 : index
    %c0_249 = arith.constant 0 : index
    %332 = vector.load %arg5[%c0_246, %c0_247, %c1_248, %c0_249] : memref<2x6x6x64xf32, #tpu.memory_space<vmem>>, vector<2x4x4x64xf32>
    %333 = vector.extract_strided_slice %326 {offsets = [1, 0], sizes = [1, 64], strides = [1, 1]} : vector<9x128xf32> to vector<1x64xf32>
    %334 = vector.shape_cast %333 : vector<1x64xf32> to vector<1x1x1x64xf32>
    %335 = vector.broadcast %334 : vector<1x1x1x64xf32> to vector<2x4x4x64xf32>
    %336 = arith.mulf %332, %335 : vector<2x4x4x64xf32>
    %337 = arith.addf %331, %336 : vector<2x4x4x64xf32>
    %c0_250 = arith.constant 0 : index
    %c0_251 = arith.constant 0 : index
    %c2_252 = arith.constant 2 : index
    %c0_253 = arith.constant 0 : index
    %338 = vector.load %arg5[%c0_250, %c0_251, %c2_252, %c0_253] : memref<2x6x6x64xf32, #tpu.memory_space<vmem>>, vector<2x4x4x64xf32>
    %339 = vector.extract_strided_slice %326 {offsets = [2, 0], sizes = [1, 64], strides = [1, 1]} : vector<9x128xf32> to vector<1x64xf32>
    %340 = vector.shape_cast %339 : vector<1x64xf32> to vector<1x1x1x64xf32>
    %341 = vector.broadcast %340 : vector<1x1x1x64xf32> to vector<2x4x4x64xf32>
    %342 = arith.mulf %338, %341 : vector<2x4x4x64xf32>
    %343 = arith.addf %337, %342 : vector<2x4x4x64xf32>
    %c0_254 = arith.constant 0 : index
    %c1_255 = arith.constant 1 : index
    %c0_256 = arith.constant 0 : index
    %c0_257 = arith.constant 0 : index
    %344 = vector.load %arg5[%c0_254, %c1_255, %c0_256, %c0_257] : memref<2x6x6x64xf32, #tpu.memory_space<vmem>>, vector<2x4x4x64xf32>
    %345 = vector.extract_strided_slice %326 {offsets = [3, 0], sizes = [1, 64], strides = [1, 1]} : vector<9x128xf32> to vector<1x64xf32>
    %346 = vector.shape_cast %345 : vector<1x64xf32> to vector<1x1x1x64xf32>
    %347 = vector.broadcast %346 : vector<1x1x1x64xf32> to vector<2x4x4x64xf32>
    %348 = arith.mulf %344, %347 : vector<2x4x4x64xf32>
    %349 = arith.addf %343, %348 : vector<2x4x4x64xf32>
    %c0_258 = arith.constant 0 : index
    %c1_259 = arith.constant 1 : index
    %c1_260 = arith.constant 1 : index
    %c0_261 = arith.constant 0 : index
    %350 = vector.load %arg5[%c0_258, %c1_259, %c1_260, %c0_261] : memref<2x6x6x64xf32, #tpu.memory_space<vmem>>, vector<2x4x4x64xf32>
    %351 = vector.extract_strided_slice %326 {offsets = [4, 0], sizes = [1, 64], strides = [1, 1]} : vector<9x128xf32> to vector<1x64xf32>
    %352 = vector.shape_cast %351 : vector<1x64xf32> to vector<1x1x1x64xf32>
    %353 = vector.broadcast %352 : vector<1x1x1x64xf32> to vector<2x4x4x64xf32>
    %354 = arith.mulf %350, %353 : vector<2x4x4x64xf32>
    %355 = arith.addf %349, %354 : vector<2x4x4x64xf32>
    %c0_262 = arith.constant 0 : index
    %c1_263 = arith.constant 1 : index
    %c2_264 = arith.constant 2 : index
    %c0_265 = arith.constant 0 : index
    %356 = vector.load %arg5[%c0_262, %c1_263, %c2_264, %c0_265] : memref<2x6x6x64xf32, #tpu.memory_space<vmem>>, vector<2x4x4x64xf32>
    %357 = vector.extract_strided_slice %326 {offsets = [5, 0], sizes = [1, 64], strides = [1, 1]} : vector<9x128xf32> to vector<1x64xf32>
    %358 = vector.shape_cast %357 : vector<1x64xf32> to vector<1x1x1x64xf32>
    %359 = vector.broadcast %358 : vector<1x1x1x64xf32> to vector<2x4x4x64xf32>
    %360 = arith.mulf %356, %359 : vector<2x4x4x64xf32>
    %361 = arith.addf %355, %360 : vector<2x4x4x64xf32>
    %c0_266 = arith.constant 0 : index
    %c2_267 = arith.constant 2 : index
    %c0_268 = arith.constant 0 : index
    %c0_269 = arith.constant 0 : index
    %362 = vector.load %arg5[%c0_266, %c2_267, %c0_268, %c0_269] : memref<2x6x6x64xf32, #tpu.memory_space<vmem>>, vector<2x4x4x64xf32>
    %363 = vector.extract_strided_slice %326 {offsets = [6, 0], sizes = [1, 64], strides = [1, 1]} : vector<9x128xf32> to vector<1x64xf32>
    %364 = vector.shape_cast %363 : vector<1x64xf32> to vector<1x1x1x64xf32>
    %365 = vector.broadcast %364 : vector<1x1x1x64xf32> to vector<2x4x4x64xf32>
    %366 = arith.mulf %362, %365 : vector<2x4x4x64xf32>
    %367 = arith.addf %361, %366 : vector<2x4x4x64xf32>
    %c0_270 = arith.constant 0 : index
    %c2_271 = arith.constant 2 : index
    %c1_272 = arith.constant 1 : index
    %c0_273 = arith.constant 0 : index
    %368 = vector.load %arg5[%c0_270, %c2_271, %c1_272, %c0_273] : memref<2x6x6x64xf32, #tpu.memory_space<vmem>>, vector<2x4x4x64xf32>
    %369 = vector.extract_strided_slice %326 {offsets = [7, 0], sizes = [1, 64], strides = [1, 1]} : vector<9x128xf32> to vector<1x64xf32>
    %370 = vector.shape_cast %369 : vector<1x64xf32> to vector<1x1x1x64xf32>
    %371 = vector.broadcast %370 : vector<1x1x1x64xf32> to vector<2x4x4x64xf32>
    %372 = arith.mulf %368, %371 : vector<2x4x4x64xf32>
    %373 = arith.addf %367, %372 : vector<2x4x4x64xf32>
    %c0_274 = arith.constant 0 : index
    %c2_275 = arith.constant 2 : index
    %c2_276 = arith.constant 2 : index
    %c0_277 = arith.constant 0 : index
    %374 = vector.load %arg5[%c0_274, %c2_275, %c2_276, %c0_277] : memref<2x6x6x64xf32, #tpu.memory_space<vmem>>, vector<2x4x4x64xf32>
    %375 = vector.extract_strided_slice %326 {offsets = [8, 0], sizes = [1, 64], strides = [1, 1]} : vector<9x128xf32> to vector<1x64xf32>
    %376 = vector.shape_cast %375 : vector<1x64xf32> to vector<1x1x1x64xf32>
    %377 = vector.broadcast %376 : vector<1x1x1x64xf32> to vector<2x4x4x64xf32>
    %378 = arith.mulf %374, %377 : vector<2x4x4x64xf32>
    %379 = arith.addf %373, %378 : vector<2x4x4x64xf32>
    %cst_278 = arith.constant 1.000000e+00 : f32
    %380 = vector.broadcast %cst_278 : f32 to vector<2x4x4x64xf32>
    %381 = arith.addf %379, %380 : vector<2x4x4x64xf32>
    %cst_279 = arith.constant 0.000000e+00 : f32
    %382 = vector.broadcast %cst_279 : f32 to vector<2x4x4x64xf32>
    %383 = arith.cmpf ogt, %381, %382 : vector<2x4x4x64xf32>
    %cst_280 = arith.constant 3.000000e-01 : f32
    %384 = vector.broadcast %cst_280 : f32 to vector<2x4x4x64xf32>
    %385 = arith.mulf %384, %381 : vector<2x4x4x64xf32>
    %386 = arith.select %383, %381, %385 : vector<2x4x4x64xi1>, vector<2x4x4x64xf32>
    %387 = vector.shape_cast %386 : vector<2x4x4x64xf32> to vector<2x2x2x4x64xf32>
    %388 = vector.extract_strided_slice %387 {offsets = [0, 0, 0, 0, 0], sizes = [2, 2, 1, 4, 64], strides = [1, 1, 1, 1, 1]} : vector<2x2x2x4x64xf32> to vector<2x2x1x4x64xf32>
    %389 = vector.shape_cast %388 : vector<2x2x1x4x64xf32> to vector<2x2x4x64xf32>
    %390 = vector.extract_strided_slice %387 {offsets = [0, 0, 1, 0, 0], sizes = [2, 2, 1, 4, 64], strides = [1, 1, 1, 1, 1]} : vector<2x2x2x4x64xf32> to vector<2x2x1x4x64xf32>
    %391 = vector.shape_cast %390 : vector<2x2x1x4x64xf32> to vector<2x2x4x64xf32>
    %392 = arith.maximumf %389, %391 : vector<2x2x4x64xf32>
    %393 = vector.extract_strided_slice %392 {offsets = [0, 0, 0, 0], sizes = [2, 2, 1, 64], strides = [1, 1, 1, 1]} : vector<2x2x4x64xf32> to vector<2x2x1x64xf32>
    %394 = vector.extract_strided_slice %392 {offsets = [0, 0, 1, 0], sizes = [2, 2, 1, 64], strides = [1, 1, 1, 1]} : vector<2x2x4x64xf32> to vector<2x2x1x64xf32>
    %395 = arith.maximumf %393, %394 : vector<2x2x1x64xf32>
    %396 = vector.extract_strided_slice %392 {offsets = [0, 0, 2, 0], sizes = [2, 2, 1, 64], strides = [1, 1, 1, 1]} : vector<2x2x4x64xf32> to vector<2x2x1x64xf32>
    %397 = vector.extract_strided_slice %392 {offsets = [0, 0, 3, 0], sizes = [2, 2, 1, 64], strides = [1, 1, 1, 1]} : vector<2x2x4x64xf32> to vector<2x2x1x64xf32>
    %398 = arith.maximumf %396, %397 : vector<2x2x1x64xf32>
    %399 = tpu.concatenate %395, %398 in 2 : vector<2x2x1x64xf32>, vector<2x2x1x64xf32> -> vector<2x2x2x64xf32>
    %400 = vector.shape_cast %399 : vector<2x2x2x64xf32> to vector<8x64xf32>
    %401 = arith.truncf %400 : vector<8x64xf32> to vector<8x64xbf16>
    %c448 = arith.constant 448 : index
    %c0_281 = arith.constant 0 : index
    %402 = vector.load %arg1[%c448, %c0_281] : memref<712x128xbf16, #tpu.memory_space<vmem>>, vector<64x16xbf16>
    %cst_282 = arith.constant dense<0.000000e+00> : vector<8x16xf32>
    %403 = tpu.matmul %401, %402, %cst_282 {dimension_numbers = #tpu.dot_dimension_numbers<[1], [0], [0], [1], [0, 0, 1, 1], [], []>} : vector<8x64xbf16>, vector<64x16xbf16>, vector<8x16xf32> -> vector<8x16xf32>
    %cst_283 = arith.constant 1.000000e+00 : f32
    %404 = vector.broadcast %cst_283 : f32 to vector<8x16xf32>
    %405 = arith.addf %403, %404 : vector<8x16xf32>
    %cst_284 = arith.constant 0.000000e+00 : f32
    %406 = vector.broadcast %cst_284 : f32 to vector<8x16xf32>
    %407 = arith.cmpf ogt, %405, %406 : vector<8x16xf32>
    %cst_285 = arith.constant 3.000000e-01 : f32
    %408 = vector.broadcast %cst_285 : f32 to vector<8x16xf32>
    %409 = arith.mulf %408, %405 : vector<8x16xf32>
    %410 = arith.select %407, %405, %409 : vector<8x16xi1>, vector<8x16xf32>
    %411 = arith.truncf %410 : vector<8x16xf32> to vector<8x16xbf16>
    %c512 = arith.constant 512 : index
    %c0_286 = arith.constant 0 : index
    %412 = vector.load %arg1[%c512, %c0_286] : memref<712x128xbf16, #tpu.memory_space<vmem>>, vector<16x64xbf16>
    %cst_287 = arith.constant dense<0.000000e+00> : vector<8x64xf32>
    %413 = tpu.matmul %411, %412, %cst_287 {dimension_numbers = #tpu.dot_dimension_numbers<[1], [0], [0], [1], [0, 0, 1, 1], [], []>} : vector<8x16xbf16>, vector<16x64xbf16>, vector<8x64xf32> -> vector<8x64xf32>
    %cst_288 = arith.constant 1.000000e+00 : f32
    %414 = vector.broadcast %cst_288 : f32 to vector<8x64xf32>
    %415 = arith.addf %413, %414 : vector<8x64xf32>
    %cst_289 = arith.constant 0.000000e+00 : f32
    %416 = vector.broadcast %cst_289 : f32 to vector<8x64xf32>
    %417 = arith.cmpf ogt, %415, %416 : vector<8x64xf32>
    %cst_290 = arith.constant 3.000000e-01 : f32
    %418 = vector.broadcast %cst_290 : f32 to vector<8x64xf32>
    %419 = arith.mulf %418, %415 : vector<8x64xf32>
    %420 = arith.select %417, %415, %419 : vector<8x64xi1>, vector<8x64xf32>
    %421 = vector.shape_cast %420 : vector<8x64xf32> to vector<2x2x2x64xf32>
    %c0_291 = arith.constant 0 : index
    %c1_292 = arith.constant 1 : index
    %c1_293 = arith.constant 1 : index
    %c0_294 = arith.constant 0 : index
    %422 = vector.load %arg6[%c0_291, %c1_292, %c1_293, %c0_294] : memref<2x4x4x64xf32, #tpu.memory_space<vmem>>, vector<2x2x2x64xf32>
    tpu.vector_store %arg6[%c0_291, %c1_292, %c1_293, %c0_294], %421 {strides = array<i32>} : memref<2x4x4x64xf32, #tpu.memory_space<vmem>>, vector<2x2x2x64xf32>,
    %c4 = arith.constant 4 : index
    %c0_295 = arith.constant 0 : index
    %c0_296 = arith.constant 0 : index
    %423 = vector.load %arg2[%c4, %c0_295, %c0_296] : memref<6x9x128xf32, #tpu.memory_space<vmem>>, vector<1x9x128xf32>
    %424 = vector.shape_cast %423 : vector<1x9x128xf32> to vector<9x128xf32>
    %c0_297 = arith.constant 0 : index
    %c0_298 = arith.constant 0 : index
    %c0_299 = arith.constant 0 : index
    %c0_300 = arith.constant 0 : index
    %425 = vector.load %arg6[%c0_297, %c0_298, %c0_299, %c0_300] : memref<2x4x4x64xf32, #tpu.memory_space<vmem>>, vector<2x2x2x64xf32>
    %426 = vector.extract_strided_slice %424 {offsets = [0, 0], sizes = [1, 64], strides = [1, 1]} : vector<9x128xf32> to vector<1x64xf32>
    %427 = vector.shape_cast %426 : vector<1x64xf32> to vector<1x1x1x64xf32>
    %428 = vector.broadcast %427 : vector<1x1x1x64xf32> to vector<2x2x2x64xf32>
    %429 = arith.mulf %425, %428 : vector<2x2x2x64xf32>
    %c0_301 = arith.constant 0 : index
    %c0_302 = arith.constant 0 : index
    %c1_303 = arith.constant 1 : index
    %c0_304 = arith.constant 0 : index
    %430 = vector.load %arg6[%c0_301, %c0_302, %c1_303, %c0_304] : memref<2x4x4x64xf32, #tpu.memory_space<vmem>>, vector<2x2x2x64xf32>
    %431 = vector.extract_strided_slice %424 {offsets = [1, 0], sizes = [1, 64], strides = [1, 1]} : vector<9x128xf32> to vector<1x64xf32>
    %432 = vector.shape_cast %431 : vector<1x64xf32> to vector<1x1x1x64xf32>
    %433 = vector.broadcast %432 : vector<1x1x1x64xf32> to vector<2x2x2x64xf32>
    %434 = arith.mulf %430, %433 : vector<2x2x2x64xf32>
    %435 = arith.addf %429, %434 : vector<2x2x2x64xf32>
    %c0_305 = arith.constant 0 : index
    %c0_306 = arith.constant 0 : index
    %c2_307 = arith.constant 2 : index
    %c0_308 = arith.constant 0 : index
    %436 = vector.load %arg6[%c0_305, %c0_306, %c2_307, %c0_308] : memref<2x4x4x64xf32, #tpu.memory_space<vmem>>, vector<2x2x2x64xf32>
    %437 = vector.extract_strided_slice %424 {offsets = [2, 0], sizes = [1, 64], strides = [1, 1]} : vector<9x128xf32> to vector<1x64xf32>
    %438 = vector.shape_cast %437 : vector<1x64xf32> to vector<1x1x1x64xf32>
    %439 = vector.broadcast %438 : vector<1x1x1x64xf32> to vector<2x2x2x64xf32>
    %440 = arith.mulf %436, %439 : vector<2x2x2x64xf32>
    %441 = arith.addf %435, %440 : vector<2x2x2x64xf32>
    %c0_309 = arith.constant 0 : index
    %c1_310 = arith.constant 1 : index
    %c0_311 = arith.constant 0 : index
    %c0_312 = arith.constant 0 : index
    %442 = vector.load %arg6[%c0_309, %c1_310, %c0_311, %c0_312] : memref<2x4x4x64xf32, #tpu.memory_space<vmem>>, vector<2x2x2x64xf32>
    %443 = vector.extract_strided_slice %424 {offsets = [3, 0], sizes = [1, 64], strides = [1, 1]} : vector<9x128xf32> to vector<1x64xf32>
    %444 = vector.shape_cast %443 : vector<1x64xf32> to vector<1x1x1x64xf32>
    %445 = vector.broadcast %444 : vector<1x1x1x64xf32> to vector<2x2x2x64xf32>
    %446 = arith.mulf %442, %445 : vector<2x2x2x64xf32>
    %447 = arith.addf %441, %446 : vector<2x2x2x64xf32>
    %c0_313 = arith.constant 0 : index
    %c1_314 = arith.constant 1 : index
    %c1_315 = arith.constant 1 : index
    %c0_316 = arith.constant 0 : index
    %448 = vector.load %arg6[%c0_313, %c1_314, %c1_315, %c0_316] : memref<2x4x4x64xf32, #tpu.memory_space<vmem>>, vector<2x2x2x64xf32>
    %449 = vector.extract_strided_slice %424 {offsets = [4, 0], sizes = [1, 64], strides = [1, 1]} : vector<9x128xf32> to vector<1x64xf32>
    %450 = vector.shape_cast %449 : vector<1x64xf32> to vector<1x1x1x64xf32>
    %451 = vector.broadcast %450 : vector<1x1x1x64xf32> to vector<2x2x2x64xf32>
    %452 = arith.mulf %448, %451 : vector<2x2x2x64xf32>
    %453 = arith.addf %447, %452 : vector<2x2x2x64xf32>
    %c0_317 = arith.constant 0 : index
    %c1_318 = arith.constant 1 : index
    %c2_319 = arith.constant 2 : index
    %c0_320 = arith.constant 0 : index
    %454 = vector.load %arg6[%c0_317, %c1_318, %c2_319, %c0_320] : memref<2x4x4x64xf32, #tpu.memory_space<vmem>>, vector<2x2x2x64xf32>
    %455 = vector.extract_strided_slice %424 {offsets = [5, 0], sizes = [1, 64], strides = [1, 1]} : vector<9x128xf32> to vector<1x64xf32>
    %456 = vector.shape_cast %455 : vector<1x64xf32> to vector<1x1x1x64xf32>
    %457 = vector.broadcast %456 : vector<1x1x1x64xf32> to vector<2x2x2x64xf32>
    %458 = arith.mulf %454, %457 : vector<2x2x2x64xf32>
    %459 = arith.addf %453, %458 : vector<2x2x2x64xf32>
    %c0_321 = arith.constant 0 : index
    %c2_322 = arith.constant 2 : index
    %c0_323 = arith.constant 0 : index
    %c0_324 = arith.constant 0 : index
    %460 = vector.load %arg6[%c0_321, %c2_322, %c0_323, %c0_324] : memref<2x4x4x64xf32, #tpu.memory_space<vmem>>, vector<2x2x2x64xf32>
    %461 = vector.extract_strided_slice %424 {offsets = [6, 0], sizes = [1, 64], strides = [1, 1]} : vector<9x128xf32> to vector<1x64xf32>
    %462 = vector.shape_cast %461 : vector<1x64xf32> to vector<1x1x1x64xf32>
    %463 = vector.broadcast %462 : vector<1x1x1x64xf32> to vector<2x2x2x64xf32>
    %464 = arith.mulf %460, %463 : vector<2x2x2x64xf32>
    %465 = arith.addf %459, %464 : vector<2x2x2x64xf32>
    %c0_325 = arith.constant 0 : index
    %c2_326 = arith.constant 2 : index
    %c1_327 = arith.constant 1 : index
    %c0_328 = arith.constant 0 : index
    %466 = vector.load %arg6[%c0_325, %c2_326, %c1_327, %c0_328] : memref<2x4x4x64xf32, #tpu.memory_space<vmem>>, vector<2x2x2x64xf32>
    %467 = vector.extract_strided_slice %424 {offsets = [7, 0], sizes = [1, 64], strides = [1, 1]} : vector<9x128xf32> to vector<1x64xf32>
    %468 = vector.shape_cast %467 : vector<1x64xf32> to vector<1x1x1x64xf32>
    %469 = vector.broadcast %468 : vector<1x1x1x64xf32> to vector<2x2x2x64xf32>
    %470 = arith.mulf %466, %469 : vector<2x2x2x64xf32>
    %471 = arith.addf %465, %470 : vector<2x2x2x64xf32>
    %c0_329 = arith.constant 0 : index
    %c2_330 = arith.constant 2 : index
    %c2_331 = arith.constant 2 : index
    %c0_332 = arith.constant 0 : index
    %472 = vector.load %arg6[%c0_329, %c2_330, %c2_331, %c0_332] : memref<2x4x4x64xf32, #tpu.memory_space<vmem>>, vector<2x2x2x64xf32>
    %473 = vector.extract_strided_slice %424 {offsets = [8, 0], sizes = [1, 64], strides = [1, 1]} : vector<9x128xf32> to vector<1x64xf32>
    %474 = vector.shape_cast %473 : vector<1x64xf32> to vector<1x1x1x64xf32>
    %475 = vector.broadcast %474 : vector<1x1x1x64xf32> to vector<2x2x2x64xf32>
    %476 = arith.mulf %472, %475 : vector<2x2x2x64xf32>
    %477 = arith.addf %471, %476 : vector<2x2x2x64xf32>
    %cst_333 = arith.constant 1.000000e+00 : f32
    %478 = vector.broadcast %cst_333 : f32 to vector<2x2x2x64xf32>
    %479 = arith.addf %477, %478 : vector<2x2x2x64xf32>
    %cst_334 = arith.constant 0.000000e+00 : f32
    %480 = vector.broadcast %cst_334 : f32 to vector<2x2x2x64xf32>
    %481 = arith.cmpf ogt, %479, %480 : vector<2x2x2x64xf32>
    %cst_335 = arith.constant 3.000000e-01 : f32
    %482 = vector.broadcast %cst_335 : f32 to vector<2x2x2x64xf32>
    %483 = arith.mulf %482, %479 : vector<2x2x2x64xf32>
    %484 = arith.select %481, %479, %483 : vector<2x2x2x64xi1>, vector<2x2x2x64xf32>
    %485 = vector.shape_cast %484 : vector<2x2x2x64xf32> to vector<8x64xf32>
    %486 = arith.truncf %485 : vector<8x64xf32> to vector<8x64xbf16>
    %c528 = arith.constant 528 : index
    %c0_336 = arith.constant 0 : index
    %487 = vector.load %arg1[%c528, %c0_336] : memref<712x128xbf16, #tpu.memory_space<vmem>>, vector<64x16xbf16>
    %cst_337 = arith.constant dense<0.000000e+00> : vector<8x16xf32>
    %488 = tpu.matmul %486, %487, %cst_337 {dimension_numbers = #tpu.dot_dimension_numbers<[1], [0], [0], [1], [0, 0, 1, 1], [], []>} : vector<8x64xbf16>, vector<64x16xbf16>, vector<8x16xf32> -> vector<8x16xf32>
    %cst_338 = arith.constant 1.000000e+00 : f32
    %489 = vector.broadcast %cst_338 : f32 to vector<8x16xf32>
    %490 = arith.addf %488, %489 : vector<8x16xf32>
    %cst_339 = arith.constant 0.000000e+00 : f32
    %491 = vector.broadcast %cst_339 : f32 to vector<8x16xf32>
    %492 = arith.cmpf ogt, %490, %491 : vector<8x16xf32>
    %cst_340 = arith.constant 3.000000e-01 : f32
    %493 = vector.broadcast %cst_340 : f32 to vector<8x16xf32>
    %494 = arith.mulf %493, %490 : vector<8x16xf32>
    %495 = arith.select %492, %490, %494 : vector<8x16xi1>, vector<8x16xf32>
    %496 = arith.addf %495, %410 : vector<8x16xf32>
    %497 = arith.truncf %496 : vector<8x16xf32> to vector<8x16xbf16>
    %c592 = arith.constant 592 : index
    %c0_341 = arith.constant 0 : index
    %498 = vector.load %arg1[%c592, %c0_341] : memref<712x128xbf16, #tpu.memory_space<vmem>>, vector<16x64xbf16>
    %cst_342 = arith.constant dense<0.000000e+00> : vector<8x64xf32>
    %499 = tpu.matmul %497, %498, %cst_342 {dimension_numbers = #tpu.dot_dimension_numbers<[1], [0], [0], [1], [0, 0, 1, 1], [], []>} : vector<8x16xbf16>, vector<16x64xbf16>, vector<8x64xf32> -> vector<8x64xf32>
    %cst_343 = arith.constant 1.000000e+00 : f32
    %500 = vector.broadcast %cst_343 : f32 to vector<8x64xf32>
    %501 = arith.addf %499, %500 : vector<8x64xf32>
    %cst_344 = arith.constant 0.000000e+00 : f32
    %502 = vector.broadcast %cst_344 : f32 to vector<8x64xf32>
    %503 = arith.cmpf ogt, %501, %502 : vector<8x64xf32>
    %cst_345 = arith.constant 3.000000e-01 : f32
    %504 = vector.broadcast %cst_345 : f32 to vector<8x64xf32>
    %505 = arith.mulf %504, %501 : vector<8x64xf32>
    %506 = arith.select %503, %501, %505 : vector<8x64xi1>, vector<8x64xf32>
    %507 = vector.shape_cast %506 : vector<8x64xf32> to vector<2x2x2x64xf32>
    %c0_346 = arith.constant 0 : index
    %c1_347 = arith.constant 1 : index
    %c1_348 = arith.constant 1 : index
    %c0_349 = arith.constant 0 : index
    %508 = vector.load %arg6[%c0_346, %c1_347, %c1_348, %c0_349] : memref<2x4x4x64xf32, #tpu.memory_space<vmem>>, vector<2x2x2x64xf32>
    tpu.vector_store %arg6[%c0_346, %c1_347, %c1_348, %c0_349], %507 {strides = array<i32>} : memref<2x4x4x64xf32, #tpu.memory_space<vmem>>, vector<2x2x2x64xf32>,
    %c5 = arith.constant 5 : index
    %c0_350 = arith.constant 0 : index
    %c0_351 = arith.constant 0 : index
    %509 = vector.load %arg2[%c5, %c0_350, %c0_351] : memref<6x9x128xf32, #tpu.memory_space<vmem>>, vector<1x9x128xf32>
    %510 = vector.shape_cast %509 : vector<1x9x128xf32> to vector<9x128xf32>
    %c0_352 = arith.constant 0 : index
    %c0_353 = arith.constant 0 : index
    %c0_354 = arith.constant 0 : index
    %c0_355 = arith.constant 0 : index
    %511 = vector.load %arg6[%c0_352, %c0_353, %c0_354, %c0_355] : memref<2x4x4x64xf32, #tpu.memory_space<vmem>>, vector<2x2x2x64xf32>
    %512 = vector.extract_strided_slice %510 {offsets = [0, 0], sizes = [1, 64], strides = [1, 1]} : vector<9x128xf32> to vector<1x64xf32>
    %513 = vector.shape_cast %512 : vector<1x64xf32> to vector<1x1x1x64xf32>
    %514 = vector.broadcast %513 : vector<1x1x1x64xf32> to vector<2x2x2x64xf32>
    %515 = arith.mulf %511, %514 : vector<2x2x2x64xf32>
    %c0_356 = arith.constant 0 : index
    %c0_357 = arith.constant 0 : index
    %c1_358 = arith.constant 1 : index
    %c0_359 = arith.constant 0 : index
    %516 = vector.load %arg6[%c0_356, %c0_357, %c1_358, %c0_359] : memref<2x4x4x64xf32, #tpu.memory_space<vmem>>, vector<2x2x2x64xf32>
    %517 = vector.extract_strided_slice %510 {offsets = [1, 0], sizes = [1, 64], strides = [1, 1]} : vector<9x128xf32> to vector<1x64xf32>
    %518 = vector.shape_cast %517 : vector<1x64xf32> to vector<1x1x1x64xf32>
    %519 = vector.broadcast %518 : vector<1x1x1x64xf32> to vector<2x2x2x64xf32>
    %520 = arith.mulf %516, %519 : vector<2x2x2x64xf32>
    %521 = arith.addf %515, %520 : vector<2x2x2x64xf32>
    %c0_360 = arith.constant 0 : index
    %c0_361 = arith.constant 0 : index
    %c2_362 = arith.constant 2 : index
    %c0_363 = arith.constant 0 : index
    %522 = vector.load %arg6[%c0_360, %c0_361, %c2_362, %c0_363] : memref<2x4x4x64xf32, #tpu.memory_space<vmem>>, vector<2x2x2x64xf32>
    %523 = vector.extract_strided_slice %510 {offsets = [2, 0], sizes = [1, 64], strides = [1, 1]} : vector<9x128xf32> to vector<1x64xf32>
    %524 = vector.shape_cast %523 : vector<1x64xf32> to vector<1x1x1x64xf32>
    %525 = vector.broadcast %524 : vector<1x1x1x64xf32> to vector<2x2x2x64xf32>
    %526 = arith.mulf %522, %525 : vector<2x2x2x64xf32>
    %527 = arith.addf %521, %526 : vector<2x2x2x64xf32>
    %c0_364 = arith.constant 0 : index
    %c1_365 = arith.constant 1 : index
    %c0_366 = arith.constant 0 : index
    %c0_367 = arith.constant 0 : index
    %528 = vector.load %arg6[%c0_364, %c1_365, %c0_366, %c0_367] : memref<2x4x4x64xf32, #tpu.memory_space<vmem>>, vector<2x2x2x64xf32>
    %529 = vector.extract_strided_slice %510 {offsets = [3, 0], sizes = [1, 64], strides = [1, 1]} : vector<9x128xf32> to vector<1x64xf32>
    %530 = vector.shape_cast %529 : vector<1x64xf32> to vector<1x1x1x64xf32>
    %531 = vector.broadcast %530 : vector<1x1x1x64xf32> to vector<2x2x2x64xf32>
    %532 = arith.mulf %528, %531 : vector<2x2x2x64xf32>
    %533 = arith.addf %527, %532 : vector<2x2x2x64xf32>
    %c0_368 = arith.constant 0 : index
    %c1_369 = arith.constant 1 : index
    %c1_370 = arith.constant 1 : index
    %c0_371 = arith.constant 0 : index
    %534 = vector.load %arg6[%c0_368, %c1_369, %c1_370, %c0_371] : memref<2x4x4x64xf32, #tpu.memory_space<vmem>>, vector<2x2x2x64xf32>
    %535 = vector.extract_strided_slice %510 {offsets = [4, 0], sizes = [1, 64], strides = [1, 1]} : vector<9x128xf32> to vector<1x64xf32>
    %536 = vector.shape_cast %535 : vector<1x64xf32> to vector<1x1x1x64xf32>
    %537 = vector.broadcast %536 : vector<1x1x1x64xf32> to vector<2x2x2x64xf32>
    %538 = arith.mulf %534, %537 : vector<2x2x2x64xf32>
    %539 = arith.addf %533, %538 : vector<2x2x2x64xf32>
    %c0_372 = arith.constant 0 : index
    %c1_373 = arith.constant 1 : index
    %c2_374 = arith.constant 2 : index
    %c0_375 = arith.constant 0 : index
    %540 = vector.load %arg6[%c0_372, %c1_373, %c2_374, %c0_375] : memref<2x4x4x64xf32, #tpu.memory_space<vmem>>, vector<2x2x2x64xf32>
    %541 = vector.extract_strided_slice %510 {offsets = [5, 0], sizes = [1, 64], strides = [1, 1]} : vector<9x128xf32> to vector<1x64xf32>
    %542 = vector.shape_cast %541 : vector<1x64xf32> to vector<1x1x1x64xf32>
    %543 = vector.broadcast %542 : vector<1x1x1x64xf32> to vector<2x2x2x64xf32>
    %544 = arith.mulf %540, %543 : vector<2x2x2x64xf32>
    %545 = arith.addf %539, %544 : vector<2x2x2x64xf32>
    %c0_376 = arith.constant 0 : index
    %c2_377 = arith.constant 2 : index
    %c0_378 = arith.constant 0 : index
    %c0_379 = arith.constant 0 : index
    %546 = vector.load %arg6[%c0_376, %c2_377, %c0_378, %c0_379] : memref<2x4x4x64xf32, #tpu.memory_space<vmem>>, vector<2x2x2x64xf32>
    %547 = vector.extract_strided_slice %510 {offsets = [6, 0], sizes = [1, 64], strides = [1, 1]} : vector<9x128xf32> to vector<1x64xf32>
    %548 = vector.shape_cast %547 : vector<1x64xf32> to vector<1x1x1x64xf32>
    %549 = vector.broadcast %548 : vector<1x1x1x64xf32> to vector<2x2x2x64xf32>
    %550 = arith.mulf %546, %549 : vector<2x2x2x64xf32>
    %551 = arith.addf %545, %550 : vector<2x2x2x64xf32>
    %c0_380 = arith.constant 0 : index
    %c2_381 = arith.constant 2 : index
    %c1_382 = arith.constant 1 : index
    %c0_383 = arith.constant 0 : index
    %552 = vector.load %arg6[%c0_380, %c2_381, %c1_382, %c0_383] : memref<2x4x4x64xf32, #tpu.memory_space<vmem>>, vector<2x2x2x64xf32>
    %553 = vector.extract_strided_slice %510 {offsets = [7, 0], sizes = [1, 64], strides = [1, 1]} : vector<9x128xf32> to vector<1x64xf32>
    %554 = vector.shape_cast %553 : vector<1x64xf32> to vector<1x1x1x64xf32>
    %555 = vector.broadcast %554 : vector<1x1x1x64xf32> to vector<2x2x2x64xf32>
    %556 = arith.mulf %552, %555 : vector<2x2x2x64xf32>
    %557 = arith.addf %551, %556 : vector<2x2x2x64xf32>
    %c0_384 = arith.constant 0 : index
    %c2_385 = arith.constant 2 : index
    %c2_386 = arith.constant 2 : index
    %c0_387 = arith.constant 0 : index
    %558 = vector.load %arg6[%c0_384, %c2_385, %c2_386, %c0_387] : memref<2x4x4x64xf32, #tpu.memory_space<vmem>>, vector<2x2x2x64xf32>
    %559 = vector.extract_strided_slice %510 {offsets = [8, 0], sizes = [1, 64], strides = [1, 1]} : vector<9x128xf32> to vector<1x64xf32>
    %560 = vector.shape_cast %559 : vector<1x64xf32> to vector<1x1x1x64xf32>
    %561 = vector.broadcast %560 : vector<1x1x1x64xf32> to vector<2x2x2x64xf32>
    %562 = arith.mulf %558, %561 : vector<2x2x2x64xf32>
    %563 = arith.addf %557, %562 : vector<2x2x2x64xf32>
    %cst_388 = arith.constant 1.000000e+00 : f32
    %564 = vector.broadcast %cst_388 : f32 to vector<2x2x2x64xf32>
    %565 = arith.addf %563, %564 : vector<2x2x2x64xf32>
    %cst_389 = arith.constant 0.000000e+00 : f32
    %566 = vector.broadcast %cst_389 : f32 to vector<2x2x2x64xf32>
    %567 = arith.cmpf ogt, %565, %566 : vector<2x2x2x64xf32>
    %cst_390 = arith.constant 3.000000e-01 : f32
    %568 = vector.broadcast %cst_390 : f32 to vector<2x2x2x64xf32>
    %569 = arith.mulf %568, %565 : vector<2x2x2x64xf32>
    %570 = arith.select %567, %565, %569 : vector<2x2x2x64xi1>, vector<2x2x2x64xf32>
    %571 = vector.extract_strided_slice %570 {offsets = [0, 0, 0, 0], sizes = [2, 1, 1, 64], strides = [1, 1, 1, 1]} : vector<2x2x2x64xf32> to vector<2x1x1x64xf32>
    %572 = vector.shape_cast %571 : vector<2x1x1x64xf32> to vector<2x64xf32>
    %573 = vector.extract_strided_slice %570 {offsets = [0, 0, 1, 0], sizes = [2, 1, 1, 64], strides = [1, 1, 1, 1]} : vector<2x2x2x64xf32> to vector<2x1x1x64xf32>
    %574 = vector.shape_cast %573 : vector<2x1x1x64xf32> to vector<2x64xf32>
    %575 = arith.addf %572, %574 : vector<2x64xf32>
    %576 = vector.extract_strided_slice %570 {offsets = [0, 1, 0, 0], sizes = [2, 1, 1, 64], strides = [1, 1, 1, 1]} : vector<2x2x2x64xf32> to vector<2x1x1x64xf32>
    %577 = vector.shape_cast %576 : vector<2x1x1x64xf32> to vector<2x64xf32>
    %578 = arith.addf %575, %577 : vector<2x64xf32>
    %579 = vector.extract_strided_slice %570 {offsets = [0, 1, 1, 0], sizes = [2, 1, 1, 64], strides = [1, 1, 1, 1]} : vector<2x2x2x64xf32> to vector<2x1x1x64xf32>
    %580 = vector.shape_cast %579 : vector<2x1x1x64xf32> to vector<2x64xf32>
    %581 = arith.addf %578, %580 : vector<2x64xf32>
    %cst_391 = arith.constant 2.500000e-01 : f32
    %582 = vector.broadcast %cst_391 : f32 to vector<2x64xf32>
    %583 = arith.mulf %581, %582 : vector<2x64xf32>
    %584 = arith.truncf %583 : vector<2x64xf32> to vector<2x64xbf16>
    %c608 = arith.constant 608 : index
    %c0_392 = arith.constant 0 : index
    %585 = vector.load %arg1[%c608, %c0_392] : memref<712x128xbf16, #tpu.memory_space<vmem>>, vector<64x24xbf16>
    %cst_393 = arith.constant dense<0.000000e+00> : vector<2x24xf32>
    %586 = tpu.matmul %584, %585, %cst_393 {dimension_numbers = #tpu.dot_dimension_numbers<[1], [0], [0], [1], [0, 0, 1, 1], [], []>} : vector<2x64xbf16>, vector<64x24xbf16>, vector<2x24xf32> -> vector<2x24xf32>
    %cst_394 = arith.constant 1.000000e+00 : f32
    %587 = vector.broadcast %cst_394 : f32 to vector<2x24xf32>
    %588 = arith.addf %586, %587 : vector<2x24xf32>
    %cst_395 = arith.constant 0.000000e+00 : f32
    %589 = vector.broadcast %cst_395 : f32 to vector<2x24xf32>
    %590 = arith.cmpf ogt, %588, %589 : vector<2x24xf32>
    %cst_396 = arith.constant 3.000000e-01 : f32
    %591 = vector.broadcast %cst_396 : f32 to vector<2x24xf32>
    %592 = arith.mulf %591, %588 : vector<2x24xf32>
    %593 = arith.select %590, %588, %592 : vector<2x24xi1>, vector<2x24xf32>
    %594 = arith.truncf %593 : vector<2x24xf32> to vector<2x24xbf16>
    %c672 = arith.constant 672 : index
    %c0_397 = arith.constant 0 : index
    %595 = vector.load %arg1[%c672, %c0_397] : memref<712x128xbf16, #tpu.memory_space<vmem>>, vector<24x16xbf16>
    %cst_398 = arith.constant dense<0.000000e+00> : vector<2x16xf32>
    %596 = tpu.matmul %594, %595, %cst_398 {dimension_numbers = #tpu.dot_dimension_numbers<[1], [0], [0], [1], [0, 0, 1, 1], [], []>} : vector<2x24xbf16>, vector<24x16xbf16>, vector<2x16xf32> -> vector<2x16xf32>
    %cst_399 = arith.constant 1.000000e+00 : f32
    %597 = vector.broadcast %cst_399 : f32 to vector<2x16xf32>
    %598 = arith.addf %596, %597 : vector<2x16xf32>
    %cst_400 = arith.constant 0.000000e+00 : f32
    %599 = vector.broadcast %cst_400 : f32 to vector<2x16xf32>
    %600 = arith.cmpf ogt, %598, %599 : vector<2x16xf32>
    %cst_401 = arith.constant 3.000000e-01 : f32
    %601 = vector.broadcast %cst_401 : f32 to vector<2x16xf32>
    %602 = arith.mulf %601, %598 : vector<2x16xf32>
    %603 = arith.select %600, %598, %602 : vector<2x16xi1>, vector<2x16xf32>
    %604 = arith.truncf %603 : vector<2x16xf32> to vector<2x16xbf16>
    %c696 = arith.constant 696 : index
    %c0_402 = arith.constant 0 : index
    %605 = vector.load %arg1[%c696, %c0_402] : memref<712x128xbf16, #tpu.memory_space<vmem>>, vector<16x10xbf16>
    %cst_403 = arith.constant dense<0.000000e+00> : vector<2x10xf32>
    %606 = tpu.matmul %604, %605, %cst_403 {dimension_numbers = #tpu.dot_dimension_numbers<[1], [0], [0], [1], [0, 0, 1, 1], [], []>} : vector<2x16xbf16>, vector<16x10xbf16>, vector<2x10xf32> -> vector<2x10xf32>
    %c0_404 = arith.constant 0 : index
    %c0_405 = arith.constant 0 : index
    %607 = vector.load %arg3[%c0_404, %c0_405] : memref<2x10xf32, #tpu.memory_space<vmem>>, vector<2x10xf32>
    tpu.vector_store %arg3[%c0_404, %c0_405], %606 {strides = array<i32>} : memref<2x10xf32, #tpu.memory_space<vmem>>, vector<2x10xf32>,
    return
  }
}

</mosaic_0001>

<llo_original>
// kernel: net_forward.1
$region0: #{net_forward.1}
  #allocation0 [shape = 'u32[]', space=smem, size = 0x4, offset = 0x4, fixed_abs, tag = 'smem constant byte address 0x4 - core index']
  #allocation1 [shape = 'u32[144,128]{1,0:T(1,128)}', space=vmem, size = 0x12000, scoped, tag = 'internal scratch']
  #allocation2 [shape = 'f32[2,10,10,128]{3,2,1,0:T(8,128)}', space=vmem, size = 0x28000, scoped, tag = 'scratch operand']
  #allocation3 [shape = 'f32[2,6,6,64]{3,2,1,0:T(8,128)}', space=vmem, size = 0xc000, scoped, tag = 'scratch operand']
  #allocation4 [shape = 'f32[2,4,4,64]{3,2,1,0:T(4,128)}', space=vmem, size = 0x4000, scoped, tag = 'scratch operand']
  %s0 = inlined_call_operand.vmem [shape: f32[2,9,2,9,6], index: 0, kind: input, shape index: {}]
  %s1 = inlined_call_operand.vmem [shape: bf16[712,128], index: 1, kind: input, shape index: {}]
  %s2 = inlined_call_operand.vmem [shape: f32[6,9,128], index: 2, kind: input, shape index: {}]
  %s3 = inlined_call_operand.hbm [shape: f32[2,10], index: 3, kind: output, shape index: {}]
  %s4 = sld [smem:[#allocation0]]
  $region22: #{net_forward.1} parent=0
    _
  %s6 = ssub.s32 1, %s4
  %s7 = scalar_select 0, %s6, %s4
  $region1: #{net_forward.1} parent=0
    #allocation5 [shape = 'u8[1024]{0}', space=vmem, size = 0x400, scoped, tag = 'output window, operand 0, single buffered']
    #allocation6 [shape = 's32[1]{0}', space=sflag, size = 0x4, scoped, tag = 'scoped memory for net_forward.1']
    %8 = vsyncpa [#allocation6], 0
    // Predicated region
    $region2: #{net_forward.1} parent=1 // pred_check
      _
    $region3: #{net_forward.1} parent=1 // pred_check_branch
      %10 = sbr.rel (0) target = $region5
    $region4: #{net_forward.1} parent=1 // pred_region
      _
    $region5: #{net_forward.1} parent=1 // pred_fallthru
      _
    // Predicated region
    $region6: #{net_forward.1} parent=1 // pred_check
      _
    $region7: #{net_forward.1} parent=1 // pred_check_branch
      %12 = sbr.rel (0) target = $region9
    $region8: #{net_forward.1} parent=1 // pred_region
      _
    $region9: #{net_forward.1} parent=1 // pred_fallthru
      _
    // Predicated region
    $region10: #{net_forward.1} parent=1 // pred_check
      _
    $region11: #{net_forward.1} parent=1 // pred_check_branch
      %14 = sbr.rel (0) target = $region13
    $region12: #{net_forward.1} parent=1 // pred_region
      _
    $region13: #{net_forward.1} parent=1 // pred_fallthru
      _
    %16 = vst [vmem:[#allocation2] sm:$0xff] 0.0
    %17 = vst [vmem:[#allocation2 + $0x8] sm:$0x3] 0.0
    %18 = vst [vmem:[#allocation2 + $0x10] sm:$0xff] 0.0
    %19 = vst [vmem:[#allocation2 + $0x18] sm:$0x3] 0.0
    %20 = vst [vmem:[#allocation2 + $0x20] sm:$0xff] 0.0
    %21 = vst [vmem:[#allocation2 + $0x28] sm:$0x3] 0.0
    %22 = vst [vmem:[#allocation2 + $0x30] sm:$0xff] 0.0
    %23 = vst [vmem:[#allocation2 + $0x38] sm:$0x3] 0.0
    %24 = vst [vmem:[#allocation2 + $0x40] sm:$0xff] 0.0
    %25 = vst [vmem:[#allocation2 + $0x48] sm:$0x3] 0.0
    %26 = vst [vmem:[#allocation2 + $0x50] sm:$0xff] 0.0
    %27 = vst [vmem:[#allocation2 + $0x58] sm:$0x3] 0.0
    %28 = vst [vmem:[#allocation2 + $0x60] sm:$0xff] 0.0
    %29 = vst [vmem:[#allocation2 + $0x68] sm:$0x3] 0.0
    %30 = vst [vmem:[#allocation2 + $0x70] sm:$0xff] 0.0
    %31 = vst [vmem:[#allocation2 + $0x78] sm:$0x3] 0.0
    %32 = vst [vmem:[#allocation2 + $0x80] sm:$0xff] 0.0
    %33 = vst [vmem:[#allocation2 + $0x88] sm:$0x3] 0.0
    %34 = vst [vmem:[#allocation2 + $0x90] sm:$0xff] 0.0
    %35 = vst [vmem:[#allocation2 + $0x98] sm:$0x3] 0.0
    %36 = vst [vmem:[#allocation2 + $0xa0] sm:$0xff] 0.0
    %37 = vst [vmem:[#allocation2 + $0xa8] sm:$0x3] 0.0
    %38 = vst [vmem:[#allocation2 + $0xb0] sm:$0xff] 0.0
    %39 = vst [vmem:[#allocation2 + $0xb8] sm:$0x3] 0.0
    %40 = vst [vmem:[#allocation2 + $0xc0] sm:$0xff] 0.0
    %41 = vst [vmem:[#allocation2 + $0xc8] sm:$0x3] 0.0
    %42 = vst [vmem:[#allocation2 + $0xd0] sm:$0xff] 0.0
    %43 = vst [vmem:[#allocation2 + $0xd8] sm:$0x3] 0.0
    %44 = vst [vmem:[#allocation2 + $0xe0] sm:$0xff] 0.0
    %45 = vst [vmem:[#allocation2 + $0xe8] sm:$0x3] 0.0
    %46 = vst [vmem:[#allocation2 + $0xf0] sm:$0xff] 0.0
    %47 = vst [vmem:[#allocation2 + $0xf8] sm:$0x3] 0.0
    %48 = vst [vmem:[#allocation2 + $0x100] sm:$0xff] 0.0
    %49 = vst [vmem:[#allocation2 + $0x108] sm:$0x3] 0.0
    %50 = vst [vmem:[#allocation2 + $0x110] sm:$0xff] 0.0
    %51 = vst [vmem:[#allocation2 + $0x118] sm:$0x3] 0.0
    %52 = vst [vmem:[#allocation2 + $0x120] sm:$0xff] 0.0
    %53 = vst [vmem:[#allocation2 + $0x128] sm:$0x3] 0.0
    %54 = vst [vmem:[#allocation2 + $0x130] sm:$0xff] 0.0
    %55 = vst [vmem:[#allocation2 + $0x138] sm:$0x3] 0.0
    %vm56 = vcmask 521216
    %57 = vst.msk [vmem:[#allocation3] sm:$0x3f] %vm56, 0.0
    %58 = vst.msk [vmem:[#allocation3 + $0x8] sm:$0x3f] %vm56, 0.0
    %59 = vst.msk [vmem:[#allocation3 + $0x10] sm:$0x3f] %vm56, 0.0
    %60 = vst.msk [vmem:[#allocation3 + $0x18] sm:$0x3f] %vm56, 0.0
    %61 = vst.msk [vmem:[#allocation3 + $0x20] sm:$0x3f] %vm56, 0.0
    %62 = vst.msk [vmem:[#allocation3 + $0x28] sm:$0x3f] %vm56, 0.0
    %63 = vst.msk [vmem:[#allocation3 + $0x30] sm:$0x3f] %vm56, 0.0
    %64 = vst.msk [vmem:[#allocation3 + $0x38] sm:$0x3f] %vm56, 0.0
    %65 = vst.msk [vmem:[#allocation3 + $0x40] sm:$0x3f] %vm56, 0.0
    %66 = vst.msk [vmem:[#allocation3 + $0x48] sm:$0x3f] %vm56, 0.0
    %67 = vst.msk [vmem:[#allocation3 + $0x50] sm:$0x3f] %vm56, 0.0
    %68 = vst.msk [vmem:[#allocation3 + $0x58] sm:$0x3f] %vm56, 0.0
    %vm69 = vcmask 519168
    %70 = vst.msk [vmem:[#allocation4] sm:$0xf] %vm69, 0.0
    %71 = vst.msk [vmem:[#allocation4 + $0x4] sm:$0xf] %vm69, 0.0
    %72 = vst.msk [vmem:[#allocation4 + $0x8] sm:$0xf] %vm69, 0.0
    %73 = vst.msk [vmem:[#allocation4 + $0xc] sm:$0xf] %vm69, 0.0
    %74 = vst.msk [vmem:[#allocation4 + $0x10] sm:$0xf] %vm69, 0.0
    %75 = vst.msk [vmem:[#allocation4 + $0x14] sm:$0xf] %vm69, 0.0
    %76 = vst.msk [vmem:[#allocation4 + $0x18] sm:$0xf] %vm69, 0.0
    %77 = vst.msk [vmem:[#allocation4 + $0x1c] sm:$0xf] %vm69, 0.0
    %v78 = vld [vmem:[%s0] sm:$0xff]
    %v79 = vld [vmem:[%s0 + $0x20] sm:$0xff]
    %v80 = vld [vmem:[%s0 + $0x40] sm:$0xff]
    %v81 = vld [vmem:[%s0 + $0x60] sm:$0xff]
    %v82 = vld [vmem:[%s0 + $0x80] sm:$0xff]
    %v83 = vld [vmem:[%s0 + $0xa0] sm:$0xff]
    %v84 = vld [vmem:[%s0 + $0xc0] sm:$0xff]
    %v85 = vld [vmem:[%s0 + $0xe0] sm:$0xff]
    %v86 = vld [vmem:[%s0 + $0x120] sm:$0xff]
    %v87 = vld [vmem:[%s0 + $0x140] sm:$0xff]
    %v88 = vld [vmem:[%s0 + $0x160] sm:$0xff]
    %v89 = vld [vmem:[%s0 + $0x180] sm:$0xff]
    %v90 = vld [vmem:[%s0 + $0x1a0] sm:$0xff]
    %v91 = vld [vmem:[%s0 + $0x1c0] sm:$0xff]
    %v92 = vld [vmem:[%s0 + $0x1e0] sm:$0xff]
    %v93 = vld [vmem:[%s0 + $0x200] sm:$0xff]
    %v94 = vld [vmem:[%s0 + $0x1] sm:$0xff]
    %v95 = vld [vmem:[%s0 + $0x21] sm:$0xff]
    %v96 = vld [vmem:[%s0 + $0x41] sm:$0xff]
    %v97 = vld [vmem:[%s0 + $0x61] sm:$0xff]
    %v98 = vld [vmem:[%s0 + $0x81] sm:$0xff]
    %v99 = vld [vmem:[%s0 + $0xa1] sm:$0xff]
    %v100 = vld [vmem:[%s0 + $0xc1] sm:$0xff]
    %v101 = vld [vmem:[%s0 + $0xe1] sm:$0xff]
    %v102 = vld [vmem:[%s0 + $0x121] sm:$0xff]
    %v103 = vld [vmem:[%s0 + $0x141] sm:$0xff]
    %v104 = vld [vmem:[%s0 + $0x161] sm:$0xff]
    %v105 = vld [vmem:[%s0 + $0x181] sm:$0xff]
    %v106 = vld [vmem:[%s0 + $0x1a1] sm:$0xff]
    %v107 = vld [vmem:[%s0 + $0x1c1] sm:$0xff]
    %v108 = vld [vmem:[%s0 + $0x1e1] sm:$0xff]
    %v109 = vld [vmem:[%s0 + $0x201] sm:$0xff]
    %s110 = scalar_lea.vmem %s0, 16
    %v111 = vld [vmem:[%s110] sm:$0xff]
    %v112 = vld [vmem:[%s110 + $0x20] sm:$0xff]
    %v113 = vld [vmem:[%s110 + $0x40] sm:$0xff]
    %v114 = vld [vmem:[%s110 + $0x60] sm:$0xff]
    %v115 = vld [vmem:[%s110 + $0x80] sm:$0xff]
    %v116 = vld [vmem:[%s110 + $0xa0] sm:$0xff]
    %v117 = vld [vmem:[%s110 + $0xc0] sm:$0xff]
    %v118 = vld [vmem:[%s110 + $0xe0] sm:$0xff]
    %v119 = vld [vmem:[%s110 + $0x120] sm:$0xff]
    %v120 = vld [vmem:[%s110 + $0x140] sm:$0xff]
    %v121 = vld [vmem:[%s110 + $0x160] sm:$0xff]
    %v122 = vld [vmem:[%s110 + $0x180] sm:$0xff]
    %v123 = vld [vmem:[%s110 + $0x1a0] sm:$0xff]
    %v124 = vld [vmem:[%s110 + $0x1c0] sm:$0xff]
    %v125 = vld [vmem:[%s110 + $0x1e0] sm:$0xff]
    %v126 = vld [vmem:[%s110 + $0x200] sm:$0xff]
    %v127 = vld [vmem:[%s110 + $0x1] sm:$0xff]
    %v128 = vld [vmem:[%s110 + $0x21] sm:$0xff]
    %v129 = vld [vmem:[%s110 + $0x41] sm:$0xff]
    %v130 = vld [vmem:[%s110 + $0x61] sm:$0xff]
    %v131 = vld [vmem:[%s110 + $0x81] sm:$0xff]
    %v132 = vld [vmem:[%s110 + $0xa1] sm:$0xff]
    %v133 = vld [vmem:[%s110 + $0xc1] sm:$0xff]
    %v134 = vld [vmem:[%s110 + $0xe1] sm:$0xff]
    %v135 = vld [vmem:[%s110 + $0x121] sm:$0xff]
    %v136 = vld [vmem:[%s110 + $0x141] sm:$0xff]
    %v137 = vld [vmem:[%s110 + $0x161] sm:$0xff]
    %v138 = vld [vmem:[%s110 + $0x181] sm:$0xff]
    %v139 = vld [vmem:[%s110 + $0x1a1] sm:$0xff]
    %v140 = vld [vmem:[%s110 + $0x1c1] sm:$0xff]
    %v141 = vld [vmem:[%s110 + $0x1e1] sm:$0xff]
    %v142 = vld [vmem:[%s110 + $0x201] sm:$0xff]
    %s143 = scalar_lea.vmem %s0, 32
    %v144 = vld [vmem:[%s143] sm:$0xff]
    %v145 = vld [vmem:[%s143 + $0x20] sm:$0xff]
    %v146 = vld [vmem:[%s143 + $0x40] sm:$0xff]
    %v147 = vld [vmem:[%s143 + $0x60] sm:$0xff]
    %v148 = vld [vmem:[%s143 + $0x80] sm:$0xff]
    %v149 = vld [vmem:[%s143 + $0xa0] sm:$0xff]
    %v150 = vld [vmem:[%s143 + $0xc0] sm:$0xff]
    %v151 = vld [vmem:[%s143 + $0xe0] sm:$0xff]
    %v152 = vld [vmem:[%s143 + $0x120] sm:$0xff]
    %v153 = vld [vmem:[%s143 + $0x140] sm:$0xff]
    %v154 = vld [vmem:[%s143 + $0x160] sm:$0xff]
    %v155 = vld [vmem:[%s143 + $0x180] sm:$0xff]
    %v156 = vld [vmem:[%s143 + $0x1a0] sm:$0xff]
    %v157 = vld [vmem:[%s143 + $0x1c0] sm:$0xff]
    %v158 = vld [vmem:[%s143 + $0x1e0] sm:$0xff]
    %v159 = vld [vmem:[%s143 + $0x200] sm:$0xff]
    %v160 = vld [vmem:[%s143 + $0x1] sm:$0xff]
    %v161 = vld [vmem:[%s143 + $0x21] sm:$0xff]
    %v162 = vld [vmem:[%s143 + $0x41] sm:$0xff]
    %v163 = vld [vmem:[%s143 + $0x61] sm:$0xff]
    %v164 = vld [vmem:[%s143 + $0x81] sm:$0xff]
    %v165 = vld [vmem:[%s143 + $0xa1] sm:$0xff]
    %v166 = vld [vmem:[%s143 + $0xc1] sm:$0xff]
    %v167 = vld [vmem:[%s143 + $0xe1] sm:$0xff]
    %v168 = vld [vmem:[%s143 + $0x121] sm:$0xff]
    %v169 = vld [vmem:[%s143 + $0x141] sm:$0xff]
    %v170 = vld [vmem:[%s143 + $0x161] sm:$0xff]
    %v171 = vld [vmem:[%s143 + $0x181] sm:$0xff]
    %v172 = vld [vmem:[%s143 + $0x1a1] sm:$0xff]
    %v173 = vld [vmem:[%s143 + $0x1c1] sm:$0xff]
    %v174 = vld [vmem:[%s143 + $0x1e1] sm:$0xff]
    %v175 = vld [vmem:[%s143 + $0x201] sm:$0xff]
    %192 = vrot.lane.b32.xlu0 %v94, 6
    %v193 = vpop.permute.xlu0 %192
    %194 = vrot.lane.b32.xlu0 %v95, 6
    %v195 = vpop.permute.xlu0 %194
    %196 = vrot.lane.b32.xlu0 %v96, 6
    %v197 = vpop.permute.xlu0 %196
    %198 = vrot.lane.b32.xlu0 %v97, 6
    %v199 = vpop.permute.xlu0 %198
    %200 = vrot.lane.b32.xlu0 %v98, 6
    %v201 = vpop.permute.xlu0 %200
    %202 = vrot.lane.b32.xlu0 %v99, 6
    %v203 = vpop.permute.xlu0 %202
    %204 = vrot.lane.b32.xlu0 %v100, 6
    %v205 = vpop.permute.xlu0 %204
    %206 = vrot.lane.b32.xlu0 %v101, 6
    %v207 = vpop.permute.xlu0 %206
    %208 = vrot.lane.b32.xlu0 %v102, 6
    %v209 = vpop.permute.xlu0 %208
    %210 = vrot.lane.b32.xlu0 %v103, 6
    %v211 = vpop.permute.xlu0 %210
    %212 = vrot.lane.b32.xlu0 %v104, 6
    %v213 = vpop.permute.xlu0 %212
    %214 = vrot.lane.b32.xlu0 %v105, 6
    %v215 = vpop.permute.xlu0 %214
    %216 = vrot.lane.b32.xlu0 %v106, 6
    %v217 = vpop.permute.xlu0 %216
    %218 = vrot.lane.b32.xlu0 %v107, 6
    %v219 = vpop.permute.xlu0 %218
    %220 = vrot.lane.b32.xlu0 %v108, 6
    %v221 = vpop.permute.xlu0 %220
    %222 = vrot.lane.b32.xlu0 %v109, 6
    %v223 = vpop.permute.xlu0 %222
    %256 = vrot.lane.b32.xlu0 %v111, 9
    %v257 = vpop.permute.xlu0 %256
    %258 = vrot.lane.b32.xlu0 %v112, 9
    %v259 = vpop.permute.xlu0 %258
    %260 = vrot.lane.b32.xlu0 %v113, 9
    %v261 = vpop.permute.xlu0 %260
    %262 = vrot.lane.b32.xlu0 %v114, 9
    %v263 = vpop.permute.xlu0 %262
    %264 = vrot.lane.b32.xlu0 %v115, 9
    %v265 = vpop.permute.xlu0 %264
    %266 = vrot.lane.b32.xlu0 %v116, 9
    %v267 = vpop.permute.xlu0 %266
    %268 = vrot.lane.b32.xlu0 %v117, 9
    %v269 = vpop.permute.xlu0 %268
    %270 = vrot.lane.b32.xlu0 %v118, 9
    %v271 = vpop.permute.xlu0 %270
    %272 = vrot.lane.b32.xlu0 %v119, 9
    %v273 = vpop.permute.xlu0 %272
    %274 = vrot.lane.b32.xlu0 %v120, 9
    %v275 = vpop.permute.xlu0 %274
    %276 = vrot.lane.b32.xlu0 %v121, 9
    %v277 = vpop.permute.xlu0 %276
    %278 = vrot.lane.b32.xlu0 %v122, 9
    %v279 = vpop.permute.xlu0 %278
    %280 = vrot.lane.b32.xlu0 %v123, 9
    %v281 = vpop.permute.xlu0 %280
    %282 = vrot.lane.b32.xlu0 %v124, 9
    %v283 = vpop.permute.xlu0 %282
    %284 = vrot.lane.b32.xlu0 %v125, 9
    %v285 = vpop.permute.xlu0 %284
    %286 = vrot.lane.b32.xlu0 %v126, 9
    %v287 = vpop.permute.xlu0 %286
    %320 = vrot.lane.b32.xlu0 %v127, 15
    %v321 = vpop.permute.xlu0 %320
    %322 = vrot.lane.b32.xlu0 %v128, 15
    %v323 = vpop.permute.xlu0 %322
    %324 = vrot.lane.b32.xlu0 %v129, 15
    %v325 = vpop.permute.xlu0 %324
    %326 = vrot.lane.b32.xlu0 %v130, 15
    %v327 = vpop.permute.xlu0 %326
    %328 = vrot.lane.b32.xlu0 %v131, 15
    %v329 = vpop.permute.xlu0 %328
    %330 = vrot.lane.b32.xlu0 %v132, 15
    %v331 = vpop.permute.xlu0 %330
    %332 = vrot.lane.b32.xlu0 %v133, 15
    %v333 = vpop.permute.xlu0 %332
    %334 = vrot.lane.b32.xlu0 %v134, 15
    %v335 = vpop.permute.xlu0 %334
    %336 = vrot.lane.b32.xlu0 %v135, 15
    %v337 = vpop.permute.xlu0 %336
    %338 = vrot.lane.b32.xlu0 %v136, 15
    %v339 = vpop.permute.xlu0 %338
    %340 = vrot.lane.b32.xlu0 %v137, 15
    %v341 = vpop.permute.xlu0 %340
    %342 = vrot.lane.b32.xlu0 %v138, 15
    %v343 = vpop.permute.xlu0 %342
    %344 = vrot.lane.b32.xlu0 %v139, 15
    %v345 = vpop.permute.xlu0 %344
    %346 = vrot.lane.b32.xlu0 %v140, 15
    %v347 = vpop.permute.xlu0 %346
    %348 = vrot.lane.b32.xlu0 %v141, 15
    %v349 = vpop.permute.xlu0 %348
    %350 = vrot.lane.b32.xlu0 %v142, 15
    %v351 = vpop.permute.xlu0 %350
    %384 = vrot.lane.b32.xlu0 %v144, 18
    %v385 = vpop.permute.xlu0 %384
    %386 = vrot.lane.b32.xlu0 %v145, 18
    %v387 = vpop.permute.xlu0 %386
    %388 = vrot.lane.b32.xlu0 %v146, 18
    %v389 = vpop.permute.xlu0 %388
    %390 = vrot.lane.b32.xlu0 %v147, 18
    %v391 = vpop.permute.xlu0 %390
    %392 = vrot.lane.b32.xlu0 %v148, 18
    %v393 = vpop.permute.xlu0 %392
    %394 = vrot.lane.b32.xlu0 %v149, 18
    %v395 = vpop.permute.xlu0 %394
    %396 = vrot.lane.b32.xlu0 %v150, 18
    %v397 = vpop.permute.xlu0 %396
    %398 = vrot.lane.b32.xlu0 %v151, 18
    %v399 = vpop.permute.xlu0 %398
    %400 = vrot.lane.b32.xlu0 %v152, 18
    %v401 = vpop.permute.xlu0 %400
    %402 = vrot.lane.b32.xlu0 %v153, 18
    %v403 = vpop.permute.xlu0 %402
    %404 = vrot.lane.b32.xlu0 %v154, 18
    %v405 = vpop.permute.xlu0 %404
    %406 = vrot.lane.b32.xlu0 %v155, 18
    %v407 = vpop.permute.xlu0 %406
    %408 = vrot.lane.b32.xlu0 %v156, 18
    %v409 = vpop.permute.xlu0 %408
    %410 = vrot.lane.b32.xlu0 %v157, 18
    %v411 = vpop.permute.xlu0 %410
    %412 = vrot.lane.b32.xlu0 %v158, 18
    %v413 = vpop.permute.xlu0 %412
    %414 = vrot.lane.b32.xlu0 %v159, 18
    %v415 = vpop.permute.xlu0 %414
    %448 = vrot.lane.b32.xlu0 %v160, 24
    %v449 = vpop.permute.xlu0 %448
    %450 = vrot.lane.b32.xlu0 %v161, 24
    %v451 = vpop.permute.xlu0 %450
    %452 = vrot.lane.b32.xlu0 %v162, 24
    %v453 = vpop.permute.xlu0 %452
    %454 = vrot.lane.b32.xlu0 %v163, 24
    %v455 = vpop.permute.xlu0 %454
    %456 = vrot.lane.b32.xlu0 %v164, 24
    %v457 = vpop.permute.xlu0 %456
    %458 = vrot.lane.b32.xlu0 %v165, 24
    %v459 = vpop.permute.xlu0 %458
    %460 = vrot.lane.b32.xlu0 %v166, 24
    %v461 = vpop.permute.xlu0 %460
    %462 = vrot.lane.b32.xlu0 %v167, 24
    %v463 = vpop.permute.xlu0 %462
    %464 = vrot.lane.b32.xlu0 %v168, 24
    %v465 = vpop.permute.xlu0 %464
    %466 = vrot.lane.b32.xlu0 %v169, 24
    %v467 = vpop.permute.xlu0 %466
    %468 = vrot.lane.b32.xlu0 %v170, 24
    %v469 = vpop.permute.xlu0 %468
    %470 = vrot.lane.b32.xlu0 %v171, 24
    %v471 = vpop.permute.xlu0 %470
    %472 = vrot.lane.b32.xlu0 %v172, 24
    %v473 = vpop.permute.xlu0 %472
    %474 = vrot.lane.b32.xlu0 %v173, 24
    %v475 = vpop.permute.xlu0 %474
    %476 = vrot.lane.b32.xlu0 %v174, 24
    %v477 = vpop.permute.xlu0 %476
    %478 = vrot.lane.b32.xlu0 %v175, 24
    %v479 = vpop.permute.xlu0 %478
    %vm496 = vcmask 48128
    %v497 = vsel %vm496, %v78, %v193
    %v498 = vsel %vm496, %v79, %v195
    %v499 = vsel %vm496, %v80, %v197
    %v500 = vsel %vm496, %v81, %v199
    %v501 = vsel %vm496, %v82, %v201
    %v502 = vsel %vm496, %v83, %v203
    %v503 = vsel %vm496, %v84, %v205
    %v504 = vsel %vm496, %v85, %v207
    %v505 = vsel %vm496, %v86, %v209
    %v506 = vsel %vm496, %v87, %v211
    %v507 = vsel %vm496, %v88, %v213
    %v508 = vsel %vm496, %v89, %v215
    %v509 = vsel %vm496, %v90, %v217
    %v510 = vsel %vm496, %v91, %v219
    %v511 = vsel %vm496, %v92, %v221
    %v512 = vsel %vm496, %v93, %v223
    %vm513 = vcmask 72704
    %v514 = vsel %vm513, %v497, %v257
    %v515 = vsel %vm513, %v498, %v259
    %v516 = vsel %vm513, %v499, %v261
    %v517 = vsel %vm513, %v500, %v263
    %v518 = vsel %vm513, %v501, %v265
    %v519 = vsel %vm513, %v502, %v267
    %v520 = vsel %vm513, %v503, %v269
    %v521 = vsel %vm513, %v504, %v271
    %v522 = vsel %vm513, %v505, %v273
    %v523 = vsel %vm513, %v506, %v275
    %v524 = vsel %vm513, %v507, %v277
    %v525 = vsel %vm513, %v508, %v279
    %v526 = vsel %vm513, %v509, %v281
    %v527 = vsel %vm513, %v510, %v283
    %v528 = vsel %vm513, %v511, %v285
    %v529 = vsel %vm513, %v512, %v287
    %vm530 = vcmask 97280
    %v531 = vsel %vm530, %v514, %v257
    %v532 = vsel %vm530, %v515, %v259
    %v533 = vsel %vm530, %v516, %v261
    %v534 = vsel %vm530, %v517, %v263
    %v535 = vsel %vm530, %v518, %v265
    %v536 = vsel %vm530, %v519, %v267
    %v537 = vsel %vm530, %v520, %v269
    %v538 = vsel %vm530, %v521, %v271
    %v539 = vsel %vm530, %v522, %v273
    %v540 = vsel %vm530, %v523, %v275
    %v541 = vsel %vm530, %v524, %v277
    %v542 = vsel %vm530, %v525, %v279
    %v543 = vsel %vm530, %v526, %v281
    %v544 = vsel %vm530, %v527, %v283
    %v545 = vsel %vm530, %v528, %v285
    %v546 = vsel %vm530, %v529, %v287
    %vm547 = vcmask 121856
    %v548 = vsel %vm547, %v531, %v321
    %v549 = vsel %vm547, %v532, %v323
    %v550 = vsel %vm547, %v533, %v325
    %v551 = vsel %vm547, %v534, %v327
    %v552 = vsel %vm547, %v535, %v329
    %v553 = vsel %vm547, %v536, %v331
    %v554 = vsel %vm547, %v537, %v333
    %v555 = vsel %vm547, %v538, %v335
    %v556 = vsel %vm547, %v539, %v337
    %v557 = vsel %vm547, %v540, %v339
    %v558 = vsel %vm547, %v541, %v341
    %v559 = vsel %vm547, %v542, %v343
    %v560 = vsel %vm547, %v543, %v345
    %v561 = vsel %vm547, %v544, %v347
    %v562 = vsel %vm547, %v545, %v349
    %v563 = vsel %vm547, %v546, %v351
    %vm564 = vcmask 146432
    %v565 = vsel %vm564, %v548, %v385
    %v566 = vsel %vm564, %v549, %v387
    %v567 = vsel %vm564, %v550, %v389
    %v568 = vsel %vm564, %v551, %v391
    %v569 = vsel %vm564, %v552, %v393
    %v570 = vsel %vm564, %v553, %v395
    %v571 = vsel %vm564, %v554, %v397
    %v572 = vsel %vm564, %v555, %v399
    %v573 = vsel %vm564, %v556, %v401
    %v574 = vsel %vm564, %v557, %v403
    %v575 = vsel %vm564, %v558, %v405
    %v576 = vsel %vm564, %v559, %v407
    %v577 = vsel %vm564, %v560, %v409
    %v578 = vsel %vm564, %v561, %v411
    %v579 = vsel %vm564, %v562, %v413
    %v580 = vsel %vm564, %v563, %v415
    %vm581 = vcmask 171008
    %v582 = vsel %vm581, %v565, %v385
    %v583 = vsel %vm581, %v566, %v387
    %v584 = vsel %vm581, %v567, %v389
    %v585 = vsel %vm581, %v568, %v391
    %v586 = vsel %vm581, %v569, %v393
    %v587 = vsel %vm581, %v570, %v395
    %v588 = vsel %vm581, %v571, %v397
    %v589 = vsel %vm581, %v572, %v399
    %v590 = vsel %vm581, %v573, %v401
    %v591 = vsel %vm581, %v574, %v403
    %v592 = vsel %vm581, %v575, %v405
    %v593 = vsel %vm581, %v576, %v407
    %v594 = vsel %vm581, %v577, %v409
    %v595 = vsel %vm581, %v578, %v411
    %v596 = vsel %vm581, %v579, %v413
    %v597 = vsel %vm581, %v580, %v415
    %vm598 = vcmask 195584
    %v599 = vsel %vm598, %v582, %v449
    %v600 = vsel %vm598, %v583, %v451
    %v601 = vsel %vm598, %v584, %v453
    %v602 = vsel %vm598, %v585, %v455
    %v603 = vsel %vm598, %v586, %v457
    %v604 = vsel %vm598, %v587, %v459
    %v605 = vsel %vm598, %v588, %v461
    %v606 = vsel %vm598, %v589, %v463
    %v607 = vsel %vm598, %v590, %v465
    %v608 = vsel %vm598, %v591, %v467
    %v609 = vsel %vm598, %v592, %v469
    %v610 = vsel %vm598, %v593, %v471
    %v611 = vsel %vm598, %v594, %v473
    %v612 = vsel %vm598, %v595, %v475
    %v613 = vsel %vm598, %v596, %v477
    %v614 = vsel %vm598, %v597, %v479
    %vm615 = vcmask 220160
    %v616 = vsel %vm615, %v599, 0.0
    %v617 = vsel %vm615, %v600, 0.0
    %v618 = vsel %vm615, %v601, 0.0
    %v619 = vsel %vm615, %v602, 0.0
    %v620 = vsel %vm615, %v603, 0.0
    %v621 = vsel %vm615, %v604, 0.0
    %v622 = vsel %vm615, %v605, 0.0
    %v623 = vsel %vm615, %v606, 0.0
    %v624 = vsel %vm615, %v607, 0.0
    %v625 = vsel %vm615, %v608, 0.0
    %v626 = vsel %vm615, %v609, 0.0
    %v627 = vsel %vm615, %v610, 0.0
    %v628 = vsel %vm615, %v611, 0.0
    %v629 = vsel %vm615, %v612, 0.0
    %v630 = vsel %vm615, %v613, 0.0
    %v631 = vsel %vm615, %v614, 0.0
    %v632 = vpack.c.bf16 %v617, %v616
    %v633 = vpack.c.bf16 %v619, %v618
    %v634 = vpack.c.bf16 %v621, %v620
    %v635 = vpack.c.bf16 %v623, %v622
    %v636 = vpack.c.bf16 %v625, %v624
    %v637 = vpack.c.bf16 %v627, %v626
    %v638 = vpack.c.bf16 %v629, %v628
    %v639 = vpack.c.bf16 %v631, %v630
    %v640 = vld [vmem:[%s1] sm:$0xf]
    %v641 = vld [vmem:[%s1 + $0x4] sm:$0xf]
    %v642 = vld [vmem:[%s1 + $0x8] sm:$0xf]
    %v643 = vld [vmem:[%s1 + $0xc] sm:$0xf]
    %v648 = vunpack.c.l.b16 %v640
    %v649 = vunpack.c.l.b16 %v641
    %v650 = vunpack.c.l.b16 %v642
    %v651 = vunpack.c.l.b16 %v643
    %v652 = vpack.c.b16 %v649, %v648
    %v653 = vpack.c.b16 %v651, %v650
    %vm656 = vcmask 261120
    %v658 = vsel %vm656, %v632, 0
    %v661 = vsel %vm656, %v633, 0
    %v664 = vsel %vm656, %v634, 0
    %v667 = vsel %vm656, %v635, 0
    %v670 = vsel %vm656, %v636, 0
    %v673 = vsel %vm656, %v637, 0
    %v676 = vsel %vm656, %v638, 0
    %v679 = vsel %vm656, %v639, 0
    %681 = vmatprep.subr.bf16.mxu0 0
    %682 = vmatpush1.bf16.msra.mxu0 %v652
    %683 = vmatprep.subr.bf16.mxu0 0
    %684 = vmatpush1.bf16.msra.mxu0 %v653
    %685 = vmatprep.subr.bf16.mxu0 0
    %686 = vmatpush1.bf16.msra.mxu0 0
    %687 = vmatprep.subr.bf16.mxu0 0
    %688 = vmatpush1.bf16.msra.mxu0 0
    %689 = vmatprep.subr.bf16.mxu0 0
    %690 = vmatpush1.bf16.msra.mxu0 0
    %691 = vmatprep.subr.bf16.mxu0 0
    %692 = vmatpush1.bf16.msra.mxu0 0
    %693 = vmatprep.subr.bf16.mxu0 0
    %694 = vmatpush1.bf16.msra.mxu0 0
    %695 = vmatprep.subr.bf16.mxu0 0
    %696 = vmatpush1.bf16.msra.mxu0 0
    %697 = vmatprep.subr.bf16.mxu0 0
    %698 = vmatpush1.bf16.msra.mxu0 0
    %699 = vmatprep.subr.bf16.mxu0 0
    %700 = vmatpush1.bf16.msra.mxu0 0
    %701 = vmatprep.subr.bf16.mxu0 0
    %702 = vmatpush1.bf16.msra.mxu0 0
    %703 = vmatprep.subr.bf16.mxu0 0
    %704 = vmatpush1.bf16.msra.mxu0 0
    %705 = vmatprep.subr.bf16.mxu0 0
    %706 = vmatpush1.bf16.msra.mxu0 0
    %707 = vmatprep.subr.bf16.mxu0 0
    %708 = vmatpush1.bf16.msra.mxu0 0
    %709 = vmatprep.subr.bf16.mxu0 0
    %710 = vmatpush1.bf16.msra.mxu0 0
    %711 = vmatprep.subr.bf16.mxu0 0
    %712 = vmatpush1.bf16.msra.mxu0 0
    %713 = vmatprep.mubr.bf16.mxu0 0
    %714 = vmatmul.mubr.bf16.gmra.mrb[0].mxu0 %v658
    %v715 = vpop.f32.mrb[0].mxu0
    %v716 = vadd.f32 1.0, %v715
    %v717 = vpop.f32.mrb[0].mxu0
    %v718 = vpop.f32.mrb[0].mxu0
    %v719 = vadd.f32 1.0, %v718
    %v720 = vpop.f32.mrb[0].mxu0
    %721 = vmatprep.mubr.bf16.mxu0 0
    %722 = vmatmul.mubr.bf16.gmra.mrb[0].mxu0 %v661
    %v723 = vpop.f32.mrb[0].mxu0
    %v724 = vadd.f32 1.0, %v723
    %v725 = vpop.f32.mrb[0].mxu0
    %v726 = vpop.f32.mrb[0].mxu0
    %v727 = vadd.f32 1.0, %v726
    %v728 = vpop.f32.mrb[0].mxu0
    %729 = vmatprep.mubr.bf16.mxu0 0
    %730 = vmatmul.mubr.bf16.gmra.mrb[0].mxu0 %v664
    %v731 = vpop.f32.mrb[0].mxu0
    %v732 = vadd.f32 1.0, %v731
    %v733 = vpop.f32.mrb[0].mxu0
    %v734 = vpop.f32.mrb[0].mxu0
    %v735 = vadd.f32 1.0, %v734
    %v736 = vpop.f32.mrb[0].mxu0
    %737 = vmatprep.mubr.bf16.mxu0 0
    %738 = vmatmul.mubr.bf16.gmra.mrb[0].mxu0 %v667
    %v739 = vpop.f32.mrb[0].mxu0
    %v740 = vadd.f32 1.0, %v739
    %v741 = vpop.f32.mrb[0].mxu0
    %v742 = vpop.f32.mrb[0].mxu0
    %v743 = vadd.f32 1.0, %v742
    %v744 = vpop.f32.mrb[0].mxu0
    %745 = vmatprep.mubr.bf16.mxu0 0
    %746 = vmatmul.mubr.bf16.gmra.mrb[0].mxu0 %v670
    %v747 = vpop.f32.mrb[0].mxu0
    %v748 = vadd.f32 1.0, %v747
    %v749 = vpop.f32.mrb[0].mxu0
    %v750 = vpop.f32.mrb[0].mxu0
    %v751 = vadd.f32 1.0, %v750
    %v752 = vpop.f32.mrb[0].mxu0
    %753 = vmatprep.mubr.bf16.mxu0 0
    %754 = vmatmul.mubr.bf16.gmra.mrb[0].mxu0 %v673
    %v755 = vpop.f32.mrb[0].mxu0
    %v756 = vadd.f32 1.0, %v755
    %v757 = vpop.f32.mrb[0].mxu0
    %v758 = vpop.f32.mrb[0].mxu0
    %v759 = vadd.f32 1.0, %v758
    %v760 = vpop.f32.mrb[0].mxu0
    %761 = vmatprep.mubr.bf16.mxu0 0
    %762 = vmatmul.mubr.bf16.gmra.mrb[0].mxu0 %v676
    %v763 = vpop.f32.mrb[0].mxu0
    %v764 = vadd.f32 1.0, %v763
    %v765 = vpop.f32.mrb[0].mxu0
    %v766 = vpop.f32.mrb[0].mxu0
    %v767 = vadd.f32 1.0, %v766
    %v768 = vpop.f32.mrb[0].mxu0
    %769 = vmatprep.mubr.bf16.mxu0 0
    %770 = vmatmul.mubr.bf16.gmra.mrb[0].mxu0 %v679
    %v771 = vpop.f32.mrb[0].mxu0
    %v772 = vadd.f32 1.0, %v771
    %v773 = vpop.f32.mrb[0].mxu0
    %v774 = vpop.f32.mrb[0].mxu0
    %v775 = vadd.f32 1.0, %v774
    %v776 = vpop.f32.mrb[0].mxu0
    %777 = vdwg.mxu0
    %vm778 = vcmp.gt.f32.partialorder %v716, 0.0
    %vm779 = vcmp.gt.f32.partialorder %v719, 0.0
    %vm780 = vcmp.gt.f32.partialorder %v724, 0.0
    %vm781 = vcmp.gt.f32.partialorder %v727, 0.0
    %vm782 = vcmp.gt.f32.partialorder %v732, 0.0
    %vm783 = vcmp.gt.f32.partialorder %v735, 0.0
    %vm784 = vcmp.gt.f32.partialorder %v740, 0.0
    %vm785 = vcmp.gt.f32.partialorder %v743, 0.0
    %vm786 = vcmp.gt.f32.partialorder %v748, 0.0
    %vm787 = vcmp.gt.f32.partialorder %v751, 0.0
    %vm788 = vcmp.gt.f32.partialorder %v756, 0.0
    %vm789 = vcmp.gt.f32.partialorder %v759, 0.0
    %vm790 = vcmp.gt.f32.partialorder %v764, 0.0
    %vm791 = vcmp.gt.f32.partialorder %v767, 0.0
    %vm792 = vcmp.gt.f32.partialorder %v772, 0.0
    %vm793 = vcmp.gt.f32.partialorder %v775, 0.0
    %v794 = vmul.f32 %v716, 0.09
    %v795 = vmul.f32 %v719, 0.09
    %v796 = vmul.f32 %v724, 0.09
    %v797 = vmul.f32 %v727, 0.09
    %v798 = vmul.f32 %v732, 0.09
    %v799 = vmul.f32 %v735, 0.09
    %v800 = vmul.f32 %v740, 0.09
    %v801 = vmul.f32 %v743, 0.09
    %v802 = vmul.f32 %v748, 0.09
    %v803 = vmul.f32 %v751, 0.09
    %v804 = vmul.f32 %v756, 0.09
    %v805 = vmul.f32 %v759, 0.09
    %v806 = vmul.f32 %v764, 0.09
    %v807 = vmul.f32 %v767, 0.09
    %v808 = vmul.f32 %v772, 0.09
    %v809 = vmul.f32 %v775, 0.09
    %v810 = vsel %vm778, %v716, %v794
    %v811 = vsel %vm779, %v719, %v795
    %v812 = vsel %vm780, %v724, %v796
    %v813 = vsel %vm781, %v727, %v797
    %v814 = vsel %vm782, %v732, %v798
    %v815 = vsel %vm783, %v735, %v799
    %v816 = vsel %vm784, %v740, %v800
    %v817 = vsel %vm785, %v743, %v801
    %v818 = vsel %vm786, %v748, %v802
    %v819 = vsel %vm787, %v751, %v803
    %v820 = vsel %vm788, %v756, %v804
    %v821 = vsel %vm789, %v759, %v805
    %v822 = vsel %vm790, %v764, %v806
    %v823 = vsel %vm791, %v767, %v807
    %v824 = vsel %vm792, %v772, %v808
    %v825 = vsel %vm793, %v775, %v809
    %v826 = vpack.c.bf16 %v811, %v810
    %v827 = vpack.c.bf16 %v813, %v812
    %v828 = vpack.c.bf16 %v815, %v814
    %v829 = vpack.c.bf16 %v817, %v816
    %v830 = vpack.c.bf16 %v819, %v818
    %v831 = vpack.c.bf16 %v821, %v820
    %v832 = vpack.c.bf16 %v823, %v822
    %v833 = vpack.c.bf16 %v825, %v824
    %v834 = vld [vmem:[%s1 + $0x10] sm:$0xf]
    %v835 = vld [vmem:[%s1 + $0x14] sm:$0xf]
    %v836 = vld [vmem:[%s1 + $0x18] sm:$0xf]
    %v837 = vld [vmem:[%s1 + $0x1c] sm:$0xf]
    %v842 = vunpack.c.l.b16 %v834
    %v843 = vunpack.c.l.b16 %v835
    %v844 = vunpack.c.l.b16 %v836
    %v845 = vunpack.c.l.b16 %v837
    %v846 = vpack.c.b16 %v843, %v842
    %v847 = vpack.c.b16 %v845, %v844
    %v851 = vsel %vm656, %v826, 0
    %v854 = vsel %vm656, %v827, 0
    %v857 = vsel %vm656, %v828, 0
    %v860 = vsel %vm656, %v829, 0
    %v863 = vsel %vm656, %v830, 0
    %v866 = vsel %vm656, %v831, 0
    %v869 = vsel %vm656, %v832, 0
    %v872 = vsel %vm656, %v833, 0
    %874 = vmatprep.subr.bf16.mxu0 0
    %875 = vmatpush1.bf16.msra.mxu0 %v846
    %876 = vmatprep.subr.bf16.mxu0 0
    %877 = vmatpush1.bf16.msra.mxu0 %v847
    %878 = vmatprep.subr.bf16.mxu0 0
    %879 = vmatpush1.bf16.msra.mxu0 0
    %880 = vmatprep.subr.bf16.mxu0 0
    %881 = vmatpush1.bf16.msra.mxu0 0
    %882 = vmatprep.subr.bf16.mxu0 0
    %883 = vmatpush1.bf16.msra.mxu0 0
    %884 = vmatprep.subr.bf16.mxu0 0
    %885 = vmatpush1.bf16.msra.mxu0 0
    %886 = vmatprep.subr.bf16.mxu0 0
    %887 = vmatpush1.bf16.msra.mxu0 0
    %888 = vmatprep.subr.bf16.mxu0 0
    %889 = vmatpush1.bf16.msra.mxu0 0
    %890 = vmatprep.subr.bf16.mxu0 0
    %891 = vmatpush1.bf16.msra.mxu0 0
    %892 = vmatprep.subr.bf16.mxu0 0
    %893 = vmatpush1.bf16.msra.mxu0 0
    %894 = vmatprep.subr.bf16.mxu0 0
    %895 = vmatpush1.bf16.msra.mxu0 0
    %896 = vmatprep.subr.bf16.mxu0 0
    %897 = vmatpush1.bf16.msra.mxu0 0
    %898 = vmatprep.subr.bf16.mxu0 0
    %899 = vmatpush1.bf16.msra.mxu0 0
    %900 = vmatprep.subr.bf16.mxu0 0
    %901 = vmatpush1.bf16.msra.mxu0 0
    %902 = vmatprep.subr.bf16.mxu0 0
    %903 = vmatpush1.bf16.msra.mxu0 0
    %904 = vmatprep.subr.bf16.mxu0 0
    %905 = vmatpush1.bf16.msra.mxu0 0
    %906 = vmatprep.mubr.bf16.mxu0 0
    %907 = vmatmul.mubr.bf16.gmra.mrb[0].mxu0 %v851
    %v908 = vpop.f32.mrb[0].mxu0
    %v909 = vadd.f32 1.0, %v908
    %v910 = vpop.f32.mrb[0].mxu0
    %v911 = vpop.f32.mrb[0].mxu0
    %v912 = vadd.f32 1.0, %v911
    %v913 = vpop.f32.mrb[0].mxu0
    %914 = vmatprep.mubr.bf16.mxu0 0
    %915 = vmatmul.mubr.bf16.gmra.mrb[0].mxu0 %v854
    %v916 = vpop.f32.mrb[0].mxu0
    %v917 = vadd.f32 1.0, %v916
    %v918 = vpop.f32.mrb[0].mxu0
    %v919 = vpop.f32.mrb[0].mxu0
    %v920 = vadd.f32 1.0, %v919
    %v921 = vpop.f32.mrb[0].mxu0
    %922 = vmatprep.mubr.bf16.mxu0 0
    %923 = vmatmul.mubr.bf16.gmra.mrb[0].mxu0 %v857
    %v924 = vpop.f32.mrb[0].mxu0
    %v925 = vadd.f32 1.0, %v924
    %v926 = vpop.f32.mrb[0].mxu0
    %v927 = vpop.f32.mrb[0].mxu0
    %v928 = vadd.f32 1.0, %v927
    %v929 = vpop.f32.mrb[0].mxu0
    %930 = vmatprep.mubr.bf16.mxu0 0
    %931 = vmatmul.mubr.bf16.gmra.mrb[0].mxu0 %v860
    %v932 = vpop.f32.mrb[0].mxu0
    %v933 = vadd.f32 1.0, %v932
    %v934 = vpop.f32.mrb[0].mxu0
    %v935 = vpop.f32.mrb[0].mxu0
    %v936 = vadd.f32 1.0, %v935
    %v937 = vpop.f32.mrb[0].mxu0
    %938 = vmatprep.mubr.bf16.mxu0 0
    %939 = vmatmul.mubr.bf16.gmra.mrb[0].mxu0 %v863
    %v940 = vpop.f32.mrb[0].mxu0
    %v941 = vadd.f32 1.0, %v940
    %v942 = vpop.f32.mrb[0].mxu0
    %v943 = vpop.f32.mrb[0].mxu0
    %v944 = vadd.f32 1.0, %v943
    %v945 = vpop.f32.mrb[0].mxu0
    %946 = vmatprep.mubr.bf16.mxu0 0
    %947 = vmatmul.mubr.bf16.gmra.mrb[0].mxu0 %v866
    %v948 = vpop.f32.mrb[0].mxu0
    %v949 = vadd.f32 1.0, %v948
    %v950 = vpop.f32.mrb[0].mxu0
    %v951 = vpop.f32.mrb[0].mxu0
    %v952 = vadd.f32 1.0, %v951
    %v953 = vpop.f32.mrb[0].mxu0
    %954 = vmatprep.mubr.bf16.mxu0 0
    %955 = vmatmul.mubr.bf16.gmra.mrb[0].mxu0 %v869
    %v956 = vpop.f32.mrb[0].mxu0
    %v957 = vadd.f32 1.0, %v956
    %v958 = vpop.f32.mrb[0].mxu0
    %v959 = vpop.f32.mrb[0].mxu0
    %v960 = vadd.f32 1.0, %v959
    %v961 = vpop.f32.mrb[0].mxu0
    %962 = vmatprep.mubr.bf16.mxu0 0
    %963 = vmatmul.mubr.bf16.gmra.mrb[0].mxu0 %v872
    %v964 = vpop.f32.mrb[0].mxu0
    %v965 = vadd.f32 1.0, %v964
    %v966 = vpop.f32.mrb[0].mxu0
    %v967 = vpop.f32.mrb[0].mxu0
    %v968 = vadd.f32 1.0, %v967
    %v969 = vpop.f32.mrb[0].mxu0
    %970 = vdwg.mxu0
    %vm971 = vcmp.gt.f32.partialorder %v909, 0.0
    %vm972 = vcmp.gt.f32.partialorder %v912, 0.0
    %vm973 = vcmp.gt.f32.partialorder %v917, 0.0
    %vm974 = vcmp.gt.f32.partialorder %v920, 0.0
    %vm975 = vcmp.gt.f32.partialorder %v925, 0.0
    %vm976 = vcmp.gt.f32.partialorder %v928, 0.0
    %vm977 = vcmp.gt.f32.partialorder %v933, 0.0
    %vm978 = vcmp.gt.f32.partialorder %v936, 0.0
    %vm979 = vcmp.gt.f32.partialorder %v941, 0.0
    %vm980 = vcmp.gt.f32.partialorder %v944, 0.0
    %vm981 = vcmp.gt.f32.partialorder %v949, 0.0
    %vm982 = vcmp.gt.f32.partialorder %v952, 0.0
    %vm983 = vcmp.gt.f32.partialorder %v957, 0.0
    %vm984 = vcmp.gt.f32.partialorder %v960, 0.0
    %vm985 = vcmp.gt.f32.partialorder %v965, 0.0
    %vm986 = vcmp.gt.f32.partialorder %v968, 0.0
    %v987 = vmul.f32 %v909, 0.3
    %v988 = vmul.f32 %v912, 0.3
    %v989 = vmul.f32 %v917, 0.3
    %v990 = vmul.f32 %v920, 0.3
    %v991 = vmul.f32 %v925, 0.3
    %v992 = vmul.f32 %v928, 0.3
    %v993 = vmul.f32 %v933, 0.3
    %v994 = vmul.f32 %v936, 0.3
    %v995 = vmul.f32 %v941, 0.3
    %v996 = vmul.f32 %v944, 0.3
    %v997 = vmul.f32 %v949, 0.3
    %v998 = vmul.f32 %v952, 0.3
    %v999 = vmul.f32 %v957, 0.3
    %v1000 = vmul.f32 %v960, 0.3
    %v1001 = vmul.f32 %v965, 0.3
    %v1002 = vmul.f32 %v968, 0.3
    %v1003 = vsel %vm971, %v909, %v987
    %v1004 = vsel %vm972, %v912, %v988
    %v1005 = vsel %vm973, %v917, %v989
    %v1006 = vsel %vm974, %v920, %v990
    %v1007 = vsel %vm975, %v925, %v991
    %v1008 = vsel %vm976, %v928, %v992
    %v1009 = vsel %vm977, %v933, %v993
    %v1010 = vsel %vm978, %v936, %v994
    %v1011 = vsel %vm979, %v941, %v995
    %v1012 = vsel %vm980, %v944, %v996
    %v1013 = vsel %vm981, %v949, %v997
    %v1014 = vsel %vm982, %v952, %v998
    %v1015 = vsel %vm983, %v957, %v999
    %v1016 = vsel %vm984, %v960, %v1000
    %v1017 = vsel %vm985, %v965, %v1001
    %v1018 = vsel %vm986, %v968, %v1002
    %s1019 = scalar_lea.vmem [#allocation2], 16
    %1020 = vst [vmem:[%s1019 + $0x1] sm:$0xff] %v1003
    %1021 = vst [vmem:[%s1019 + $0x11] sm:$0xff] %v1004
    %1022 = vst [vmem:[%s1019 + $0x21] sm:$0xff] %v1005
    %1023 = vst [vmem:[%s1019 + $0x31] sm:$0xff] %v1006
    %1024 = vst [vmem:[%s1019 + $0x41] sm:$0xff] %v1007
    %1025 = vst [vmem:[%s1019 + $0x51] sm:$0xff] %v1008
    %1026 = vst [vmem:[%s1019 + $0x61] sm:$0xff] %v1009
    %1027 = vst [vmem:[%s1019 + $0x71] sm:$0xff] %v1010
    %1028 = vst [vmem:[%s1019 + $0xa1] sm:$0xff] %v1011
    %1029 = vst [vmem:[%s1019 + $0xb1] sm:$0xff] %v1012
    %1030 = vst [vmem:[%s1019 + $0xc1] sm:$0xff] %v1013
    %1031 = vst [vmem:[%s1019 + $0xd1] sm:$0xff] %v1014
    %1032 = vst [vmem:[%s1019 + $0xe1] sm:$0xff] %v1015
    %1033 = vst [vmem:[%s1019 + $0xf1] sm:$0xff] %v1016
    %1034 = vst [vmem:[%s1019 + $0x101] sm:$0xff] %v1017
    %1035 = vst [vmem:[%s1019 + $0x111] sm:$0xff] %v1018
    %v1036 = vld [vmem:[%s2] sm:$0xff]
    %v1037 = vld [vmem:[%s2 + $0x8] sm:$0x1]
    %v1038 = vld [vmem:[#allocation2] sm:$0xff]
    %v1039 = vld [vmem:[#allocation2 + $0x10] sm:$0xff]
    %v1040 = vld [vmem:[#allocation2 + $0x20] sm:$0xff]
    %v1041 = vld [vmem:[#allocation2 + $0x30] sm:$0xff]
    %v1042 = vld [vmem:[#allocation2 + $0x40] sm:$0xff]
    %v1043 = vld [vmem:[#allocation2 + $0x50] sm:$0xff]
    %v1044 = vld [vmem:[#allocation2 + $0x60] sm:$0xff]
    %v1045 = vld [vmem:[#allocation2 + $0x70] sm:$0xff]
    %v1046 = vld [vmem:[#allocation2 + $0xa0] sm:$0xff]
    %v1047 = vld [vmem:[#allocation2 + $0xb0] sm:$0xff]
    %v1048 = vld [vmem:[#allocation2 + $0xc0] sm:$0xff]
    %v1049 = vld [vmem:[#allocation2 + $0xd0] sm:$0xff]
    %v1050 = vld [vmem:[#allocation2 + $0xe0] sm:$0xff]
    %v1051 = vld [vmem:[#allocation2 + $0xf0] sm:$0xff]
    %v1052 = vld [vmem:[#allocation2 + $0x100] sm:$0xff]
    %v1053 = vld [vmem:[#allocation2 + $0x110] sm:$0xff]
    %v1054 = vlaneseq
    %v1055 = vshrl.u32 %v1054, 7
    %v1056 = vsub.s32 0, %v1055
    %v1057 = vrot.slane %v1036, %v1056
    %v1058 = vmul.f32 %v1038, %v1057
    %v1059 = vmul.f32 %v1039, %v1057
    %v1060 = vmul.f32 %v1040, %v1057
    %v1061 = vmul.f32 %v1041, %v1057
    %v1062 = vmul.f32 %v1042, %v1057
    %v1063 = vmul.f32 %v1043, %v1057
    %v1064 = vmul.f32 %v1044, %v1057
    %v1065 = vmul.f32 %v1045, %v1057
    %v1066 = vmul.f32 %v1046, %v1057
    %v1067 = vmul.f32 %v1047, %v1057
    %v1068 = vmul.f32 %v1048, %v1057
    %v1069 = vmul.f32 %v1049, %v1057
    %v1070 = vmul.f32 %v1050, %v1057
    %v1071 = vmul.f32 %v1051, %v1057
    %v1072 = vmul.f32 %v1052, %v1057
    %v1073 = vmul.f32 %v1053, %v1057
    %v1074 = vld [vmem:[#allocation2 + $0x1] sm:$0xff]
    %v1075 = vld [vmem:[#allocation2 + $0x11] sm:$0xff]
    %v1076 = vld [vmem:[#allocation2 + $0x21] sm:$0xff]
    %v1077 = vld [vmem:[#allocation2 + $0x31] sm:$0xff]
    %v1078 = vld [vmem:[#allocation2 + $0x41] sm:$0xff]
    %v1079 = vld [vmem:[#allocation2 + $0x51] sm:$0xff]
    %v1080 = vld [vmem:[#allocation2 + $0x61] sm:$0xff]
    %v1081 = vld [vmem:[#allocation2 + $0x71] sm:$0xff]
    %v1082 = vld [vmem:[#allocation2 + $0xa1] sm:$0xff]
    %v1083 = vld [vmem:[#allocation2 + $0xb1] sm:$0xff]
    %v1084 = vld [vmem:[#allocation2 + $0xc1] sm:$0xff]
    %v1085 = vld [vmem:[#allocation2 + $0xd1] sm:$0xff]
    %v1086 = vld [vmem:[#allocation2 + $0xe1] sm:$0xff]
    %v1087 = vld [vmem:[#allocation2 + $0xf1] sm:$0xff]
    %v1088 = vld [vmem:[#allocation2 + $0x101] sm:$0xff]
    %v1089 = vld [vmem:[#allocation2 + $0x111] sm:$0xff]
    %v1090 = vlaneseq
    %v1091 = vshrl.u32 %v1090, 7
    %v1092 = vsub.s32 1, %v1091
    %v1093 = vrot.slane %v1036, %v1092
    %v1094 = vmul.f32 %v1074, %v1093
    %v1095 = vmul.f32 %v1075, %v1093
    %v1096 = vmul.f32 %v1076, %v1093
    %v1097 = vmul.f32 %v1077, %v1093
    %v1098 = vmul.f32 %v1078, %v1093
    %v1099 = vmul.f32 %v1079, %v1093
    %v1100 = vmul.f32 %v1080, %v1093
    %v1101 = vmul.f32 %v1081, %v1093
    %v1102 = vmul.f32 %v1082, %v1093
    %v1103 = vmul.f32 %v1083, %v1093
    %v1104 = vmul.f32 %v1084, %v1093
    %v1105 = vmul.f32 %v1085, %v1093
    %v1106 = vmul.f32 %v1086, %v1093
    %v1107 = vmul.f32 %v1087, %v1093
    %v1108 = vmul.f32 %v1088, %v1093
    %v1109 = vmul.f32 %v1089, %v1093
    %v1110 = vadd.f32 %v1058, %v1094
    %v1111 = vadd.f32 %v1059, %v1095
    %v1112 = vadd.f32 %v1060, %v1096
    %v1113 = vadd.f32 %v1061, %v1097
    %v1114 = vadd.f32 %v1062, %v1098
    %v1115 = vadd.f32 %v1063, %v1099
    %v1116 = vadd.f32 %v1064, %v1100
    %v1117 = vadd.f32 %v1065, %v1101
    %v1118 = vadd.f32 %v1066, %v1102
    %v1119 = vadd.f32 %v1067, %v1103
    %v1120 = vadd.f32 %v1068, %v1104
    %v1121 = vadd.f32 %v1069, %v1105
    %v1122 = vadd.f32 %v1070, %v1106
    %v1123 = vadd.f32 %v1071, %v1107
    %v1124 = vadd.f32 %v1072, %v1108
    %v1125 = vadd.f32 %v1073, %v1109
    %v1126 = vld [vmem:[#allocation2 + $0x2] sm:$0xff]
    %v1127 = vld [vmem:[#allocation2 + $0x12] sm:$0xff]
    %v1128 = vld [vmem:[#allocation2 + $0x22] sm:$0xff]
    %v1129 = vld [vmem:[#allocation2 + $0x32] sm:$0xff]
    %v1130 = vld [vmem:[#allocation2 + $0x42] sm:$0xff]
    %v1131 = vld [vmem:[#allocation2 + $0x52] sm:$0xff]
    %v1132 = vld [vmem:[#allocation2 + $0x62] sm:$0xff]
    %v1133 = vld [vmem:[#allocation2 + $0x72] sm:$0xff]
    %v1134 = vld [vmem:[#allocation2 + $0xa2] sm:$0xff]
    %v1135 = vld [vmem:[#allocation2 + $0xb2] sm:$0xff]
    %v1136 = vld [vmem:[#allocation2 + $0xc2] sm:$0xff]
    %v1137 = vld [vmem:[#allocation2 + $0xd2] sm:$0xff]
    %v1138 = vld [vmem:[#allocation2 + $0xe2] sm:$0xff]
    %v1139 = vld [vmem:[#allocation2 + $0xf2] sm:$0xff]
    %v1140 = vld [vmem:[#allocation2 + $0x102] sm:$0xff]
    %v1141 = vld [vmem:[#allocation2 + $0x112] sm:$0xff]
    %v1142 = vlaneseq
    %v1143 = vshrl.u32 %v1142, 7
    %v1144 = vsub.s32 2, %v1143
    %v1145 = vrot.slane %v1036, %v1144
    %v1146 = vmul.f32 %v1126, %v1145
    %v1147 = vmul.f32 %v1127, %v1145
    %v1148 = vmul.f32 %v1128, %v1145
    %v1149 = vmul.f32 %v1129, %v1145
    %v1150 = vmul.f32 %v1130, %v1145
    %v1151 = vmul.f32 %v1131, %v1145
    %v1152 = vmul.f32 %v1132, %v1145
    %v1153 = vmul.f32 %v1133, %v1145
    %v1154 = vmul.f32 %v1134, %v1145
    %v1155 = vmul.f32 %v1135, %v1145
    %v1156 = vmul.f32 %v1136, %v1145
    %v1157 = vmul.f32 %v1137, %v1145
    %v1158 = vmul.f32 %v1138, %v1145
    %v1159 = vmul.f32 %v1139, %v1145
    %v1160 = vmul.f32 %v1140, %v1145
    %v1161 = vmul.f32 %v1141, %v1145
    %v1162 = vadd.f32 %v1110, %v1146
    %v1163 = vadd.f32 %v1111, %v1147
    %v1164 = vadd.f32 %v1112, %v1148
    %v1165 = vadd.f32 %v1113, %v1149
    %v1166 = vadd.f32 %v1114, %v1150
    %v1167 = vadd.f32 %v1115, %v1151
    %v1168 = vadd.f32 %v1116, %v1152
    %v1169 = vadd.f32 %v1117, %v1153
    %v1170 = vadd.f32 %v1118, %v1154
    %v1171 = vadd.f32 %v1119, %v1155
    %v1172 = vadd.f32 %v1120, %v1156
    %v1173 = vadd.f32 %v1121, %v1157
    %v1174 = vadd.f32 %v1122, %v1158
    %v1175 = vadd.f32 %v1123, %v1159
    %v1176 = vadd.f32 %v1124, %v1160
    %v1177 = vadd.f32 %v1125, %v1161
    %v1178 = vld [vmem:[%s1019] sm:$0xff]
    %v1179 = vld [vmem:[%s1019 + $0x10] sm:$0xff]
    %v1180 = vld [vmem:[%s1019 + $0x20] sm:$0xff]
    %v1181 = vld [vmem:[%s1019 + $0x30] sm:$0xff]
    %v1182 = vld [vmem:[%s1019 + $0x40] sm:$0xff]
    %v1183 = vld [vmem:[%s1019 + $0x50] sm:$0xff]
    %v1184 = vld [vmem:[%s1019 + $0x60] sm:$0xff]
    %v1185 = vld [vmem:[%s1019 + $0x70] sm:$0xff]
    %v1186 = vld [vmem:[%s1019 + $0xa0] sm:$0xff]
    %v1187 = vld [vmem:[%s1019 + $0xb0] sm:$0xff]
    %v1188 = vld [vmem:[%s1019 + $0xc0] sm:$0xff]
    %v1189 = vld [vmem:[%s1019 + $0xd0] sm:$0xff]
    %v1190 = vld [vmem:[%s1019 + $0xe0] sm:$0xff]
    %v1191 = vld [vmem:[%s1019 + $0xf0] sm:$0xff]
    %v1192 = vld [vmem:[%s1019 + $0x100] sm:$0xff]
    %v1193 = vld [vmem:[%s1019 + $0x110] sm:$0xff]
    %v1194 = vlaneseq
    %v1195 = vshrl.u32 %v1194, 7
    %v1196 = vsub.s32 3, %v1195
    %v1197 = vrot.slane %v1036, %v1196
    %v1198 = vmul.f32 %v1178, %v1197
    %v1199 = vmul.f32 %v1179, %v1197
    %v1200 = vmul.f32 %v1180, %v1197
    %v1201 = vmul.f32 %v1181, %v1197
    %v1202 = vmul.f32 %v1182, %v1197
    %v1203 = vmul.f32 %v1183, %v1197
    %v1204 = vmul.f32 %v1184, %v1197
    %v1205 = vmul.f32 %v1185, %v1197
    %v1206 = vmul.f32 %v1186, %v1197
    %v1207 = vmul.f32 %v1187, %v1197
    %v1208 = vmul.f32 %v1188, %v1197
    %v1209 = vmul.f32 %v1189, %v1197
    %v1210 = vmul.f32 %v1190, %v1197
    %v1211 = vmul.f32 %v1191, %v1197
    %v1212 = vmul.f32 %v1192, %v1197
    %v1213 = vmul.f32 %v1193, %v1197
    %v1214 = vadd.f32 %v1162, %v1198
    %v1215 = vadd.f32 %v1163, %v1199
    %v1216 = vadd.f32 %v1164, %v1200
    %v1217 = vadd.f32 %v1165, %v1201
    %v1218 = vadd.f32 %v1166, %v1202
    %v1219 = vadd.f32 %v1167, %v1203
    %v1220 = vadd.f32 %v1168, %v1204
    %v1221 = vadd.f32 %v1169, %v1205
    %v1222 = vadd.f32 %v1170, %v1206
    %v1223 = vadd.f32 %v1171, %v1207
    %v1224 = vadd.f32 %v1172, %v1208
    %v1225 = vadd.f32 %v1173, %v1209
    %v1226 = vadd.f32 %v1174, %v1210
    %v1227 = vadd.f32 %v1175, %v1211
    %v1228 = vadd.f32 %v1176, %v1212
    %v1229 = vadd.f32 %v1177, %v1213
    %v1230 = vld [vmem:[%s1019 + $0x1] sm:$0xff]
    %v1231 = vld [vmem:[%s1019 + $0x11] sm:$0xff]
    %v1232 = vld [vmem:[%s1019 + $0x21] sm:$0xff]
    %v1233 = vld [vmem:[%s1019 + $0x31] sm:$0xff]
    %v1234 = vld [vmem:[%s1019 + $0x41] sm:$0xff]
    %v1235 = vld [vmem:[%s1019 + $0x51] sm:$0xff]
    %v1236 = vld [vmem:[%s1019 + $0x61] sm:$0xff]
    %v1237 = vld [vmem:[%s1019 + $0x71] sm:$0xff]
    %v1238 = vld [vmem:[%s1019 + $0xa1] sm:$0xff]
    %v1239 = vld [vmem:[%s1019 + $0xb1] sm:$0xff]
    %v1240 = vld [vmem:[%s1019 + $0xc1] sm:$0xff]
    %v1241 = vld [vmem:[%s1019 + $0xd1] sm:$0xff]
    %v1242 = vld [vmem:[%s1019 + $0xe1] sm:$0xff]
    %v1243 = vld [vmem:[%s1019 + $0xf1] sm:$0xff]
    %v1244 = vld [vmem:[%s1019 + $0x101] sm:$0xff]
    %v1245 = vld [vmem:[%s1019 + $0x111] sm:$0xff]
    %v1246 = vlaneseq
    %v1247 = vshrl.u32 %v1246, 7
    %v1248 = vsub.s32 4, %v1247
    %v1249 = vrot.slane %v1036, %v1248
    %v1250 = vmul.f32 %v1230, %v1249
    %v1251 = vmul.f32 %v1231, %v1249
    %v1252 = vmul.f32 %v1232, %v1249
    %v1253 = vmul.f32 %v1233, %v1249
    %v1254 = vmul.f32 %v1234, %v1249
    %v1255 = vmul.f32 %v1235, %v1249
    %v1256 = vmul.f32 %v1236, %v1249
    %v1257 = vmul.f32 %v1237, %v1249
    %v1258 = vmul.f32 %v1238, %v1249
    %v1259 = vmul.f32 %v1239, %v1249
    %v1260 = vmul.f32 %v1240, %v1249
    %v1261 = vmul.f32 %v1241, %v1249
    %v1262 = vmul.f32 %v1242, %v1249
    %v1263 = vmul.f32 %v1243, %v1249
    %v1264 = vmul.f32 %v1244, %v1249
    %v1265 = vmul.f32 %v1245, %v1249
    %v1266 = vadd.f32 %v1214, %v1250
    %v1267 = vadd.f32 %v1215, %v1251
    %v1268 = vadd.f32 %v1216, %v1252
    %v1269 = vadd.f32 %v1217, %v1253
    %v1270 = vadd.f32 %v1218, %v1254
    %v1271 = vadd.f32 %v1219, %v1255
    %v1272 = vadd.f32 %v1220, %v1256
    %v1273 = vadd.f32 %v1221, %v1257
    %v1274 = vadd.f32 %v1222, %v1258
    %v1275 = vadd.f32 %v1223, %v1259
    %v1276 = vadd.f32 %v1224, %v1260
    %v1277 = vadd.f32 %v1225, %v1261
    %v1278 = vadd.f32 %v1226, %v1262
    %v1279 = vadd.f32 %v1227, %v1263
    %v1280 = vadd.f32 %v1228, %v1264
    %v1281 = vadd.f32 %v1229, %v1265
    %v1282 = vld [vmem:[%s1019 + $0x2] sm:$0xff]
    %v1283 = vld [vmem:[%s1019 + $0x12] sm:$0xff]
    %v1284 = vld [vmem:[%s1019 + $0x22] sm:$0xff]
    %v1285 = vld [vmem:[%s1019 + $0x32] sm:$0xff]
    %v1286 = vld [vmem:[%s1019 + $0x42] sm:$0xff]
    %v1287 = vld [vmem:[%s1019 + $0x52] sm:$0xff]
    %v1288 = vld [vmem:[%s1019 + $0x62] sm:$0xff]
    %v1289 = vld [vmem:[%s1019 + $0x72] sm:$0xff]
    %v1290 = vld [vmem:[%s1019 + $0xa2] sm:$0xff]
    %v1291 = vld [vmem:[%s1019 + $0xb2] sm:$0xff]
    %v1292 = vld [vmem:[%s1019 + $0xc2] sm:$0xff]
    %v1293 = vld [vmem:[%s1019 + $0xd2] sm:$0xff]
    %v1294 = vld [vmem:[%s1019 + $0xe2] sm:$0xff]
    %v1295 = vld [vmem:[%s1019 + $0xf2] sm:$0xff]
    %v1296 = vld [vmem:[%s1019 + $0x102] sm:$0xff]
    %v1297 = vld [vmem:[%s1019 + $0x112] sm:$0xff]
    %v1298 = vlaneseq
    %v1299 = vshrl.u32 %v1298, 7
    %v1300 = vsub.s32 5, %v1299
    %v1301 = vrot.slane %v1036, %v1300
    %v1302 = vmul.f32 %v1282, %v1301
    %v1303 = vmul.f32 %v1283, %v1301
    %v1304 = vmul.f32 %v1284, %v1301
    %v1305 = vmul.f32 %v1285, %v1301
    %v1306 = vmul.f32 %v1286, %v1301
    %v1307 = vmul.f32 %v1287, %v1301
    %v1308 = vmul.f32 %v1288, %v1301
    %v1309 = vmul.f32 %v1289, %v1301
    %v1310 = vmul.f32 %v1290, %v1301
    %v1311 = vmul.f32 %v1291, %v1301
    %v1312 = vmul.f32 %v1292, %v1301
    %v1313 = vmul.f32 %v1293, %v1301
    %v1314 = vmul.f32 %v1294, %v1301
    %v1315 = vmul.f32 %v1295, %v1301
    %v1316 = vmul.f32 %v1296, %v1301
    %v1317 = vmul.f32 %v1297, %v1301
    %v1318 = vadd.f32 %v1266, %v1302
    %v1319 = vadd.f32 %v1267, %v1303
    %v1320 = vadd.f32 %v1268, %v1304
    %v1321 = vadd.f32 %v1269, %v1305
    %v1322 = vadd.f32 %v1270, %v1306
    %v1323 = vadd.f32 %v1271, %v1307
    %v1324 = vadd.f32 %v1272, %v1308
    %v1325 = vadd.f32 %v1273, %v1309
    %v1326 = vadd.f32 %v1274, %v1310
    %v1327 = vadd.f32 %v1275, %v1311
    %v1328 = vadd.f32 %v1276, %v1312
    %v1329 = vadd.f32 %v1277, %v1313
    %v1330 = vadd.f32 %v1278, %v1314
    %v1331 = vadd.f32 %v1279, %v1315
    %v1332 = vadd.f32 %v1280, %v1316
    %v1333 = vadd.f32 %v1281, %v1317
    %s1334 = scalar_lea.vmem [#allocation2], 32
    %v1335 = vld [vmem:[%s1334] sm:$0xff]
    %v1336 = vld [vmem:[%s1334 + $0x10] sm:$0xff]
    %v1337 = vld [vmem:[%s1334 + $0x20] sm:$0xff]
    %v1338 = vld [vmem:[%s1334 + $0x30] sm:$0xff]
    %v1339 = vld [vmem:[%s1334 + $0x40] sm:$0xff]
    %v1340 = vld [vmem:[%s1334 + $0x50] sm:$0xff]
    %v1341 = vld [vmem:[%s1334 + $0x60] sm:$0xff]
    %v1342 = vld [vmem:[%s1334 + $0x70] sm:$0xff]
    %v1343 = vld [vmem:[%s1334 + $0xa0] sm:$0xff]
    %v1344 = vld [vmem:[%s1334 + $0xb0] sm:$0xff]
    %v1345 = vld [vmem:[%s1334 + $0xc0] sm:$0xff]
    %v1346 = vld [vmem:[%s1334 + $0xd0] sm:$0xff]
    %v1347 = vld [vmem:[%s1334 + $0xe0] sm:$0xff]
    %v1348 = vld [vmem:[%s1334 + $0xf0] sm:$0xff]
    %v1349 = vld [vmem:[%s1334 + $0x100] sm:$0xff]
    %v1350 = vld [vmem:[%s1334 + $0x110] sm:$0xff]
    %v1351 = vlaneseq
    %v1352 = vshrl.u32 %v1351, 7
    %v1353 = vsub.s32 6, %v1352
    %v1354 = vrot.slane %v1036, %v1353
    %v1355 = vmul.f32 %v1335, %v1354
    %v1356 = vmul.f32 %v1336, %v1354
    %v1357 = vmul.f32 %v1337, %v1354
    %v1358 = vmul.f32 %v1338, %v1354
    %v1359 = vmul.f32 %v1339, %v1354
    %v1360 = vmul.f32 %v1340, %v1354
    %v1361 = vmul.f32 %v1341, %v1354
    %v1362 = vmul.f32 %v1342, %v1354
    %v1363 = vmul.f32 %v1343, %v1354
    %v1364 = vmul.f32 %v1344, %v1354
    %v1365 = vmul.f32 %v1345, %v1354
    %v1366 = vmul.f32 %v1346, %v1354
    %v1367 = vmul.f32 %v1347, %v1354
    %v1368 = vmul.f32 %v1348, %v1354
    %v1369 = vmul.f32 %v1349, %v1354
    %v1370 = vmul.f32 %v1350, %v1354
    %v1371 = vadd.f32 %v1318, %v1355
    %v1372 = vadd.f32 %v1319, %v1356
    %v1373 = vadd.f32 %v1320, %v1357
    %v1374 = vadd.f32 %v1321, %v1358
    %v1375 = vadd.f32 %v1322, %v1359
    %v1376 = vadd.f32 %v1323, %v1360
    %v1377 = vadd.f32 %v1324, %v1361
    %v1378 = vadd.f32 %v1325, %v1362
    %v1379 = vadd.f32 %v1326, %v1363
    %v1380 = vadd.f32 %v1327, %v1364
    %v1381 = vadd.f32 %v1328, %v1365
    %v1382 = vadd.f32 %v1329, %v1366
    %v1383 = vadd.f32 %v1330, %v1367
    %v1384 = vadd.f32 %v1331, %v1368
    %v1385 = vadd.f32 %v1332, %v1369
    %v1386 = vadd.f32 %v1333, %v1370
    %v1387 = vld [vmem:[%s1334 + $0x1] sm:$0xff]
    %v1388 = vld [vmem:[%s1334 + $0x11] sm:$0xff]
    %v1389 = vld [vmem:[%s1334 + $0x21] sm:$0xff]
    %v1390 = vld [vmem:[%s1334 + $0x31] sm:$0xff]
    %v1391 = vld [vmem:[%s1334 + $0x41] sm:$0xff]
    %v1392 = vld [vmem:[%s1334 + $0x51] sm:$0xff]
    %v1393 = vld [vmem:[%s1334 + $0x61] sm:$0xff]
    %v1394 = vld [vmem:[%s1334 + $0x71] sm:$0xff]
    %v1395 = vld [vmem:[%s1334 + $0xa1] sm:$0xff]
    %v1396 = vld [vmem:[%s1334 + $0xb1] sm:$0xff]
    %v1397 = vld [vmem:[%s1334 + $0xc1] sm:$0xff]
    %v1398 = vld [vmem:[%s1334 + $0xd1] sm:$0xff]
    %v1399 = vld [vmem:[%s1334 + $0xe1] sm:$0xff]
    %v1400 = vld [vmem:[%s1334 + $0xf1] sm:$0xff]
    %v1401 = vld [vmem:[%s1334 + $0x101] sm:$0xff]
    %v1402 = vld [vmem:[%s1334 + $0x111] sm:$0xff]
    %v1403 = vlaneseq
    %v1404 = vshrl.u32 %v1403, 7
    %v1405 = vsub.s32 7, %v1404
    %v1406 = vrot.slane %v1036, %v1405
    %v1407 = vmul.f32 %v1387, %v1406
    %v1408 = vmul.f32 %v1388, %v1406
    %v1409 = vmul.f32 %v1389, %v1406
    %v1410 = vmul.f32 %v1390, %v1406
    %v1411 = vmul.f32 %v1391, %v1406
    %v1412 = vmul.f32 %v1392, %v1406
    %v1413 = vmul.f32 %v1393, %v1406
    %v1414 = vmul.f32 %v1394, %v1406
    %v1415 = vmul.f32 %v1395, %v1406
    %v1416 = vmul.f32 %v1396, %v1406
    %v1417 = vmul.f32 %v1397, %v1406
    %v1418 = vmul.f32 %v1398, %v1406
    %v1419 = vmul.f32 %v1399, %v1406
    %v1420 = vmul.f32 %v1400, %v1406
    %v1421 = vmul.f32 %v1401, %v1406
    %v1422 = vmul.f32 %v1402, %v1406
    %v1423 = vadd.f32 %v1371, %v1407
    %v1424 = vadd.f32 %v1372, %v1408
    %v1425 = vadd.f32 %v1373, %v1409
    %v1426 = vadd.f32 %v1374, %v1410
    %v1427 = vadd.f32 %v1375, %v1411
    %v1428 = vadd.f32 %v1376, %v1412
    %v1429 = vadd.f32 %v1377, %v1413
    %v1430 = vadd.f32 %v1378, %v1414
    %v1431 = vadd.f32 %v1379, %v1415
    %v1432 = vadd.f32 %v1380, %v1416
    %v1433 = vadd.f32 %v1381, %v1417
    %v1434 = vadd.f32 %v1382, %v1418
    %v1435 = vadd.f32 %v1383, %v1419
    %v1436 = vadd.f32 %v1384, %v1420
    %v1437 = vadd.f32 %v1385, %v1421
    %v1438 = vadd.f32 %v1386, %v1422
    %v1439 = vld [vmem:[%s1334 + $0x2] sm:$0xff]
    %v1440 = vld [vmem:[%s1334 + $0x12] sm:$0xff]
    %v1441 = vld [vmem:[%s1334 + $0x22] sm:$0xff]
    %v1442 = vld [vmem:[%s1334 + $0x32] sm:$0xff]
    %v1443 = vld [vmem:[%s1334 + $0x42] sm:$0xff]
    %v1444 = vld [vmem:[%s1334 + $0x52] sm:$0xff]
    %v1445 = vld [vmem:[%s1334 + $0x62] sm:$0xff]
    %v1446 = vld [vmem:[%s1334 + $0x72] sm:$0xff]
    %v1447 = vld [vmem:[%s1334 + $0xa2] sm:$0xff]
    %v1448 = vld [vmem:[%s1334 + $0xb2] sm:$0xff]
    %v1449 = vld [vmem:[%s1334 + $0xc2] sm:$0xff]
    %v1450 = vld [vmem:[%s1334 + $0xd2] sm:$0xff]
    %v1451 = vld [vmem:[%s1334 + $0xe2] sm:$0xff]
    %v1452 = vld [vmem:[%s1334 + $0xf2] sm:$0xff]
    %v1453 = vld [vmem:[%s1334 + $0x102] sm:$0xff]
    %v1454 = vld [vmem:[%s1334 + $0x112] sm:$0xff]
    %v1455 = vlaneseq
    %v1456 = vshrl.u32 %v1455, 7
    %v1457 = vsub.s32 0, %v1456
    %v1458 = vrot.slane %v1037, %v1457
    %v1459 = vmul.f32 %v1439, %v1458
    %v1460 = vmul.f32 %v1440, %v1458
    %v1461 = vmul.f32 %v1441, %v1458
    %v1462 = vmul.f32 %v1442, %v1458
    %v1463 = vmul.f32 %v1443, %v1458
    %v1464 = vmul.f32 %v1444, %v1458
    %v1465 = vmul.f32 %v1445, %v1458
    %v1466 = vmul.f32 %v1446, %v1458
    %v1467 = vmul.f32 %v1447, %v1458
    %v1468 = vmul.f32 %v1448, %v1458
    %v1469 = vmul.f32 %v1449, %v1458
    %v1470 = vmul.f32 %v1450, %v1458
    %v1471 = vmul.f32 %v1451, %v1458
    %v1472 = vmul.f32 %v1452, %v1458
    %v1473 = vmul.f32 %v1453, %v1458
    %v1474 = vmul.f32 %v1454, %v1458
    %v1475 = vadd.f32 %v1423, %v1459
    %v1476 = vadd.f32 %v1424, %v1460
    %v1477 = vadd.f32 %v1425, %v1461
    %v1478 = vadd.f32 %v1426, %v1462
    %v1479 = vadd.f32 %v1427, %v1463
    %v1480 = vadd.f32 %v1428, %v1464
    %v1481 = vadd.f32 %v1429, %v1465
    %v1482 = vadd.f32 %v1430, %v1466
    %v1483 = vadd.f32 %v1431, %v1467
    %v1484 = vadd.f32 %v1432, %v1468
    %v1485 = vadd.f32 %v1433, %v1469
    %v1486 = vadd.f32 %v1434, %v1470
    %v1487 = vadd.f32 %v1435, %v1471
    %v1488 = vadd.f32 %v1436, %v1472
    %v1489 = vadd.f32 %v1437, %v1473
    %v1490 = vadd.f32 %v1438, %v1474
    %v1491 = vadd.f32 %v1475, 1.0
    %v1492 = vadd.f32 %v1476, 1.0
    %v1493 = vadd.f32 %v1477, 1.0
    %v1494 = vadd.f32 %v1478, 1.0
    %v1495 = vadd.f32 %v1479, 1.0
    %v1496 = vadd.f32 %v1480, 1.0
    %v1497 = vadd.f32 %v1481, 1.0
    %v1498 = vadd.f32 %v1482, 1.0
    %v1499 = vadd.f32 %v1483, 1.0
    %v1500 = vadd.f32 %v1484, 1.0
    %v1501 = vadd.f32 %v1485, 1.0
    %v1502 = vadd.f32 %v1486, 1.0
    %v1503 = vadd.f32 %v1487, 1.0
    %v1504 = vadd.f32 %v1488, 1.0
    %v1505 = vadd.f32 %v1489, 1.0
    %v1506 = vadd.f32 %v1490, 1.0
    %vm1507 = vcmp.gt.f32.partialorder %v1491, 0.0
    %vm1508 = vcmp.gt.f32.partialorder %v1492, 0.0
    %vm1509 = vcmp.gt.f32.partialorder %v1493, 0.0
    %vm1510 = vcmp.gt.f32.partialorder %v1494, 0.0
    %vm1511 = vcmp.gt.f32.partialorder %v1495, 0.0
    %vm1512 = vcmp.gt.f32.partialorder %v1496, 0.0
    %vm1513 = vcmp.gt.f32.partialorder %v1497, 0.0
    %vm1514 = vcmp.gt.f32.partialorder %v1498, 0.0
    %vm1515 = vcmp.gt.f32.partialorder %v1499, 0.0
    %vm1516 = vcmp.gt.f32.partialorder %v1500, 0.0
    %vm1517 = vcmp.gt.f32.partialorder %v1501, 0.0
    %vm1518 = vcmp.gt.f32.partialorder %v1502, 0.0
    %vm1519 = vcmp.gt.f32.partialorder %v1503, 0.0
    %vm1520 = vcmp.gt.f32.partialorder %v1504, 0.0
    %vm1521 = vcmp.gt.f32.partialorder %v1505, 0.0
    %vm1522 = vcmp.gt.f32.partialorder %v1506, 0.0
    %v1523 = vmul.f32 %v1491, 0.3
    %v1524 = vmul.f32 %v1492, 0.3
    %v1525 = vmul.f32 %v1493, 0.3
    %v1526 = vmul.f32 %v1494, 0.3
    %v1527 = vmul.f32 %v1495, 0.3
    %v1528 = vmul.f32 %v1496, 0.3
    %v1529 = vmul.f32 %v1497, 0.3
    %v1530 = vmul.f32 %v1498, 0.3
    %v1531 = vmul.f32 %v1499, 0.3
    %v1532 = vmul.f32 %v1500, 0.3
    %v1533 = vmul.f32 %v1501, 0.3
    %v1534 = vmul.f32 %v1502, 0.3
    %v1535 = vmul.f32 %v1503, 0.3
    %v1536 = vmul.f32 %v1504, 0.3
    %v1537 = vmul.f32 %v1505, 0.3
    %v1538 = vmul.f32 %v1506, 0.3
    %v1539 = vsel %vm1507, %v1491, %v1523
    %v1540 = vsel %vm1508, %v1492, %v1524
    %v1541 = vsel %vm1509, %v1493, %v1525
    %v1542 = vsel %vm1510, %v1494, %v1526
    %v1543 = vsel %vm1511, %v1495, %v1527
    %v1544 = vsel %vm1512, %v1496, %v1528
    %v1545 = vsel %vm1513, %v1497, %v1529
    %v1546 = vsel %vm1514, %v1498, %v1530
    %v1547 = vsel %vm1515, %v1499, %v1531
    %v1548 = vsel %vm1516, %v1500, %v1532
    %v1549 = vsel %vm1517, %v1501, %v1533
    %v1550 = vsel %vm1518, %v1502, %v1534
    %v1551 = vsel %vm1519, %v1503, %v1535
    %v1552 = vsel %vm1520, %v1504, %v1536
    %v1553 = vsel %vm1521, %v1505, %v1537
    %v1554 = vsel %vm1522, %v1506, %v1538
    %v1555 = vpack.c.bf16 %v1540, %v1539
    %v1556 = vpack.c.bf16 %v1542, %v1541
    %v1557 = vpack.c.bf16 %v1544, %v1543
    %v1558 = vpack.c.bf16 %v1546, %v1545
    %v1559 = vpack.c.bf16 %v1548, %v1547
    %v1560 = vpack.c.bf16 %v1550, %v1549
    %v1561 = vpack.c.bf16 %v1552, %v1551
    %v1562 = vpack.c.bf16 %v1554, %v1553
    %v1563 = vld [vmem:[%s1 + $0x20] sm:$0xf]
    %v1564 = vld [vmem:[%s1 + $0x24] sm:$0xf]
    %v1565 = vld [vmem:[%s1 + $0x28] sm:$0xf]
    %v1566 = vld [vmem:[%s1 + $0x2c] sm:$0xf]
    %v1567 = vld [vmem:[%s1 + $0x30] sm:$0xf]
    %v1568 = vld [vmem:[%s1 + $0x34] sm:$0xf]
    %v1569 = vld [vmem:[%s1 + $0x38] sm:$0xf]
    %v1570 = vld [vmem:[%s1 + $0x3c] sm:$0xf]
    %v1571 = vld [vmem:[%s1 + $0x40] sm:$0xf]
    %v1572 = vld [vmem:[%s1 + $0x44] sm:$0xf]
    %v1573 = vld [vmem:[%s1 + $0x48] sm:$0xf]
    %v1574 = vld [vmem:[%s1 + $0x4c] sm:$0xf]
    %v1575 = vld [vmem:[%s1 + $0x50] sm:$0xf]
    %v1576 = vld [vmem:[%s1 + $0x54] sm:$0xf]
    %v1577 = vld [vmem:[%s1 + $0x58] sm:$0xf]
    %v1578 = vld [vmem:[%s1 + $0x5c] sm:$0xf]
    %v1595 = vunpack.c.l.b16 %v1563
    %v1596 = vunpack.c.l.b16 %v1564
    %v1597 = vunpack.c.l.b16 %v1565
    %v1598 = vunpack.c.l.b16 %v1566
    %v1599 = vunpack.c.l.b16 %v1567
    %v1600 = vunpack.c.l.b16 %v1568
    %v1601 = vunpack.c.l.b16 %v1569
    %v1602 = vunpack.c.l.b16 %v1570
    %v1603 = vunpack.c.l.b16 %v1571
    %v1604 = vunpack.c.l.b16 %v1572
    %v1605 = vunpack.c.l.b16 %v1573
    %v1606 = vunpack.c.l.b16 %v1574
    %v1607 = vunpack.c.l.b16 %v1575
    %v1608 = vunpack.c.l.b16 %v1576
    %v1609 = vunpack.c.l.b16 %v1577
    %v1610 = vunpack.c.l.b16 %v1578
    %v1611 = vpack.c.b16 %v1596, %v1595
    %v1612 = vpack.c.b16 %v1598, %v1597
    %v1613 = vpack.c.b16 %v1600, %v1599
    %v1614 = vpack.c.b16 %v1602, %v1601
    %v1615 = vpack.c.b16 %v1604, %v1603
    %v1616 = vpack.c.b16 %v1606, %v1605
    %v1617 = vpack.c.b16 %v1608, %v1607
    %v1618 = vpack.c.b16 %v1610, %v1609
    %1627 = vmatprep.subr.bf16.mxu0 0
    %1628 = vmatpush1.bf16.msra.mxu0 %v1611
    %1629 = vmatprep.subr.bf16.mxu0 0
    %1630 = vmatpush1.bf16.msra.mxu0 %v1612
    %1631 = vmatprep.subr.bf16.mxu0 0
    %1632 = vmatpush1.bf16.msra.mxu0 %v1613
    %1633 = vmatprep.subr.bf16.mxu0 0
    %1634 = vmatpush1.bf16.msra.mxu0 %v1614
    %1635 = vmatprep.subr.bf16.mxu0 0
    %1636 = vmatpush1.bf16.msra.mxu0 %v1615
    %1637 = vmatprep.subr.bf16.mxu0 0
    %1638 = vmatpush1.bf16.msra.mxu0 %v1616
    %1639 = vmatprep.subr.bf16.mxu0 0
    %1640 = vmatpush1.bf16.msra.mxu0 %v1617
    %1641 = vmatprep.subr.bf16.mxu0 0
    %1642 = vmatpush1.bf16.msra.mxu0 %v1618
    %1643 = vmatprep.subr.bf16.mxu0 0
    %1644 = vmatpush1.bf16.msra.mxu0 0
    %1645 = vmatprep.subr.bf16.mxu0 0
    %1646 = vmatpush1.bf16.msra.mxu0 0
    %1647 = vmatprep.subr.bf16.mxu0 0
    %1648 = vmatpush1.bf16.msra.mxu0 0
    %1649 = vmatprep.subr.bf16.mxu0 0
    %1650 = vmatpush1.bf16.msra.mxu0 0
    %1651 = vmatprep.subr.bf16.mxu0 0
    %1652 = vmatpush1.bf16.msra.mxu0 0
    %1653 = vmatprep.subr.bf16.mxu0 0
    %1654 = vmatpush1.bf16.msra.mxu0 0
    %1655 = vmatprep.subr.bf16.mxu0 0
    %1656 = vmatpush1.bf16.msra.mxu0 0
    %1657 = vmatprep.subr.bf16.mxu0 0
    %1658 = vmatpush1.bf16.msra.mxu0 0
    %1659 = vmatprep.mubr.bf16.mxu0 0
    %1660 = vmatmul.mubr.bf16.gmra.mrb[0].mxu0 %v1555
    %v1661 = vpop.f32.mrb[0].mxu0
    %v1662 = vadd.f32 1.0, %v1661
    %v1663 = vpop.f32.mrb[0].mxu0
    %v1664 = vpop.f32.mrb[0].mxu0
    %v1665 = vadd.f32 1.0, %v1664
    %v1666 = vpop.f32.mrb[0].mxu0
    %1667 = vmatprep.mubr.bf16.mxu0 0
    %1668 = vmatmul.mubr.bf16.gmra.mrb[0].mxu0 %v1556
    %v1669 = vpop.f32.mrb[0].mxu0
    %v1670 = vadd.f32 1.0, %v1669
    %v1671 = vpop.f32.mrb[0].mxu0
    %v1672 = vpop.f32.mrb[0].mxu0
    %v1673 = vadd.f32 1.0, %v1672
    %v1674 = vpop.f32.mrb[0].mxu0
    %1675 = vmatprep.mubr.bf16.mxu0 0
    %1676 = vmatmul.mubr.bf16.gmra.mrb[0].mxu0 %v1557
    %v1677 = vpop.f32.mrb[0].mxu0
    %v1678 = vadd.f32 1.0, %v1677
    %v1679 = vpop.f32.mrb[0].mxu0
    %v1680 = vpop.f32.mrb[0].mxu0
    %v1681 = vadd.f32 1.0, %v1680
    %v1682 = vpop.f32.mrb[0].mxu0
    %1683 = vmatprep.mubr.bf16.mxu0 0
    %1684 = vmatmul.mubr.bf16.gmra.mrb[0].mxu0 %v1558
    %v1685 = vpop.f32.mrb[0].mxu0
    %v1686 = vadd.f32 1.0, %v1685
    %v1687 = vpop.f32.mrb[0].mxu0
    %v1688 = vpop.f32.mrb[0].mxu0
    %v1689 = vadd.f32 1.0, %v1688
    %v1690 = vpop.f32.mrb[0].mxu0
    %1691 = vmatprep.mubr.bf16.mxu0 0
    %1692 = vmatmul.mubr.bf16.gmra.mrb[0].mxu0 %v1559
    %v1693 = vpop.f32.mrb[0].mxu0
    %v1694 = vadd.f32 1.0, %v1693
    %v1695 = vpop.f32.mrb[0].mxu0
    %v1696 = vpop.f32.mrb[0].mxu0
    %v1697 = vadd.f32 1.0, %v1696
    %v1698 = vpop.f32.mrb[0].mxu0
    %1699 = vmatprep.mubr.bf16.mxu0 0
    %1700 = vmatmul.mubr.bf16.gmra.mrb[0].mxu0 %v1560
    %v1701 = vpop.f32.mrb[0].mxu0
    %v1702 = vadd.f32 1.0, %v1701
    %v1703 = vpop.f32.mrb[0].mxu0
    %v1704 = vpop.f32.mrb[0].mxu0
    %v1705 = vadd.f32 1.0, %v1704
    %v1706 = vpop.f32.mrb[0].mxu0
    %1707 = vmatprep.mubr.bf16.mxu0 0
    %1708 = vmatmul.mubr.bf16.gmra.mrb[0].mxu0 %v1561
    %v1709 = vpop.f32.mrb[0].mxu0
    %v1710 = vadd.f32 1.0, %v1709
    %v1711 = vpop.f32.mrb[0].mxu0
    %v1712 = vpop.f32.mrb[0].mxu0
    %v1713 = vadd.f32 1.0, %v1712
    %v1714 = vpop.f32.mrb[0].mxu0
    %1715 = vmatprep.mubr.bf16.mxu0 0
    %1716 = vmatmul.mubr.bf16.gmra.mrb[0].mxu0 %v1562
    %v1717 = vpop.f32.mrb[0].mxu0
    %v1718 = vadd.f32 1.0, %v1717
    %v1719 = vpop.f32.mrb[0].mxu0
    %v1720 = vpop.f32.mrb[0].mxu0
    %v1721 = vadd.f32 1.0, %v1720
    %v1722 = vpop.f32.mrb[0].mxu0
    %1723 = vdwg.mxu0
    %vm1724 = vcmp.gt.f32.partialorder %v1662, 0.0
    %vm1725 = vcmp.gt.f32.partialorder %v1665, 0.0
    %vm1726 = vcmp.gt.f32.partialorder %v1670, 0.0
    %vm1727 = vcmp.gt.f32.partialorder %v1673, 0.0
    %vm1728 = vcmp.gt.f32.partialorder %v1678, 0.0
    %vm1729 = vcmp.gt.f32.partialorder %v1681, 0.0
    %vm1730 = vcmp.gt.f32.partialorder %v1686, 0.0
    %vm1731 = vcmp.gt.f32.partialorder %v1689, 0.0
    %vm1732 = vcmp.gt.f32.partialorder %v1694, 0.0
    %vm1733 = vcmp.gt.f32.partialorder %v1697, 0.0
    %vm1734 = vcmp.gt.f32.partialorder %v1702, 0.0
    %vm1735 = vcmp.gt.f32.partialorder %v1705, 0.0
    %vm1736 = vcmp.gt.f32.partialorder %v1710, 0.0
    %vm1737 = vcmp.gt.f32.partialorder %v1713, 0.0
    %vm1738 = vcmp.gt.f32.partialorder %v1718, 0.0
    %vm1739 = vcmp.gt.f32.partialorder %v1721, 0.0
    %v1740 = vmul.f32 %v1662, 0.3
    %v1741 = vmul.f32 %v1665, 0.3
    %v1742 = vmul.f32 %v1670, 0.3
    %v1743 = vmul.f32 %v1673, 0.3
    %v1744 = vmul.f32 %v1678, 0.3
    %v1745 = vmul.f32 %v1681, 0.3
    %v1746 = vmul.f32 %v1686, 0.3
    %v1747 = vmul.f32 %v1689, 0.3
    %v1748 = vmul.f32 %v1694, 0.3
    %v1749 = vmul.f32 %v1697, 0.3
    %v1750 = vmul.f32 %v1702, 0.3
    %v1751 = vmul.f32 %v1705, 0.3
    %v1752 = vmul.f32 %v1710, 0.3
    %v1753 = vmul.f32 %v1713, 0.3
    %v1754 = vmul.f32 %v1718, 0.3
    %v1755 = vmul.f32 %v1721, 0.3
    %v1756 = vsel %vm1724, %v1662, %v1740
    %v1757 = vsel %vm1725, %v1665, %v1741
    %v1758 = vsel %vm1726, %v1670, %v1742
    %v1759 = vsel %vm1727, %v1673, %v1743
    %v1760 = vsel %vm1728, %v1678, %v1744
    %v1761 = vsel %vm1729, %v1681, %v1745
    %v1762 = vsel %vm1730, %v1686, %v1746
    %v1763 = vsel %vm1731, %v1689, %v1747
    %v1764 = vsel %vm1732, %v1694, %v1748
    %v1765 = vsel %vm1733, %v1697, %v1749
    %v1766 = vsel %vm1734, %v1702, %v1750
    %v1767 = vsel %vm1735, %v1705, %v1751
    %v1768 = vsel %vm1736, %v1710, %v1752
    %v1769 = vsel %vm1737, %v1713, %v1753
    %v1770 = vsel %vm1738, %v1718, %v1754
    %v1771 = vsel %vm1739, %v1721, %v1755
    %v1772 = vadd.f32 %v1756, %v810
    %v1773 = vadd.f32 %v1757, %v811
    %v1774 = vadd.f32 %v1758, %v812
    %v1775 = vadd.f32 %v1759, %v813
    %v1776 = vadd.f32 %v1760, %v814
    %v1777 = vadd.f32 %v1761, %v815
    %v1778 = vadd.f32 %v1762, %v816
    %v1779 = vadd.f32 %v1763, %v817
    %v1780 = vadd.f32 %v1764, %v818
    %v1781 = vadd.f32 %v1765, %v819
    %v1782 = vadd.f32 %v1766, %v820
    %v1783 = vadd.f32 %v1767, %v821
    %v1784 = vadd.f32 %v1768, %v822
    %v1785 = vadd.f32 %v1769, %v823
    %v1786 = vadd.f32 %v1770, %v824
    %v1787 = vadd.f32 %v1771, %v825
    %v1788 = vpack.c.bf16 %v1773, %v1772
    %v1789 = vpack.c.bf16 %v1775, %v1774
    %v1790 = vpack.c.bf16 %v1777, %v1776
    %v1791 = vpack.c.bf16 %v1779, %v1778
    %v1792 = vpack.c.bf16 %v1781, %v1780
    %v1793 = vpack.c.bf16 %v1783, %v1782
    %v1794 = vpack.c.bf16 %v1785, %v1784
    %v1795 = vpack.c.bf16 %v1787, %v1786
    %v1796 = vld [vmem:[%s1 + $0x60] sm:$0xf]
    %v1797 = vld [vmem:[%s1 + $0x64] sm:$0xf]
    %v1798 = vld [vmem:[%s1 + $0x68] sm:$0xf]
    %v1799 = vld [vmem:[%s1 + $0x6c] sm:$0xf]
    %v1804 = vunpack.c.l.b16 %v1796
    %v1805 = vunpack.c.l.b16 %v1797
    %v1806 = vunpack.c.l.b16 %v1798
    %v1807 = vunpack.c.l.b16 %v1799
    %v1808 = vpack.c.b16 %v1805, %v1804
    %v1809 = vpack.c.b16 %v1807, %v1806
    %v1813 = vsel %vm656, %v1788, 0
    %v1816 = vsel %vm656, %v1789, 0
    %v1819 = vsel %vm656, %v1790, 0
    %v1822 = vsel %vm656, %v1791, 0
    %v1825 = vsel %vm656, %v1792, 0
    %v1828 = vsel %vm656, %v1793, 0
    %v1831 = vsel %vm656, %v1794, 0
    %v1834 = vsel %vm656, %v1795, 0
    %1836 = vmatprep.subr.bf16.mxu0 0
    %1837 = vmatpush1.bf16.msra.mxu0 %v1808
    %1838 = vmatprep.subr.bf16.mxu0 0
    %1839 = vmatpush1.bf16.msra.mxu0 %v1809
    %1840 = vmatprep.subr.bf16.mxu0 0
    %1841 = vmatpush1.bf16.msra.mxu0 0
    %1842 = vmatprep.subr.bf16.mxu0 0
    %1843 = vmatpush1.bf16.msra.mxu0 0
    %1844 = vmatprep.subr.bf16.mxu0 0
    %1845 = vmatpush1.bf16.msra.mxu0 0
    %1846 = vmatprep.subr.bf16.mxu0 0
    %1847 = vmatpush1.bf16.msra.mxu0 0
    %1848 = vmatprep.subr.bf16.mxu0 0
    %1849 = vmatpush1.bf16.msra.mxu0 0
    %1850 = vmatprep.subr.bf16.mxu0 0
    %1851 = vmatpush1.bf16.msra.mxu0 0
    %1852 = vmatprep.subr.bf16.mxu0 0
    %1853 = vmatpush1.bf16.msra.mxu0 0
    %1854 = vmatprep.subr.bf16.mxu0 0
    %1855 = vmatpush1.bf16.msra.mxu0 0
    %1856 = vmatprep.subr.bf16.mxu0 0
    %1857 = vmatpush1.bf16.msra.mxu0 0
    %1858 = vmatprep.subr.bf16.mxu0 0
    %1859 = vmatpush1.bf16.msra.mxu0 0
    %1860 = vmatprep.subr.bf16.mxu0 0
    %1861 = vmatpush1.bf16.msra.mxu0 0
    %1862 = vmatprep.subr.bf16.mxu0 0
    %1863 = vmatpush1.bf16.msra.mxu0 0
    %1864 = vmatprep.subr.bf16.mxu0 0
    %1865 = vmatpush1.bf16.msra.mxu0 0
    %1866 = vmatprep.subr.bf16.mxu0 0
    %1867 = vmatpush1.bf16.msra.mxu0 0
    %1868 = vmatprep.mubr.bf16.mxu0 0
    %1869 = vmatmul.mubr.bf16.gmra.mrb[0].mxu0 %v1813
    %v1870 = vpop.f32.mrb[0].mxu0
    %v1871 = vadd.f32 1.0, %v1870
    %v1872 = vpop.f32.mrb[0].mxu0
    %v1873 = vpop.f32.mrb[0].mxu0
    %v1874 = vadd.f32 1.0, %v1873
    %v1875 = vpop.f32.mrb[0].mxu0
    %1876 = vmatprep.mubr.bf16.mxu0 0
    %1877 = vmatmul.mubr.bf16.gmra.mrb[0].mxu0 %v1816
    %v1878 = vpop.f32.mrb[0].mxu0
    %v1879 = vadd.f32 1.0, %v1878
    %v1880 = vpop.f32.mrb[0].mxu0
    %v1881 = vpop.f32.mrb[0].mxu0
    %v1882 = vadd.f32 1.0, %v1881
    %v1883 = vpop.f32.mrb[0].mxu0
    %1884 = vmatprep.mubr.bf16.mxu0 0
    %1885 = vmatmul.mubr.bf16.gmra.mrb[0].mxu0 %v1819
    %v1886 = vpop.f32.mrb[0].mxu0
    %v1887 = vadd.f32 1.0, %v1886
    %v1888 = vpop.f32.mrb[0].mxu0
    %v1889 = vpop.f32.mrb[0].mxu0
    %v1890 = vadd.f32 1.0, %v1889
    %v1891 = vpop.f32.mrb[0].mxu0
    %1892 = vmatprep.mubr.bf16.mxu0 0
    %1893 = vmatmul.mubr.bf16.gmra.mrb[0].mxu0 %v1822
    %v1894 = vpop.f32.mrb[0].mxu0
    %v1895 = vadd.f32 1.0, %v1894
    %v1896 = vpop.f32.mrb[0].mxu0
    %v1897 = vpop.f32.mrb[0].mxu0
    %v1898 = vadd.f32 1.0, %v1897
    %v1899 = vpop.f32.mrb[0].mxu0
    %1900 = vmatprep.mubr.bf16.mxu0 0
    %1901 = vmatmul.mubr.bf16.gmra.mrb[0].mxu0 %v1825
    %v1902 = vpop.f32.mrb[0].mxu0
    %v1903 = vadd.f32 1.0, %v1902
    %v1904 = vpop.f32.mrb[0].mxu0
    %v1905 = vpop.f32.mrb[0].mxu0
    %v1906 = vadd.f32 1.0, %v1905
    %v1907 = vpop.f32.mrb[0].mxu0
    %1908 = vmatprep.mubr.bf16.mxu0 0
    %1909 = vmatmul.mubr.bf16.gmra.mrb[0].mxu0 %v1828
    %v1910 = vpop.f32.mrb[0].mxu0
    %v1911 = vadd.f32 1.0, %v1910
    %v1912 = vpop.f32.mrb[0].mxu0
    %v1913 = vpop.f32.mrb[0].mxu0
    %v1914 = vadd.f32 1.0, %v1913
    %v1915 = vpop.f32.mrb[0].mxu0
    %1916 = vmatprep.mubr.bf16.mxu0 0
    %1917 = vmatmul.mubr.bf16.gmra.mrb[0].mxu0 %v1831
    %v1918 = vpop.f32.mrb[0].mxu0
    %v1919 = vadd.f32 1.0, %v1918
    %v1920 = vpop.f32.mrb[0].mxu0
    %v1921 = vpop.f32.mrb[0].mxu0
    %v1922 = vadd.f32 1.0, %v1921
    %v1923 = vpop.f32.mrb[0].mxu0
    %1924 = vmatprep.mubr.bf16.mxu0 0
    %1925 = vmatmul.mubr.bf16.gmra.mrb[0].mxu0 %v1834
    %v1926 = vpop.f32.mrb[0].mxu0
    %v1927 = vadd.f32 1.0, %v1926
    %v1928 = vpop.f32.mrb[0].mxu0
    %v1929 = vpop.f32.mrb[0].mxu0
    %v1930 = vadd.f32 1.0, %v1929
    %v1931 = vpop.f32.mrb[0].mxu0
    %1932 = vdwg.mxu0
    %vm1933 = vcmp.gt.f32.partialorder %v1871, 0.0
    %vm1934 = vcmp.gt.f32.partialorder %v1874, 0.0
    %vm1935 = vcmp.gt.f32.partialorder %v1879, 0.0
    %vm1936 = vcmp.gt.f32.partialorder %v1882, 0.0
    %vm1937 = vcmp.gt.f32.partialorder %v1887, 0.0
    %vm1938 = vcmp.gt.f32.partialorder %v1890, 0.0
    %vm1939 = vcmp.gt.f32.partialorder %v1895, 0.0
    %vm1940 = vcmp.gt.f32.partialorder %v1898, 0.0
    %vm1941 = vcmp.gt.f32.partialorder %v1903, 0.0
    %vm1942 = vcmp.gt.f32.partialorder %v1906, 0.0
    %vm1943 = vcmp.gt.f32.partialorder %v1911, 0.0
    %vm1944 = vcmp.gt.f32.partialorder %v1914, 0.0
    %vm1945 = vcmp.gt.f32.partialorder %v1919, 0.0
    %vm1946 = vcmp.gt.f32.partialorder %v1922, 0.0
    %vm1947 = vcmp.gt.f32.partialorder %v1927, 0.0
    %vm1948 = vcmp.gt.f32.partialorder %v1930, 0.0
    %v1949 = vmul.f32 %v1871, 0.3
    %v1950 = vmul.f32 %v1874, 0.3
    %v1951 = vmul.f32 %v1879, 0.3
    %v1952 = vmul.f32 %v1882, 0.3
    %v1953 = vmul.f32 %v1887, 0.3
    %v1954 = vmul.f32 %v1890, 0.3
    %v1955 = vmul.f32 %v1895, 0.3
    %v1956 = vmul.f32 %v1898, 0.3
    %v1957 = vmul.f32 %v1903, 0.3
    %v1958 = vmul.f32 %v1906, 0.3
    %v1959 = vmul.f32 %v1911, 0.3
    %v1960 = vmul.f32 %v1914, 0.3
    %v1961 = vmul.f32 %v1919, 0.3
    %v1962 = vmul.f32 %v1922, 0.3
    %v1963 = vmul.f32 %v1927, 0.3
    %v1964 = vmul.f32 %v1930, 0.3
    %v1965 = vsel %vm1933, %v1871, %v1949
    %v1966 = vsel %vm1934, %v1874, %v1950
    %v1967 = vsel %vm1935, %v1879, %v1951
    %v1968 = vsel %vm1936, %v1882, %v1952
    %v1969 = vsel %vm1937, %v1887, %v1953
    %v1970 = vsel %vm1938, %v1890, %v1954
    %v1971 = vsel %vm1939, %v1895, %v1955
    %v1972 = vsel %vm1940, %v1898, %v1956
    %v1973 = vsel %vm1941, %v1903, %v1957
    %v1974 = vsel %vm1942, %v1906, %v1958
    %v1975 = vsel %vm1943, %v1911, %v1959
    %v1976 = vsel %vm1944, %v1914, %v1960
    %v1977 = vsel %vm1945, %v1919, %v1961
    %v1978 = vsel %vm1946, %v1922, %v1962
    %v1979 = vsel %vm1947, %v1927, %v1963
    %v1980 = vsel %vm1948, %v1930, %v1964
    %1981 = vst [vmem:[%s1019 + $0x1] sm:$0xff] %v1965
    %1982 = vst [vmem:[%s1019 + $0x11] sm:$0xff] %v1966
    %1983 = vst [vmem:[%s1019 + $0x21] sm:$0xff] %v1967
    %1984 = vst [vmem:[%s1019 + $0x31] sm:$0xff] %v1968
    %1985 = vst [vmem:[%s1019 + $0x41] sm:$0xff] %v1969
    %1986 = vst [vmem:[%s1019 + $0x51] sm:$0xff] %v1970
    %1987 = vst [vmem:[%s1019 + $0x61] sm:$0xff] %v1971
    %1988 = vst [vmem:[%s1019 + $0x71] sm:$0xff] %v1972
    %1989 = vst [vmem:[%s1019 + $0xa1] sm:$0xff] %v1973
    %1990 = vst [vmem:[%s1019 + $0xb1] sm:$0xff] %v1974
    %1991 = vst [vmem:[%s1019 + $0xc1] sm:$0xff] %v1975
    %1992 = vst [vmem:[%s1019 + $0xd1] sm:$0xff] %v1976
    %1993 = vst [vmem:[%s1019 + $0xe1] sm:$0xff] %v1977
    %1994 = vst [vmem:[%s1019 + $0xf1] sm:$0xff] %v1978
    %1995 = vst [vmem:[%s1019 + $0x101] sm:$0xff] %v1979
    %1996 = vst [vmem:[%s1019 + $0x111] sm:$0xff] %v1980
    %s1997 = scalar_lea.vmem %s2, 16
    %v1998 = vld [vmem:[%s1997] sm:$0xff]
    %v1999 = vld [vmem:[%s1997 + $0x8] sm:$0x1]
    %v2000 = vld [vmem:[#allocation2] sm:$0xff]
    %v2001 = vld [vmem:[#allocation2 + $0x10] sm:$0xff]
    %v2002 = vld [vmem:[#allocation2 + $0x20] sm:$0xff]
    %v2003 = vld [vmem:[#allocation2 + $0x30] sm:$0xff]
    %v2004 = vld [vmem:[#allocation2 + $0x40] sm:$0xff]
    %v2005 = vld [vmem:[#allocation2 + $0x50] sm:$0xff]
    %v2006 = vld [vmem:[#allocation2 + $0x60] sm:$0xff]
    %v2007 = vld [vmem:[#allocation2 + $0x70] sm:$0xff]
    %v2008 = vld [vmem:[#allocation2 + $0xa0] sm:$0xff]
    %v2009 = vld [vmem:[#allocation2 + $0xb0] sm:$0xff]
    %v2010 = vld [vmem:[#allocation2 + $0xc0] sm:$0xff]
    %v2011 = vld [vmem:[#allocation2 + $0xd0] sm:$0xff]
    %v2012 = vld [vmem:[#allocation2 + $0xe0] sm:$0xff]
    %v2013 = vld [vmem:[#allocation2 + $0xf0] sm:$0xff]
    %v2014 = vld [vmem:[#allocation2 + $0x100] sm:$0xff]
    %v2015 = vld [vmem:[#allocation2 + $0x110] sm:$0xff]
    %v2016 = vlaneseq
    %v2017 = vshrl.u32 %v2016, 7
    %v2018 = vsub.s32 0, %v2017
    %v2019 = vrot.slane %v1998, %v2018
    %v2020 = vmul.f32 %v2000, %v2019
    %v2021 = vmul.f32 %v2001, %v2019
    %v2022 = vmul.f32 %v2002, %v2019
    %v2023 = vmul.f32 %v2003, %v2019
    %v2024 = vmul.f32 %v2004, %v2019
    %v2025 = vmul.f32 %v2005, %v2019
    %v2026 = vmul.f32 %v2006, %v2019
    %v2027 = vmul.f32 %v2007, %v2019
    %v2028 = vmul.f32 %v2008, %v2019
    %v2029 = vmul.f32 %v2009, %v2019
    %v2030 = vmul.f32 %v2010, %v2019
    %v2031 = vmul.f32 %v2011, %v2019
    %v2032 = vmul.f32 %v2012, %v2019
    %v2033 = vmul.f32 %v2013, %v2019
    %v2034 = vmul.f32 %v2014, %v2019
    %v2035 = vmul.f32 %v2015, %v2019
    %v2036 = vld [vmem:[#allocation2 + $0x1] sm:$0xff]
    %v2037 = vld [vmem:[#allocation2 + $0x11] sm:$0xff]
    %v2038 = vld [vmem:[#allocation2 + $0x21] sm:$0xff]
    %v2039 = vld [vmem:[#allocation2 + $0x31] sm:$0xff]
    %v2040 = vld [vmem:[#allocation2 + $0x41] sm:$0xff]
    %v2041 = vld [vmem:[#allocation2 + $0x51] sm:$0xff]
    %v2042 = vld [vmem:[#allocation2 + $0x61] sm:$0xff]
    %v2043 = vld [vmem:[#allocation2 + $0x71] sm:$0xff]
    %v2044 = vld [vmem:[#allocation2 + $0xa1] sm:$0xff]
    %v2045 = vld [vmem:[#allocation2 + $0xb1] sm:$0xff]
    %v2046 = vld [vmem:[#allocation2 + $0xc1] sm:$0xff]
    %v2047 = vld [vmem:[#allocation2 + $0xd1] sm:$0xff]
    %v2048 = vld [vmem:[#allocation2 + $0xe1] sm:$0xff]
    %v2049 = vld [vmem:[#allocation2 + $0xf1] sm:$0xff]
    %v2050 = vld [vmem:[#allocation2 + $0x101] sm:$0xff]
    %v2051 = vld [vmem:[#allocation2 + $0x111] sm:$0xff]
    %v2052 = vlaneseq
    %v2053 = vshrl.u32 %v2052, 7
    %v2054 = vsub.s32 1, %v2053
    %v2055 = vrot.slane %v1998, %v2054
    %v2056 = vmul.f32 %v2036, %v2055
    %v2057 = vmul.f32 %v2037, %v2055
    %v2058 = vmul.f32 %v2038, %v2055
    %v2059 = vmul.f32 %v2039, %v2055
    %v2060 = vmul.f32 %v2040, %v2055
    %v2061 = vmul.f32 %v2041, %v2055
    %v2062 = vmul.f32 %v2042, %v2055
    %v2063 = vmul.f32 %v2043, %v2055
    %v2064 = vmul.f32 %v2044, %v2055
    %v2065 = vmul.f32 %v2045, %v2055
    %v2066 = vmul.f32 %v2046, %v2055
    %v2067 = vmul.f32 %v2047, %v2055
    %v2068 = vmul.f32 %v2048, %v2055
    %v2069 = vmul.f32 %v2049, %v2055
    %v2070 = vmul.f32 %v2050, %v2055
    %v2071 = vmul.f32 %v2051, %v2055
    %v2072 = vadd.f32 %v2020, %v2056
    %v2073 = vadd.f32 %v2021, %v2057
    %v2074 = vadd.f32 %v2022, %v2058
    %v2075 = vadd.f32 %v2023, %v2059
    %v2076 = vadd.f32 %v2024, %v2060
    %v2077 = vadd.f32 %v2025, %v2061
    %v2078 = vadd.f32 %v2026, %v2062
    %v2079 = vadd.f32 %v2027, %v2063
    %v2080 = vadd.f32 %v2028, %v2064
    %v2081 = vadd.f32 %v2029, %v2065
    %v2082 = vadd.f32 %v2030, %v2066
    %v2083 = vadd.f32 %v2031, %v2067
    %v2084 = vadd.f32 %v2032, %v2068
    %v2085 = vadd.f32 %v2033, %v2069
    %v2086 = vadd.f32 %v2034, %v2070
    %v2087 = vadd.f32 %v2035, %v2071
    %v2088 = vld [vmem:[#allocation2 + $0x2] sm:$0xff]
    %v2089 = vld [vmem:[#allocation2 + $0x12] sm:$0xff]
    %v2090 = vld [vmem:[#allocation2 + $0x22] sm:$0xff]
    %v2091 = vld [vmem:[#allocation2 + $0x32] sm:$0xff]
    %v2092 = vld [vmem:[#allocation2 + $0x42] sm:$0xff]
    %v2093 = vld [vmem:[#allocation2 + $0x52] sm:$0xff]
    %v2094 = vld [vmem:[#allocation2 + $0x62] sm:$0xff]
    %v2095 = vld [vmem:[#allocation2 + $0x72] sm:$0xff]
    %v2096 = vld [vmem:[#allocation2 + $0xa2] sm:$0xff]
    %v2097 = vld [vmem:[#allocation2 + $0xb2] sm:$0xff]
    %v2098 = vld [vmem:[#allocation2 + $0xc2] sm:$0xff]
    %v2099 = vld [vmem:[#allocation2 + $0xd2] sm:$0xff]
    %v2100 = vld [vmem:[#allocation2 + $0xe2] sm:$0xff]
    %v2101 = vld [vmem:[#allocation2 + $0xf2] sm:$0xff]
    %v2102 = vld [vmem:[#allocation2 + $0x102] sm:$0xff]
    %v2103 = vld [vmem:[#allocation2 + $0x112] sm:$0xff]
    %v2104 = vlaneseq
    %v2105 = vshrl.u32 %v2104, 7
    %v2106 = vsub.s32 2, %v2105
    %v2107 = vrot.slane %v1998, %v2106
    %v2108 = vmul.f32 %v2088, %v2107
    %v2109 = vmul.f32 %v2089, %v2107
    %v2110 = vmul.f32 %v2090, %v2107
    %v2111 = vmul.f32 %v2091, %v2107
    %v2112 = vmul.f32 %v2092, %v2107
    %v2113 = vmul.f32 %v2093, %v2107
    %v2114 = vmul.f32 %v2094, %v2107
    %v2115 = vmul.f32 %v2095, %v2107
    %v2116 = vmul.f32 %v2096, %v2107
    %v2117 = vmul.f32 %v2097, %v2107
    %v2118 = vmul.f32 %v2098, %v2107
    %v2119 = vmul.f32 %v2099, %v2107
    %v2120 = vmul.f32 %v2100, %v2107
    %v2121 = vmul.f32 %v2101, %v2107
    %v2122 = vmul.f32 %v2102, %v2107
    %v2123 = vmul.f32 %v2103, %v2107
    %v2124 = vadd.f32 %v2072, %v2108
    %v2125 = vadd.f32 %v2073, %v2109
    %v2126 = vadd.f32 %v2074, %v2110
    %v2127 = vadd.f32 %v2075, %v2111
    %v2128 = vadd.f32 %v2076, %v2112
    %v2129 = vadd.f32 %v2077, %v2113
    %v2130 = vadd.f32 %v2078, %v2114
    %v2131 = vadd.f32 %v2079, %v2115
    %v2132 = vadd.f32 %v2080, %v2116
    %v2133 = vadd.f32 %v2081, %v2117
    %v2134 = vadd.f32 %v2082, %v2118
    %v2135 = vadd.f32 %v2083, %v2119
    %v2136 = vadd.f32 %v2084, %v2120
    %v2137 = vadd.f32 %v2085, %v2121
    %v2138 = vadd.f32 %v2086, %v2122
    %v2139 = vadd.f32 %v2087, %v2123
    %v2140 = vld [vmem:[%s1019] sm:$0xff]
    %v2141 = vld [vmem:[%s1019 + $0x10] sm:$0xff]
    %v2142 = vld [vmem:[%s1019 + $0x20] sm:$0xff]
    %v2143 = vld [vmem:[%s1019 + $0x30] sm:$0xff]
    %v2144 = vld [vmem:[%s1019 + $0x40] sm:$0xff]
    %v2145 = vld [vmem:[%s1019 + $0x50] sm:$0xff]
    %v2146 = vld [vmem:[%s1019 + $0x60] sm:$0xff]
    %v2147 = vld [vmem:[%s1019 + $0x70] sm:$0xff]
    %v2148 = vld [vmem:[%s1019 + $0xa0] sm:$0xff]
    %v2149 = vld [vmem:[%s1019 + $0xb0] sm:$0xff]
    %v2150 = vld [vmem:[%s1019 + $0xc0] sm:$0xff]
    %v2151 = vld [vmem:[%s1019 + $0xd0] sm:$0xff]
    %v2152 = vld [vmem:[%s1019 + $0xe0] sm:$0xff]
    %v2153 = vld [vmem:[%s1019 + $0xf0] sm:$0xff]
    %v2154 = vld [vmem:[%s1019 + $0x100] sm:$0xff]
    %v2155 = vld [vmem:[%s1019 + $0x110] sm:$0xff]
    %v2156 = vlaneseq
    %v2157 = vshrl.u32 %v2156, 7
    %v2158 = vsub.s32 3, %v2157
    %v2159 = vrot.slane %v1998, %v2158
    %v2160 = vmul.f32 %v2140, %v2159
    %v2161 = vmul.f32 %v2141, %v2159
    %v2162 = vmul.f32 %v2142, %v2159
    %v2163 = vmul.f32 %v2143, %v2159
    %v2164 = vmul.f32 %v2144, %v2159
    %v2165 = vmul.f32 %v2145, %v2159
    %v2166 = vmul.f32 %v2146, %v2159
    %v2167 = vmul.f32 %v2147, %v2159
    %v2168 = vmul.f32 %v2148, %v2159
    %v2169 = vmul.f32 %v2149, %v2159
    %v2170 = vmul.f32 %v2150, %v2159
    %v2171 = vmul.f32 %v2151, %v2159
    %v2172 = vmul.f32 %v2152, %v2159
    %v2173 = vmul.f32 %v2153, %v2159
    %v2174 = vmul.f32 %v2154, %v2159
    %v2175 = vmul.f32 %v2155, %v2159
    %v2176 = vadd.f32 %v2124, %v2160
    %v2177 = vadd.f32 %v2125, %v2161
    %v2178 = vadd.f32 %v2126, %v2162
    %v2179 = vadd.f32 %v2127, %v2163
    %v2180 = vadd.f32 %v2128, %v2164
    %v2181 = vadd.f32 %v2129, %v2165
    %v2182 = vadd.f32 %v2130, %v2166
    %v2183 = vadd.f32 %v2131, %v2167
    %v2184 = vadd.f32 %v2132, %v2168
    %v2185 = vadd.f32 %v2133, %v2169
    %v2186 = vadd.f32 %v2134, %v2170
    %v2187 = vadd.f32 %v2135, %v2171
    %v2188 = vadd.f32 %v2136, %v2172
    %v2189 = vadd.f32 %v2137, %v2173
    %v2190 = vadd.f32 %v2138, %v2174
    %v2191 = vadd.f32 %v2139, %v2175
    %v2192 = vld [vmem:[%s1019 + $0x1] sm:$0xff]
    %v2193 = vld [vmem:[%s1019 + $0x11] sm:$0xff]
    %v2194 = vld [vmem:[%s1019 + $0x21] sm:$0xff]
    %v2195 = vld [vmem:[%s1019 + $0x31] sm:$0xff]
    %v2196 = vld [vmem:[%s1019 + $0x41] sm:$0xff]
    %v2197 = vld [vmem:[%s1019 + $0x51] sm:$0xff]
    %v2198 = vld [vmem:[%s1019 + $0x61] sm:$0xff]
    %v2199 = vld [vmem:[%s1019 + $0x71] sm:$0xff]
    %v2200 = vld [vmem:[%s1019 + $0xa1] sm:$0xff]
    %v2201 = vld [vmem:[%s1019 + $0xb1] sm:$0xff]
    %v2202 = vld [vmem:[%s1019 + $0xc1] sm:$0xff]
    %v2203 = vld [vmem:[%s1019 + $0xd1] sm:$0xff]
    %v2204 = vld [vmem:[%s1019 + $0xe1] sm:$0xff]
    %v2205 = vld [vmem:[%s1019 + $0xf1] sm:$0xff]
    %v2206 = vld [vmem:[%s1019 + $0x101] sm:$0xff]
    %v2207 = vld [vmem:[%s1019 + $0x111] sm:$0xff]
    %v2208 = vlaneseq
    %v2209 = vshrl.u32 %v2208, 7
    %v2210 = vsub.s32 4, %v2209
    %v2211 = vrot.slane %v1998, %v2210
    %v2212 = vmul.f32 %v2192, %v2211
    %v2213 = vmul.f32 %v2193, %v2211
    %v2214 = vmul.f32 %v2194, %v2211
    %v2215 = vmul.f32 %v2195, %v2211
    %v2216 = vmul.f32 %v2196, %v2211
    %v2217 = vmul.f32 %v2197, %v2211
    %v2218 = vmul.f32 %v2198, %v2211
    %v2219 = vmul.f32 %v2199, %v2211
    %v2220 = vmul.f32 %v2200, %v2211
    %v2221 = vmul.f32 %v2201, %v2211
    %v2222 = vmul.f32 %v2202, %v2211
    %v2223 = vmul.f32 %v2203, %v2211
    %v2224 = vmul.f32 %v2204, %v2211
    %v2225 = vmul.f32 %v2205, %v2211
    %v2226 = vmul.f32 %v2206, %v2211
    %v2227 = vmul.f32 %v2207, %v2211
    %v2228 = vadd.f32 %v2176, %v2212
    %v2229 = vadd.f32 %v2177, %v2213
    %v2230 = vadd.f32 %v2178, %v2214
    %v2231 = vadd.f32 %v2179, %v2215
    %v2232 = vadd.f32 %v2180, %v2216
    %v2233 = vadd.f32 %v2181, %v2217
    %v2234 = vadd.f32 %v2182, %v2218
    %v2235 = vadd.f32 %v2183, %v2219
    %v2236 = vadd.f32 %v2184, %v2220
    %v2237 = vadd.f32 %v2185, %v2221
    %v2238 = vadd.f32 %v2186, %v2222
    %v2239 = vadd.f32 %v2187, %v2223
    %v2240 = vadd.f32 %v2188, %v2224
    %v2241 = vadd.f32 %v2189, %v2225
    %v2242 = vadd.f32 %v2190, %v2226
    %v2243 = vadd.f32 %v2191, %v2227
    %v2244 = vld [vmem:[%s1019 + $0x2] sm:$0xff]
    %v2245 = vld [vmem:[%s1019 + $0x12] sm:$0xff]
    %v2246 = vld [vmem:[%s1019 + $0x22] sm:$0xff]
    %v2247 = vld [vmem:[%s1019 + $0x32] sm:$0xff]
    %v2248 = vld [vmem:[%s1019 + $0x42] sm:$0xff]
    %v2249 = vld [vmem:[%s1019 + $0x52] sm:$0xff]
    %v2250 = vld [vmem:[%s1019 + $0x62] sm:$0xff]
    %v2251 = vld [vmem:[%s1019 + $0x72] sm:$0xff]
    %v2252 = vld [vmem:[%s1019 + $0xa2] sm:$0xff]
    %v2253 = vld [vmem:[%s1019 + $0xb2] sm:$0xff]
    %v2254 = vld [vmem:[%s1019 + $0xc2] sm:$0xff]
    %v2255 = vld [vmem:[%s1019 + $0xd2] sm:$0xff]
    %v2256 = vld [vmem:[%s1019 + $0xe2] sm:$0xff]
    %v2257 = vld [vmem:[%s1019 + $0xf2] sm:$0xff]
    %v2258 = vld [vmem:[%s1019 + $0x102] sm:$0xff]
    %v2259 = vld [vmem:[%s1019 + $0x112] sm:$0xff]
    %v2260 = vlaneseq
    %v2261 = vshrl.u32 %v2260, 7
    %v2262 = vsub.s32 5, %v2261
    %v2263 = vrot.slane %v1998, %v2262
    %v2264 = vmul.f32 %v2244, %v2263
    %v2265 = vmul.f32 %v2245, %v2263
    %v2266 = vmul.f32 %v2246, %v2263
    %v2267 = vmul.f32 %v2247, %v2263
    %v2268 = vmul.f32 %v2248, %v2263
    %v2269 = vmul.f32 %v2249, %v2263
    %v2270 = vmul.f32 %v2250, %v2263
    %v2271 = vmul.f32 %v2251, %v2263
    %v2272 = vmul.f32 %v2252, %v2263
    %v2273 = vmul.f32 %v2253, %v2263
    %v2274 = vmul.f32 %v2254, %v2263
    %v2275 = vmul.f32 %v2255, %v2263
    %v2276 = vmul.f32 %v2256, %v2263
    %v2277 = vmul.f32 %v2257, %v2263
    %v2278 = vmul.f32 %v2258, %v2263
    %v2279 = vmul.f32 %v2259, %v2263
    %v2280 = vadd.f32 %v2228, %v2264
    %v2281 = vadd.f32 %v2229, %v2265
    %v2282 = vadd.f32 %v2230, %v2266
    %v2283 = vadd.f32 %v2231, %v2267
    %v2284 = vadd.f32 %v2232, %v2268
    %v2285 = vadd.f32 %v2233, %v2269
    %v2286 = vadd.f32 %v2234, %v2270
    %v2287 = vadd.f32 %v2235, %v2271
    %v2288 = vadd.f32 %v2236, %v2272
    %v2289 = vadd.f32 %v2237, %v2273
    %v2290 = vadd.f32 %v2238, %v2274
    %v2291 = vadd.f32 %v2239, %v2275
    %v2292 = vadd.f32 %v2240, %v2276
    %v2293 = vadd.f32 %v2241, %v2277
    %v2294 = vadd.f32 %v2242, %v2278
    %v2295 = vadd.f32 %v2243, %v2279
    %v2296 = vld [vmem:[%s1334] sm:$0xff]
    %v2297 = vld [vmem:[%s1334 + $0x10] sm:$0xff]
    %v2298 = vld [vmem:[%s1334 + $0x20] sm:$0xff]
    %v2299 = vld [vmem:[%s1334 + $0x30] sm:$0xff]
    %v2300 = vld [vmem:[%s1334 + $0x40] sm:$0xff]
    %v2301 = vld [vmem:[%s1334 + $0x50] sm:$0xff]
    %v2302 = vld [vmem:[%s1334 + $0x60] sm:$0xff]
    %v2303 = vld [vmem:[%s1334 + $0x70] sm:$0xff]
    %v2304 = vld [vmem:[%s1334 + $0xa0] sm:$0xff]
    %v2305 = vld [vmem:[%s1334 + $0xb0] sm:$0xff]
    %v2306 = vld [vmem:[%s1334 + $0xc0] sm:$0xff]
    %v2307 = vld [vmem:[%s1334 + $0xd0] sm:$0xff]
    %v2308 = vld [vmem:[%s1334 + $0xe0] sm:$0xff]
    %v2309 = vld [vmem:[%s1334 + $0xf0] sm:$0xff]
    %v2310 = vld [vmem:[%s1334 + $0x100] sm:$0xff]
    %v2311 = vld [vmem:[%s1334 + $0x110] sm:$0xff]
    %v2312 = vlaneseq
    %v2313 = vshrl.u32 %v2312, 7
    %v2314 = vsub.s32 6, %v2313
    %v2315 = vrot.slane %v1998, %v2314
    %v2316 = vmul.f32 %v2296, %v2315
    %v2317 = vmul.f32 %v2297, %v2315
    %v2318 = vmul.f32 %v2298, %v2315
    %v2319 = vmul.f32 %v2299, %v2315
    %v2320 = vmul.f32 %v2300, %v2315
    %v2321 = vmul.f32 %v2301, %v2315
    %v2322 = vmul.f32 %v2302, %v2315
    %v2323 = vmul.f32 %v2303, %v2315
    %v2324 = vmul.f32 %v2304, %v2315
    %v2325 = vmul.f32 %v2305, %v2315
    %v2326 = vmul.f32 %v2306, %v2315
    %v2327 = vmul.f32 %v2307, %v2315
    %v2328 = vmul.f32 %v2308, %v2315
    %v2329 = vmul.f32 %v2309, %v2315
    %v2330 = vmul.f32 %v2310, %v2315
    %v2331 = vmul.f32 %v2311, %v2315
    %v2332 = vadd.f32 %v2280, %v2316
    %v2333 = vadd.f32 %v2281, %v2317
    %v2334 = vadd.f32 %v2282, %v2318
    %v2335 = vadd.f32 %v2283, %v2319
    %v2336 = vadd.f32 %v2284, %v2320
    %v2337 = vadd.f32 %v2285, %v2321
    %v2338 = vadd.f32 %v2286, %v2322
    %v2339 = vadd.f32 %v2287, %v2323
    %v2340 = vadd.f32 %v2288, %v2324
    %v2341 = vadd.f32 %v2289, %v2325
    %v2342 = vadd.f32 %v2290, %v2326
    %v2343 = vadd.f32 %v2291, %v2327
    %v2344 = vadd.f32 %v2292, %v2328
    %v2345 = vadd.f32 %v2293, %v2329
    %v2346 = vadd.f32 %v2294, %v2330
    %v2347 = vadd.f32 %v2295, %v2331
    %v2348 = vld [vmem:[%s1334 + $0x1] sm:$0xff]
    %v2349 = vld [vmem:[%s1334 + $0x11] sm:$0xff]
    %v2350 = vld [vmem:[%s1334 + $0x21] sm:$0xff]
    %v2351 = vld [vmem:[%s1334 + $0x31] sm:$0xff]
    %v2352 = vld [vmem:[%s1334 + $0x41] sm:$0xff]
    %v2353 = vld [vmem:[%s1334 + $0x51] sm:$0xff]
    %v2354 = vld [vmem:[%s1334 + $0x61] sm:$0xff]
    %v2355 = vld [vmem:[%s1334 + $0x71] sm:$0xff]
    %v2356 = vld [vmem:[%s1334 + $0xa1] sm:$0xff]
    %v2357 = vld [vmem:[%s1334 + $0xb1] sm:$0xff]
    %v2358 = vld [vmem:[%s1334 + $0xc1] sm:$0xff]
    %v2359 = vld [vmem:[%s1334 + $0xd1] sm:$0xff]
    %v2360 = vld [vmem:[%s1334 + $0xe1] sm:$0xff]
    %v2361 = vld [vmem:[%s1334 + $0xf1] sm:$0xff]
    %v2362 = vld [vmem:[%s1334 + $0x101] sm:$0xff]
    %v2363 = vld [vmem:[%s1334 + $0x111] sm:$0xff]
    %v2364 = vlaneseq
    %v2365 = vshrl.u32 %v2364, 7
    %v2366 = vsub.s32 7, %v2365
    %v2367 = vrot.slane %v1998, %v2366
    %v2368 = vmul.f32 %v2348, %v2367
    %v2369 = vmul.f32 %v2349, %v2367
    %v2370 = vmul.f32 %v2350, %v2367
    %v2371 = vmul.f32 %v2351, %v2367
    %v2372 = vmul.f32 %v2352, %v2367
    %v2373 = vmul.f32 %v2353, %v2367
    %v2374 = vmul.f32 %v2354, %v2367
    %v2375 = vmul.f32 %v2355, %v2367
    %v2376 = vmul.f32 %v2356, %v2367
    %v2377 = vmul.f32 %v2357, %v2367
    %v2378 = vmul.f32 %v2358, %v2367
    %v2379 = vmul.f32 %v2359, %v2367
    %v2380 = vmul.f32 %v2360, %v2367
    %v2381 = vmul.f32 %v2361, %v2367
    %v2382 = vmul.f32 %v2362, %v2367
    %v2383 = vmul.f32 %v2363, %v2367
    %v2384 = vadd.f32 %v2332, %v2368
    %v2385 = vadd.f32 %v2333, %v2369
    %v2386 = vadd.f32 %v2334, %v2370
    %v2387 = vadd.f32 %v2335, %v2371
    %v2388 = vadd.f32 %v2336, %v2372
    %v2389 = vadd.f32 %v2337, %v2373
    %v2390 = vadd.f32 %v2338, %v2374
    %v2391 = vadd.f32 %v2339, %v2375
    %v2392 = vadd.f32 %v2340, %v2376
    %v2393 = vadd.f32 %v2341, %v2377
    %v2394 = vadd.f32 %v2342, %v2378
    %v2395 = vadd.f32 %v2343, %v2379
    %v2396 = vadd.f32 %v2344, %v2380
    %v2397 = vadd.f32 %v2345, %v2381
    %v2398 = vadd.f32 %v2346, %v2382
    %v2399 = vadd.f32 %v2347, %v2383
    %v2400 = vld [vmem:[%s1334 + $0x2] sm:$0xff]
    %v2401 = vld [vmem:[%s1334 + $0x12] sm:$0xff]
    %v2402 = vld [vmem:[%s1334 + $0x22] sm:$0xff]
    %v2403 = vld [vmem:[%s1334 + $0x32] sm:$0xff]
    %v2404 = vld [vmem:[%s1334 + $0x42] sm:$0xff]
    %v2405 = vld [vmem:[%s1334 + $0x52] sm:$0xff]
    %v2406 = vld [vmem:[%s1334 + $0x62] sm:$0xff]
    %v2407 = vld [vmem:[%s1334 + $0x72] sm:$0xff]
    %v2408 = vld [vmem:[%s1334 + $0xa2] sm:$0xff]
    %v2409 = vld [vmem:[%s1334 + $0xb2] sm:$0xff]
    %v2410 = vld [vmem:[%s1334 + $0xc2] sm:$0xff]
    %v2411 = vld [vmem:[%s1334 + $0xd2] sm:$0xff]
    %v2412 = vld [vmem:[%s1334 + $0xe2] sm:$0xff]
    %v2413 = vld [vmem:[%s1334 + $0xf2] sm:$0xff]
    %v2414 = vld [vmem:[%s1334 + $0x102] sm:$0xff]
    %v2415 = vld [vmem:[%s1334 + $0x112] sm:$0xff]
    %v2416 = vlaneseq
    %v2417 = vshrl.u32 %v2416, 7
    %v2418 = vsub.s32 0, %v2417
    %v2419 = vrot.slane %v1999, %v2418
    %v2420 = vmul.f32 %v2400, %v2419
    %v2421 = vmul.f32 %v2401, %v2419
    %v2422 = vmul.f32 %v2402, %v2419
    %v2423 = vmul.f32 %v2403, %v2419
    %v2424 = vmul.f32 %v2404, %v2419
    %v2425 = vmul.f32 %v2405, %v2419
    %v2426 = vmul.f32 %v2406, %v2419
    %v2427 = vmul.f32 %v2407, %v2419
    %v2428 = vmul.f32 %v2408, %v2419
    %v2429 = vmul.f32 %v2409, %v2419
    %v2430 = vmul.f32 %v2410, %v2419
    %v2431 = vmul.f32 %v2411, %v2419
    %v2432 = vmul.f32 %v2412, %v2419
    %v2433 = vmul.f32 %v2413, %v2419
    %v2434 = vmul.f32 %v2414, %v2419
    %v2435 = vmul.f32 %v2415, %v2419
    %v2436 = vadd.f32 %v2384, %v2420
    %v2437 = vadd.f32 %v2385, %v2421
    %v2438 = vadd.f32 %v2386, %v2422
    %v2439 = vadd.f32 %v2387, %v2423
    %v2440 = vadd.f32 %v2388, %v2424
    %v2441 = vadd.f32 %v2389, %v2425
    %v2442 = vadd.f32 %v2390, %v2426
    %v2443 = vadd.f32 %v2391, %v2427
    %v2444 = vadd.f32 %v2392, %v2428
    %v2445 = vadd.f32 %v2393, %v2429
    %v2446 = vadd.f32 %v2394, %v2430
    %v2447 = vadd.f32 %v2395, %v2431
    %v2448 = vadd.f32 %v2396, %v2432
    %v2449 = vadd.f32 %v2397, %v2433
    %v2450 = vadd.f32 %v2398, %v2434
    %v2451 = vadd.f32 %v2399, %v2435
    %v2452 = vadd.f32 %v2436, 1.0
    %v2453 = vadd.f32 %v2437, 1.0
    %v2454 = vadd.f32 %v2438, 1.0
    %v2455 = vadd.f32 %v2439, 1.0
    %v2456 = vadd.f32 %v2440, 1.0
    %v2457 = vadd.f32 %v2441, 1.0
    %v2458 = vadd.f32 %v2442, 1.0
    %v2459 = vadd.f32 %v2443, 1.0
    %v2460 = vadd.f32 %v2444, 1.0
    %v2461 = vadd.f32 %v2445, 1.0
    %v2462 = vadd.f32 %v2446, 1.0
    %v2463 = vadd.f32 %v2447, 1.0
    %v2464 = vadd.f32 %v2448, 1.0
    %v2465 = vadd.f32 %v2449, 1.0
    %v2466 = vadd.f32 %v2450, 1.0
    %v2467 = vadd.f32 %v2451, 1.0
    %vm2468 = vcmp.gt.f32.partialorder %v2452, 0.0
    %vm2469 = vcmp.gt.f32.partialorder %v2453, 0.0
    %vm2470 = vcmp.gt.f32.partialorder %v2454, 0.0
    %vm2471 = vcmp.gt.f32.partialorder %v2455, 0.0
    %vm2472 = vcmp.gt.f32.partialorder %v2456, 0.0
    %vm2473 = vcmp.gt.f32.partialorder %v2457, 0.0
    %vm2474 = vcmp.gt.f32.partialorder %v2458, 0.0
    %vm2475 = vcmp.gt.f32.partialorder %v2459, 0.0
    %vm2476 = vcmp.gt.f32.partialorder %v2460, 0.0
    %vm2477 = vcmp.gt.f32.partialorder %v2461, 0.0
    %vm2478 = vcmp.gt.f32.partialorder %v2462, 0.0
    %vm2479 = vcmp.gt.f32.partialorder %v2463, 0.0
    %vm2480 = vcmp.gt.f32.partialorder %v2464, 0.0
    %vm2481 = vcmp.gt.f32.partialorder %v2465, 0.0
    %vm2482 = vcmp.gt.f32.partialorder %v2466, 0.0
    %vm2483 = vcmp.gt.f32.partialorder %v2467, 0.0
    %v2484 = vmul.f32 %v2452, 0.3
    %v2485 = vmul.f32 %v2453, 0.3
    %v2486 = vmul.f32 %v2454, 0.3
    %v2487 = vmul.f32 %v2455, 0.3
    %v2488 = vmul.f32 %v2456, 0.3
    %v2489 = vmul.f32 %v2457, 0.3
    %v2490 = vmul.f32 %v2458, 0.3
    %v2491 = vmul.f32 %v2459, 0.3
    %v2492 = vmul.f32 %v2460, 0.3
    %v2493 = vmul.f32 %v2461, 0.3
    %v2494 = vmul.f32 %v2462, 0.3
    %v2495 = vmul.f32 %v2463, 0.3
    %v2496 = vmul.f32 %v2464, 0.3
    %v2497 = vmul.f32 %v2465, 0.3
    %v2498 = vmul.f32 %v2466, 0.3
    %v2499 = vmul.f32 %v2467, 0.3
    %v2500 = vsel %vm2468, %v2452, %v2484
    %v2501 = vsel %vm2469, %v2453, %v2485
    %v2502 = vsel %vm2470, %v2454, %v2486
    %v2503 = vsel %vm2471, %v2455, %v2487
    %v2504 = vsel %vm2472, %v2456, %v2488
    %v2505 = vsel %vm2473, %v2457, %v2489
    %v2506 = vsel %vm2474, %v2458, %v2490
    %v2507 = vsel %vm2475, %v2459, %v2491
    %v2508 = vsel %vm2476, %v2460, %v2492
    %v2509 = vsel %vm2477, %v2461, %v2493
    %v2510 = vsel %vm2478, %v2462, %v2494
    %v2511 = vsel %vm2479, %v2463, %v2495
    %v2512 = vsel %vm2480, %v2464, %v2496
    %v2513 = vsel %vm2481, %v2465, %v2497
    %v2514 = vsel %vm2482, %v2466, %v2498
    %v2515 = vsel %vm2483, %v2467, %v2499
    %v2516 = vmax.f32 %v2500, %v2501
    %v2517 = vmax.f32 %v2502, %v2503
    %v2518 = vmax.f32 %v2504, %v2505
    %v2519 = vmax.f32 %v2506, %v2507
    %v2520 = vmax.f32 %v2508, %v2509
    %v2521 = vmax.f32 %v2510, %v2511
    %v2522 = vmax.f32 %v2512, %v2513
    %v2523 = vmax.f32 %v2514, %v2515
    %v2532 = vrot.slane %v2516, 1
    %v2533 = vrot.slane %v2517, 1
    %v2534 = vrot.slane %v2518, 1
    %v2535 = vrot.slane %v2519, 1
    %v2536 = vrot.slane %v2520, 1
    %v2537 = vrot.slane %v2521, 1
    %v2538 = vrot.slane %v2522, 1
    %v2539 = vrot.slane %v2523, 1
    %v2548 = vmax.f32 %v2516, %v2532
    %v2549 = vmax.f32 %v2517, %v2533
    %v2550 = vmax.f32 %v2518, %v2534
    %v2551 = vmax.f32 %v2519, %v2535
    %v2552 = vmax.f32 %v2520, %v2536
    %v2553 = vmax.f32 %v2521, %v2537
    %v2554 = vmax.f32 %v2522, %v2538
    %v2555 = vmax.f32 %v2523, %v2539
    %v2564 = vrot.slane %v2548, 1
    %v2565 = vrot.slane %v2549, 1
    %v2566 = vrot.slane %v2550, 1
    %v2567 = vrot.slane %v2551, 1
    %v2568 = vrot.slane %v2552, 1
    %v2569 = vrot.slane %v2553, 1
    %v2570 = vrot.slane %v2554, 1
    %v2571 = vrot.slane %v2555, 1
    %v2580 = vrot.slane %v2548, 2
    %v2581 = vrot.slane %v2549, 2
    %v2582 = vrot.slane %v2550, 2
    %v2583 = vrot.slane %v2551, 2
    %v2584 = vrot.slane %v2552, 2
    %v2585 = vrot.slane %v2553, 2
    %v2586 = vrot.slane %v2554, 2
    %v2587 = vrot.slane %v2555, 2
    %v2596 = vrot.slane %v2548, 3
    %v2597 = vrot.slane %v2549, 3
    %v2598 = vrot.slane %v2550, 3
    %v2599 = vrot.slane %v2551, 3
    %v2600 = vrot.slane %v2552, 3
    %v2601 = vrot.slane %v2553, 3
    %v2602 = vrot.slane %v2554, 3
    %v2603 = vrot.slane %v2555, 3
    %vm2612 = vcmask 1040384
    %v2613 = vsel %vm2612, %v2548, %v2564
    %v2614 = vsel %vm2612, %v2549, %v2565
    %v2615 = vsel %vm2612, %v2550, %v2566
    %v2616 = vsel %vm2612, %v2551, %v2567
    %v2617 = vsel %vm2612, %v2552, %v2568
    %v2618 = vsel %vm2612, %v2553, %v2569
    %v2619 = vsel %vm2612, %v2554, %v2570
    %v2620 = vsel %vm2612, %v2555, %v2571
    %vm2621 = vcmask 1041408
    %v2622 = vsel %vm2621, %v2613, %v2580
    %v2623 = vsel %vm2621, %v2614, %v2581
    %v2624 = vsel %vm2621, %v2615, %v2582
    %v2625 = vsel %vm2621, %v2616, %v2583
    %v2626 = vsel %vm2621, %v2617, %v2584
    %v2627 = vsel %vm2621, %v2618, %v2585
    %v2628 = vsel %vm2621, %v2619, %v2586
    %v2629 = vsel %vm2621, %v2620, %v2587
    %vm2630 = vcmask 1042432
    %v2631 = vsel %vm2630, %v2622, %v2596
    %v2632 = vsel %vm2630, %v2623, %v2597
    %v2633 = vsel %vm2630, %v2624, %v2598
    %v2634 = vsel %vm2630, %v2625, %v2599
    %v2635 = vsel %vm2630, %v2626, %v2600
    %v2636 = vsel %vm2630, %v2627, %v2601
    %v2637 = vsel %vm2630, %v2628, %v2602
    %v2638 = vsel %vm2630, %v2629, %v2603
    %v2647 = vcombine.low %v2631, %v2632
    %v2648 = vcombine.low %v2633, %v2634
    %v2649 = vcombine.low %v2635, %v2636
    %v2650 = vcombine.low %v2637, %v2638
    %v2655 = vpack.c.bf16 %v2648, %v2647
    %v2656 = vpack.c.bf16 %v2650, %v2649
    %v2657 = vld [vmem:[%s1 + $0x70] sm:$0xf]
    %v2658 = vld [vmem:[%s1 + $0x74] sm:$0xf]
    %v2659 = vld [vmem:[%s1 + $0x78] sm:$0xf]
    %v2660 = vld [vmem:[%s1 + $0x7c] sm:$0xf]
    %v2661 = vld [vmem:[%s1 + $0x80] sm:$0xf]
    %v2662 = vld [vmem:[%s1 + $0x84] sm:$0xf]
    %v2663 = vld [vmem:[%s1 + $0x88] sm:$0xf]
    %v2664 = vld [vmem:[%s1 + $0x8c] sm:$0xf]
    %v2665 = vld [vmem:[%s1 + $0x90] sm:$0xf]
    %v2666 = vld [vmem:[%s1 + $0x94] sm:$0xf]
    %v2667 = vld [vmem:[%s1 + $0x98] sm:$0xf]
    %v2668 = vld [vmem:[%s1 + $0x9c] sm:$0xf]
    %v2669 = vld [vmem:[%s1 + $0xa0] sm:$0xf]
    %v2670 = vld [vmem:[%s1 + $0xa4] sm:$0xf]
    %v2671 = vld [vmem:[%s1 + $0xa8] sm:$0xf]
    %v2672 = vld [vmem:[%s1 + $0xac] sm:$0xf]
    %v2689 = vunpack.c.l.b16 %v2657
    %v2690 = vunpack.c.l.b16 %v2658
    %v2691 = vunpack.c.l.b16 %v2659
    %v2692 = vunpack.c.l.b16 %v2660
    %v2693 = vunpack.c.l.b16 %v2661
    %v2694 = vunpack.c.l.b16 %v2662
    %v2695 = vunpack.c.l.b16 %v2663
    %v2696 = vunpack.c.l.b16 %v2664
    %v2697 = vunpack.c.l.b16 %v2665
    %v2698 = vunpack.c.l.b16 %v2666
    %v2699 = vunpack.c.l.b16 %v2667
    %v2700 = vunpack.c.l.b16 %v2668
    %v2701 = vunpack.c.l.b16 %v2669
    %v2702 = vunpack.c.l.b16 %v2670
    %v2703 = vunpack.c.l.b16 %v2671
    %v2704 = vunpack.c.l.b16 %v2672
    %v2705 = vpack.c.b16 %v2690, %v2689
    %v2706 = vpack.c.b16 %v2692, %v2691
    %v2707 = vpack.c.b16 %v2694, %v2693
    %v2708 = vpack.c.b16 %v2696, %v2695
    %v2709 = vpack.c.b16 %v2698, %v2697
    %v2710 = vpack.c.b16 %v2700, %v2699
    %v2711 = vpack.c.b16 %v2702, %v2701
    %v2712 = vpack.c.b16 %v2704, %v2703
    %2721 = vmatprep.subr.bf16.mxu0 0
    %2722 = vmatpush1.bf16.msra.mxu0 %v2705
    %2723 = vmatprep.subr.bf16.mxu0 0
    %2724 = vmatpush1.bf16.msra.mxu0 %v2706
    %2725 = vmatprep.subr.bf16.mxu0 0
    %2726 = vmatpush1.bf16.msra.mxu0 %v2707
    %2727 = vmatprep.subr.bf16.mxu0 0
    %2728 = vmatpush1.bf16.msra.mxu0 %v2708
    %2729 = vmatprep.subr.bf16.mxu0 0
    %2730 = vmatpush1.bf16.msra.mxu0 %v2709
    %2731 = vmatprep.subr.bf16.mxu0 0
    %2732 = vmatpush1.bf16.msra.mxu0 %v2710
    %2733 = vmatprep.subr.bf16.mxu0 0
    %2734 = vmatpush1.bf16.msra.mxu0 %v2711
    %2735 = vmatprep.subr.bf16.mxu0 0
    %2736 = vmatpush1.bf16.msra.mxu0 %v2712
    %2737 = vmatprep.subr.bf16.mxu0 0
    %2738 = vmatpush1.bf16.msra.mxu0 0
    %2739 = vmatprep.subr.bf16.mxu0 0
    %2740 = vmatpush1.bf16.msra.mxu0 0
    %2741 = vmatprep.subr.bf16.mxu0 0
    %2742 = vmatpush1.bf16.msra.mxu0 0
    %2743 = vmatprep.subr.bf16.mxu0 0
    %2744 = vmatpush1.bf16.msra.mxu0 0
    %2745 = vmatprep.subr.bf16.mxu0 0
    %2746 = vmatpush1.bf16.msra.mxu0 0
    %2747 = vmatprep.subr.bf16.mxu0 0
    %2748 = vmatpush1.bf16.msra.mxu0 0
    %2749 = vmatprep.subr.bf16.mxu0 0
    %2750 = vmatpush1.bf16.msra.mxu0 0
    %2751 = vmatprep.subr.bf16.mxu0 0
    %2752 = vmatpush1.bf16.msra.mxu0 0
    %2753 = vmatprep.mubr.bf16.mxu0 0
    %2754 = vmatmul.mubr.bf16.gmra.mrb[0].mxu0 %v2655
    %v2755 = vpop.f32.mrb[0].mxu0
    %v2756 = vadd.f32 1.0, %v2755
    %v2757 = vpop.f32.mrb[0].mxu0
    %v2758 = vpop.f32.mrb[0].mxu0
    %v2759 = vadd.f32 1.0, %v2758
    %v2760 = vpop.f32.mrb[0].mxu0
    %2761 = vmatprep.mubr.bf16.mxu0 0
    %2762 = vmatmul.mubr.bf16.gmra.mrb[0].mxu0 %v2656
    %v2763 = vpop.f32.mrb[0].mxu0
    %v2764 = vadd.f32 1.0, %v2763
    %v2765 = vpop.f32.mrb[0].mxu0
    %v2766 = vpop.f32.mrb[0].mxu0
    %v2767 = vadd.f32 1.0, %v2766
    %v2768 = vpop.f32.mrb[0].mxu0
    %2769 = vdwg.mxu0
    %vm2770 = vcmp.gt.f32.partialorder %v2756, 0.0
    %vm2771 = vcmp.gt.f32.partialorder %v2759, 0.0
    %vm2772 = vcmp.gt.f32.partialorder %v2764, 0.0
    %vm2773 = vcmp.gt.f32.partialorder %v2767, 0.0
    %v2774 = vmul.f32 %v2756, 0.3
    %v2775 = vmul.f32 %v2759, 0.3
    %v2776 = vmul.f32 %v2764, 0.3
    %v2777 = vmul.f32 %v2767, 0.3
    %v2778 = vsel %vm2770, %v2756, %v2774
    %v2779 = vsel %vm2771, %v2759, %v2775
    %v2780 = vsel %vm2772, %v2764, %v2776
    %v2781 = vsel %vm2773, %v2767, %v2777
    %v2782 = vpack.c.bf16 %v2779, %v2778
    %v2783 = vpack.c.bf16 %v2781, %v2780
    %v2784 = vld [vmem:[%s1 + $0xb0] sm:$0xf]
    %v2785 = vld [vmem:[%s1 + $0xb4] sm:$0xf]
    %v2788 = vunpack.c.l.b16 %v2784
    %v2789 = vunpack.c.l.b16 %v2785
    %v2790 = vpack.c.b16 %v2789, %v2788
    %vm2792 = vcmask 130048
    %v2794 = vsel %vm2792, %v2782, 0
    %v2797 = vsel %vm2792, %v2783, 0
    %2799 = vmatprep.subr.bf16.mxu0 0
    %2800 = vmatpush1.bf16.msra.mxu0 %v2790
    %2801 = vmatprep.subr.bf16.mxu0 0
    %2802 = vmatpush1.bf16.msra.mxu0 0
    %2803 = vmatprep.subr.bf16.mxu0 0
    %2804 = vmatpush1.bf16.msra.mxu0 0
    %2805 = vmatprep.subr.bf16.mxu0 0
    %2806 = vmatpush1.bf16.msra.mxu0 0
    %2807 = vmatprep.subr.bf16.mxu0 0
    %2808 = vmatpush1.bf16.msra.mxu0 0
    %2809 = vmatprep.subr.bf16.mxu0 0
    %2810 = vmatpush1.bf16.msra.mxu0 0
    %2811 = vmatprep.subr.bf16.mxu0 0
    %2812 = vmatpush1.bf16.msra.mxu0 0
    %2813 = vmatprep.subr.bf16.mxu0 0
    %2814 = vmatpush1.bf16.msra.mxu0 0
    %2815 = vmatprep.subr.bf16.mxu0 0
    %2816 = vmatpush1.bf16.msra.mxu0 0
    %2817 = vmatprep.subr.bf16.mxu0 0
    %2818 = vmatpush1.bf16.msra.mxu0 0
    %2819 = vmatprep.subr.bf16.mxu0 0
    %2820 = vmatpush1.bf16.msra.mxu0 0
    %2821 = vmatprep.subr.bf16.mxu0 0
    %2822 = vmatpush1.bf16.msra.mxu0 0
    %2823 = vmatprep.subr.bf16.mxu0 0
    %2824 = vmatpush1.bf16.msra.mxu0 0
    %2825 = vmatprep.subr.bf16.mxu0 0
    %2826 = vmatpush1.bf16.msra.mxu0 0
    %2827 = vmatprep.subr.bf16.mxu0 0
    %2828 = vmatpush1.bf16.msra.mxu0 0
    %2829 = vmatprep.subr.bf16.mxu0 0
    %2830 = vmatpush1.bf16.msra.mxu0 0
    %2831 = vmatprep.mubr.bf16.mxu0 0
    %2832 = vmatmul.mubr.bf16.gmra.mrb[0].mxu0 %v2794
    %v2833 = vpop.f32.mrb[0].mxu0
    %v2834 = vadd.f32 1.0, %v2833
    %v2835 = vpop.f32.mrb[0].mxu0
    %v2836 = vpop.f32.mrb[0].mxu0
    %v2837 = vadd.f32 1.0, %v2836
    %v2838 = vpop.f32.mrb[0].mxu0
    %2839 = vmatprep.mubr.bf16.mxu0 0
    %2840 = vmatmul.mubr.bf16.gmra.mrb[0].mxu0 %v2797
    %v2841 = vpop.f32.mrb[0].mxu0
    %v2842 = vadd.f32 1.0, %v2841
    %v2843 = vpop.f32.mrb[0].mxu0
    %v2844 = vpop.f32.mrb[0].mxu0
    %v2845 = vadd.f32 1.0, %v2844
    %v2846 = vpop.f32.mrb[0].mxu0
    %2847 = vdwg.mxu0
    %vm2848 = vcmp.gt.f32.partialorder %v2834, 0.0
    %vm2849 = vcmp.gt.f32.partialorder %v2837, 0.0
    %vm2850 = vcmp.gt.f32.partialorder %v2842, 0.0
    %vm2851 = vcmp.gt.f32.partialorder %v2845, 0.0
    %v2852 = vmul.f32 %v2834, 0.3
    %v2853 = vmul.f32 %v2837, 0.3
    %v2854 = vmul.f32 %v2842, 0.3
    %v2855 = vmul.f32 %v2845, 0.3
    %v2856 = vsel %vm2848, %v2834, %v2852
    %v2857 = vsel %vm2849, %v2837, %v2853
    %v2858 = vsel %vm2850, %v2842, %v2854
    %v2859 = vsel %vm2851, %v2845, %v2855
    %v2864 = vcombine.high %v2856, %v2856
    %v2865 = vcombine.high %v2857, %v2857
    %v2866 = vcombine.high %v2858, %v2858
    %v2867 = vcombine.high %v2859, %v2859
    %s2872 = scalar_lea.vmem [#allocation3], 8
    %2873 = vst.msk [vmem:[%s2872 + $0x1] sm:$0xf] %vm69, %v2856
    %2874 = vst.msk [vmem:[%s2872 + $0x9] sm:$0xf] %vm69, %v2864
    %2875 = vst.msk [vmem:[%s2872 + $0x11] sm:$0xf] %vm69, %v2857
    %2876 = vst.msk [vmem:[%s2872 + $0x19] sm:$0xf] %vm69, %v2865
    %2877 = vst.msk [vmem:[%s2872 + $0x31] sm:$0xf] %vm69, %v2858
    %2878 = vst.msk [vmem:[%s2872 + $0x39] sm:$0xf] %vm69, %v2866
    %2879 = vst.msk [vmem:[%s2872 + $0x41] sm:$0xf] %vm69, %v2859
    %2880 = vst.msk [vmem:[%s2872 + $0x49] sm:$0xf] %vm69, %v2867
    %s2881 = scalar_lea.vmem %s2, 32
    %v2882 = vld [vmem:[%s2881] sm:$0xff]
    %v2883 = vld [vmem:[%s2881 + $0x8] sm:$0x1]
    %v2884 = vld [vmem:[#allocation3] sm:$0xf]
    %v2885 = vld [vmem:[#allocation3 + $0x8] sm:$0xf]
    %v2886 = vld [vmem:[#allocation3 + $0x10] sm:$0xf]
    %v2887 = vld [vmem:[#allocation3 + $0x18] sm:$0xf]
    %v2888 = vld [vmem:[#allocation3 + $0x30] sm:$0xf]
    %v2889 = vld [vmem:[#allocation3 + $0x38] sm:$0xf]
    %v2890 = vld [vmem:[#allocation3 + $0x40] sm:$0xf]
    %v2891 = vld [vmem:[#allocation3 + $0x48] sm:$0xf]
    %v2892 = vlaneseq
    %v2893 = vshrl.u32 %v2892, 7
    %v2894 = vsub.s32 0, %v2893
    %v2895 = vrot.slane %v2882, %v2894
    %v2896 = vmul.f32 %v2884, %v2895
    %v2897 = vmul.f32 %v2885, %v2895
    %v2898 = vmul.f32 %v2886, %v2895
    %v2899 = vmul.f32 %v2887, %v2895
    %v2900 = vmul.f32 %v2888, %v2895
    %v2901 = vmul.f32 %v2889, %v2895
    %v2902 = vmul.f32 %v2890, %v2895
    %v2903 = vmul.f32 %v2891, %v2895
    %v2904 = vld [vmem:[#allocation3 + $0x1] sm:$0xf]
    %v2905 = vld [vmem:[#allocation3 + $0x9] sm:$0xf]
    %v2906 = vld [vmem:[#allocation3 + $0x11] sm:$0xf]
    %v2907 = vld [vmem:[#allocation3 + $0x19] sm:$0xf]
    %v2908 = vld [vmem:[#allocation3 + $0x31] sm:$0xf]
    %v2909 = vld [vmem:[#allocation3 + $0x39] sm:$0xf]
    %v2910 = vld [vmem:[#allocation3 + $0x41] sm:$0xf]
    %v2911 = vld [vmem:[#allocation3 + $0x49] sm:$0xf]
    %v2912 = vlaneseq
    %v2913 = vshrl.u32 %v2912, 7
    %v2914 = vsub.s32 1, %v2913
    %v2915 = vrot.slane %v2882, %v2914
    %v2916 = vmul.f32 %v2904, %v2915
    %v2917 = vmul.f32 %v2905, %v2915
    %v2918 = vmul.f32 %v2906, %v2915
    %v2919 = vmul.f32 %v2907, %v2915
    %v2920 = vmul.f32 %v2908, %v2915
    %v2921 = vmul.f32 %v2909, %v2915
    %v2922 = vmul.f32 %v2910, %v2915
    %v2923 = vmul.f32 %v2911, %v2915
    %v2924 = vadd.f32 %v2896, %v2916
    %v2925 = vadd.f32 %v2897, %v2917
    %v2926 = vadd.f32 %v2898, %v2918
    %v2927 = vadd.f32 %v2899, %v2919
    %v2928 = vadd.f32 %v2900, %v2920
    %v2929 = vadd.f32 %v2901, %v2921
    %v2930 = vadd.f32 %v2902, %v2922
    %v2931 = vadd.f32 %v2903, %v2923
    %v2932 = vld [vmem:[#allocation3 + $0x2] sm:$0xf]
    %v2933 = vld [vmem:[#allocation3 + $0xa] sm:$0xf]
    %v2934 = vld [vmem:[#allocation3 + $0x12] sm:$0xf]
    %v2935 = vld [vmem:[#allocation3 + $0x1a] sm:$0xf]
    %v2936 = vld [vmem:[#allocation3 + $0x32] sm:$0xf]
    %v2937 = vld [vmem:[#allocation3 + $0x3a] sm:$0xf]
    %v2938 = vld [vmem:[#allocation3 + $0x42] sm:$0xf]
    %v2939 = vld [vmem:[#allocation3 + $0x4a] sm:$0xf]
    %v2940 = vlaneseq
    %v2941 = vshrl.u32 %v2940, 7
    %v2942 = vsub.s32 2, %v2941
    %v2943 = vrot.slane %v2882, %v2942
    %v2944 = vmul.f32 %v2932, %v2943
    %v2945 = vmul.f32 %v2933, %v2943
    %v2946 = vmul.f32 %v2934, %v2943
    %v2947 = vmul.f32 %v2935, %v2943
    %v2948 = vmul.f32 %v2936, %v2943
    %v2949 = vmul.f32 %v2937, %v2943
    %v2950 = vmul.f32 %v2938, %v2943
    %v2951 = vmul.f32 %v2939, %v2943
    %v2952 = vadd.f32 %v2924, %v2944
    %v2953 = vadd.f32 %v2925, %v2945
    %v2954 = vadd.f32 %v2926, %v2946
    %v2955 = vadd.f32 %v2927, %v2947
    %v2956 = vadd.f32 %v2928, %v2948
    %v2957 = vadd.f32 %v2929, %v2949
    %v2958 = vadd.f32 %v2930, %v2950
    %v2959 = vadd.f32 %v2931, %v2951
    %v2960 = vld [vmem:[%s2872] sm:$0xf]
    %v2961 = vld [vmem:[%s2872 + $0x8] sm:$0xf]
    %v2962 = vld [vmem:[%s2872 + $0x10] sm:$0xf]
    %v2963 = vld [vmem:[%s2872 + $0x18] sm:$0xf]
    %v2964 = vld [vmem:[%s2872 + $0x30] sm:$0xf]
    %v2965 = vld [vmem:[%s2872 + $0x38] sm:$0xf]
    %v2966 = vld [vmem:[%s2872 + $0x40] sm:$0xf]
    %v2967 = vld [vmem:[%s2872 + $0x48] sm:$0xf]
    %v2968 = vlaneseq
    %v2969 = vshrl.u32 %v2968, 7
    %v2970 = vsub.s32 3, %v2969
    %v2971 = vrot.slane %v2882, %v2970
    %v2972 = vmul.f32 %v2960, %v2971
    %v2973 = vmul.f32 %v2961, %v2971
    %v2974 = vmul.f32 %v2962, %v2971
    %v2975 = vmul.f32 %v2963, %v2971
    %v2976 = vmul.f32 %v2964, %v2971
    %v2977 = vmul.f32 %v2965, %v2971
    %v2978 = vmul.f32 %v2966, %v2971
    %v2979 = vmul.f32 %v2967, %v2971
    %v2980 = vadd.f32 %v2952, %v2972
    %v2981 = vadd.f32 %v2953, %v2973
    %v2982 = vadd.f32 %v2954, %v2974
    %v2983 = vadd.f32 %v2955, %v2975
    %v2984 = vadd.f32 %v2956, %v2976
    %v2985 = vadd.f32 %v2957, %v2977
    %v2986 = vadd.f32 %v2958, %v2978
    %v2987 = vadd.f32 %v2959, %v2979
    %v2988 = vld [vmem:[%s2872 + $0x1] sm:$0xf]
    %v2989 = vld [vmem:[%s2872 + $0x9] sm:$0xf]
    %v2990 = vld [vmem:[%s2872 + $0x11] sm:$0xf]
    %v2991 = vld [vmem:[%s2872 + $0x19] sm:$0xf]
    %v2992 = vld [vmem:[%s2872 + $0x31] sm:$0xf]
    %v2993 = vld [vmem:[%s2872 + $0x39] sm:$0xf]
    %v2994 = vld [vmem:[%s2872 + $0x41] sm:$0xf]
    %v2995 = vld [vmem:[%s2872 + $0x49] sm:$0xf]
    %v2996 = vlaneseq
    %v2997 = vshrl.u32 %v2996, 7
    %v2998 = vsub.s32 4, %v2997
    %v2999 = vrot.slane %v2882, %v2998
    %v3000 = vmul.f32 %v2988, %v2999
    %v3001 = vmul.f32 %v2989, %v2999
    %v3002 = vmul.f32 %v2990, %v2999
    %v3003 = vmul.f32 %v2991, %v2999
    %v3004 = vmul.f32 %v2992, %v2999
    %v3005 = vmul.f32 %v2993, %v2999
    %v3006 = vmul.f32 %v2994, %v2999
    %v3007 = vmul.f32 %v2995, %v2999
    %v3008 = vadd.f32 %v2980, %v3000
    %v3009 = vadd.f32 %v2981, %v3001
    %v3010 = vadd.f32 %v2982, %v3002
    %v3011 = vadd.f32 %v2983, %v3003
    %v3012 = vadd.f32 %v2984, %v3004
    %v3013 = vadd.f32 %v2985, %v3005
    %v3014 = vadd.f32 %v2986, %v3006
    %v3015 = vadd.f32 %v2987, %v3007
    %v3016 = vld [vmem:[%s2872 + $0x2] sm:$0xf]
    %v3017 = vld [vmem:[%s2872 + $0xa] sm:$0xf]
    %v3018 = vld [vmem:[%s2872 + $0x12] sm:$0xf]
    %v3019 = vld [vmem:[%s2872 + $0x1a] sm:$0xf]
    %v3020 = vld [vmem:[%s2872 + $0x32] sm:$0xf]
    %v3021 = vld [vmem:[%s2872 + $0x3a] sm:$0xf]
    %v3022 = vld [vmem:[%s2872 + $0x42] sm:$0xf]
    %v3023 = vld [vmem:[%s2872 + $0x4a] sm:$0xf]
    %v3024 = vlaneseq
    %v3025 = vshrl.u32 %v3024, 7
    %v3026 = vsub.s32 5, %v3025
    %v3027 = vrot.slane %v2882, %v3026
    %v3028 = vmul.f32 %v3016, %v3027
    %v3029 = vmul.f32 %v3017, %v3027
    %v3030 = vmul.f32 %v3018, %v3027
    %v3031 = vmul.f32 %v3019, %v3027
    %v3032 = vmul.f32 %v3020, %v3027
    %v3033 = vmul.f32 %v3021, %v3027
    %v3034 = vmul.f32 %v3022, %v3027
    %v3035 = vmul.f32 %v3023, %v3027
    %v3036 = vadd.f32 %v3008, %v3028
    %v3037 = vadd.f32 %v3009, %v3029
    %v3038 = vadd.f32 %v3010, %v3030
    %v3039 = vadd.f32 %v3011, %v3031
    %v3040 = vadd.f32 %v3012, %v3032
    %v3041 = vadd.f32 %v3013, %v3033
    %v3042 = vadd.f32 %v3014, %v3034
    %v3043 = vadd.f32 %v3015, %v3035
    %s3044 = scalar_lea.vmem [#allocation3], 16
    %v3045 = vld [vmem:[%s3044] sm:$0xf]
    %v3046 = vld [vmem:[%s3044 + $0x8] sm:$0xf]
    %v3047 = vld [vmem:[%s3044 + $0x10] sm:$0xf]
    %v3048 = vld [vmem:[%s3044 + $0x18] sm:$0xf]
    %v3049 = vld [vmem:[%s3044 + $0x30] sm:$0xf]
    %v3050 = vld [vmem:[%s3044 + $0x38] sm:$0xf]
    %v3051 = vld [vmem:[%s3044 + $0x40] sm:$0xf]
    %v3052 = vld [vmem:[%s3044 + $0x48] sm:$0xf]
    %v3053 = vlaneseq
    %v3054 = vshrl.u32 %v3053, 7
    %v3055 = vsub.s32 6, %v3054
    %v3056 = vrot.slane %v2882, %v3055
    %v3057 = vmul.f32 %v3045, %v3056
    %v3058 = vmul.f32 %v3046, %v3056
    %v3059 = vmul.f32 %v3047, %v3056
    %v3060 = vmul.f32 %v3048, %v3056
    %v3061 = vmul.f32 %v3049, %v3056
    %v3062 = vmul.f32 %v3050, %v3056
    %v3063 = vmul.f32 %v3051, %v3056
    %v3064 = vmul.f32 %v3052, %v3056
    %v3065 = vadd.f32 %v3036, %v3057
    %v3066 = vadd.f32 %v3037, %v3058
    %v3067 = vadd.f32 %v3038, %v3059
    %v3068 = vadd.f32 %v3039, %v3060
    %v3069 = vadd.f32 %v3040, %v3061
    %v3070 = vadd.f32 %v3041, %v3062
    %v3071 = vadd.f32 %v3042, %v3063
    %v3072 = vadd.f32 %v3043, %v3064
    %v3073 = vld [vmem:[%s3044 + $0x1] sm:$0xf]
    %v3074 = vld [vmem:[%s3044 + $0x9] sm:$0xf]
    %v3075 = vld [vmem:[%s3044 + $0x11] sm:$0xf]
    %v3076 = vld [vmem:[%s3044 + $0x19] sm:$0xf]
    %v3077 = vld [vmem:[%s3044 + $0x31] sm:$0xf]
    %v3078 = vld [vmem:[%s3044 + $0x39] sm:$0xf]
    %v3079 = vld [vmem:[%s3044 + $0x41] sm:$0xf]
    %v3080 = vld [vmem:[%s3044 + $0x49] sm:$0xf]
    %v3081 = vlaneseq
    %v3082 = vshrl.u32 %v3081, 7
    %v3083 = vsub.s32 7, %v3082
    %v3084 = vrot.slane %v2882, %v3083
    %v3085 = vmul.f32 %v3073, %v3084
    %v3086 = vmul.f32 %v3074, %v3084
    %v3087 = vmul.f32 %v3075, %v3084
    %v3088 = vmul.f32 %v3076, %v3084
    %v3089 = vmul.f32 %v3077, %v3084
    %v3090 = vmul.f32 %v3078, %v3084
    %v3091 = vmul.f32 %v3079, %v3084
    %v3092 = vmul.f32 %v3080, %v3084
    %v3093 = vadd.f32 %v3065, %v3085
    %v3094 = vadd.f32 %v3066, %v3086
    %v3095 = vadd.f32 %v3067, %v3087
    %v3096 = vadd.f32 %v3068, %v3088
    %v3097 = vadd.f32 %v3069, %v3089
    %v3098 = vadd.f32 %v3070, %v3090
    %v3099 = vadd.f32 %v3071, %v3091
    %v3100 = vadd.f32 %v3072, %v3092
    %v3101 = vld [vmem:[%s3044 + $0x2] sm:$0xf]
    %v3102 = vld [vmem:[%s3044 + $0xa] sm:$0xf]
    %v3103 = vld [vmem:[%s3044 + $0x12] sm:$0xf]
    %v3104 = vld [vmem:[%s3044 + $0x1a] sm:$0xf]
    %v3105 = vld [vmem:[%s3044 + $0x32] sm:$0xf]
    %v3106 = vld [vmem:[%s3044 + $0x3a] sm:$0xf]
    %v3107 = vld [vmem:[%s3044 + $0x42] sm:$0xf]
    %v3108 = vld [vmem:[%s3044 + $0x4a] sm:$0xf]
    %v3109 = vlaneseq
    %v3110 = vshrl.u32 %v3109, 7
    %v3111 = vsub.s32 0, %v3110
    %v3112 = vrot.slane %v2883, %v3111
    %v3113 = vmul.f32 %v3101, %v3112
    %v3114 = vmul.f32 %v3102, %v3112
    %v3115 = vmul.f32 %v3103, %v3112
    %v3116 = vmul.f32 %v3104, %v3112
    %v3117 = vmul.f32 %v3105, %v3112
    %v3118 = vmul.f32 %v3106, %v3112
    %v3119 = vmul.f32 %v3107, %v3112
    %v3120 = vmul.f32 %v3108, %v3112
    %v3121 = vadd.f32 %v3093, %v3113
    %v3122 = vadd.f32 %v3094, %v3114
    %v3123 = vadd.f32 %v3095, %v3115
    %v3124 = vadd.f32 %v3096, %v3116
    %v3125 = vadd.f32 %v3097, %v3117
    %v3126 = vadd.f32 %v3098, %v3118
    %v3127 = vadd.f32 %v3099, %v3119
    %v3128 = vadd.f32 %v3100, %v3120
    %v3129 = vadd.f32 %v3121, 1.0
    %v3130 = vadd.f32 %v3122, 1.0
    %v3131 = vadd.f32 %v3123, 1.0
    %v3132 = vadd.f32 %v3124, 1.0
    %v3133 = vadd.f32 %v3125, 1.0
    %v3134 = vadd.f32 %v3126, 1.0
    %v3135 = vadd.f32 %v3127, 1.0
    %v3136 = vadd.f32 %v3128, 1.0
    %vm3137 = vcmp.gt.f32.partialorder %v3129, 0.0
    %vm3138 = vcmp.gt.f32.partialorder %v3130, 0.0
    %vm3139 = vcmp.gt.f32.partialorder %v3131, 0.0
    %vm3140 = vcmp.gt.f32.partialorder %v3132, 0.0
    %vm3141 = vcmp.gt.f32.partialorder %v3133, 0.0
    %vm3142 = vcmp.gt.f32.partialorder %v3134, 0.0
    %vm3143 = vcmp.gt.f32.partialorder %v3135, 0.0
    %vm3144 = vcmp.gt.f32.partialorder %v3136, 0.0
    %v3145 = vmul.f32 %v3129, 0.3
    %v3146 = vmul.f32 %v3130, 0.3
    %v3147 = vmul.f32 %v3131, 0.3
    %v3148 = vmul.f32 %v3132, 0.3
    %v3149 = vmul.f32 %v3133, 0.3
    %v3150 = vmul.f32 %v3134, 0.3
    %v3151 = vmul.f32 %v3135, 0.3
    %v3152 = vmul.f32 %v3136, 0.3
    %v3153 = vsel %vm3137, %v3129, %v3145
    %v3154 = vsel %vm3138, %v3130, %v3146
    %v3155 = vsel %vm3139, %v3131, %v3147
    %v3156 = vsel %vm3140, %v3132, %v3148
    %v3157 = vsel %vm3141, %v3133, %v3149
    %v3158 = vsel %vm3142, %v3134, %v3150
    %v3159 = vsel %vm3143, %v3135, %v3151
    %v3160 = vsel %vm3144, %v3136, %v3152
    %v3169 = vcombine.low %v3153, %v3154
    %v3170 = vcombine.low %v3155, %v3156
    %v3171 = vcombine.low %v3157, %v3158
    %v3172 = vcombine.low %v3159, %v3160
    %v3177 = vpack.c.bf16 %v3170, %v3169
    %v3178 = vpack.c.bf16 %v3172, %v3171
    %v3179 = vld [vmem:[%s1 + $0xb8] sm:$0xf]
    %v3180 = vld [vmem:[%s1 + $0xbc] sm:$0xf]
    %v3181 = vld [vmem:[%s1 + $0xc0] sm:$0xf]
    %v3182 = vld [vmem:[%s1 + $0xc4] sm:$0xf]
    %v3183 = vld [vmem:[%s1 + $0xc8] sm:$0xf]
    %v3184 = vld [vmem:[%s1 + $0xcc] sm:$0xf]
    %v3185 = vld [vmem:[%s1 + $0xd0] sm:$0xf]
    %v3186 = vld [vmem:[%s1 + $0xd4] sm:$0xf]
    %v3195 = vunpack.c.l.b16 %v3179
    %v3196 = vunpack.c.l.b16 %v3180
    %v3197 = vunpack.c.l.b16 %v3181
    %v3198 = vunpack.c.l.b16 %v3182
    %v3199 = vunpack.c.l.b16 %v3183
    %v3200 = vunpack.c.l.b16 %v3184
    %v3201 = vunpack.c.l.b16 %v3185
    %v3202 = vunpack.c.l.b16 %v3186
    %v3203 = vpack.c.b16 %v3196, %v3195
    %v3204 = vpack.c.b16 %v3198, %v3197
    %v3205 = vpack.c.b16 %v3200, %v3199
    %v3206 = vpack.c.b16 %v3202, %v3201
    %vm3211 = vcmask 523264
    %v3213 = vsel %vm3211, %v3177, 0
    %v3216 = vsel %vm3211, %v3178, 0
    %3218 = vmatprep.subr.bf16.mxu0 0
    %3219 = vmatpush1.bf16.msra.mxu0 %v3203
    %3220 = vmatprep.subr.bf16.mxu0 0
    %3221 = vmatpush1.bf16.msra.mxu0 %v3204
    %3222 = vmatprep.subr.bf16.mxu0 0
    %3223 = vmatpush1.bf16.msra.mxu0 %v3205
    %3224 = vmatprep.subr.bf16.mxu0 0
    %3225 = vmatpush1.bf16.msra.mxu0 %v3206
    %3226 = vmatprep.subr.bf16.mxu0 0
    %3227 = vmatpush1.bf16.msra.mxu0 0
    %3228 = vmatprep.subr.bf16.mxu0 0
    %3229 = vmatpush1.bf16.msra.mxu0 0
    %3230 = vmatprep.subr.bf16.mxu0 0
    %3231 = vmatpush1.bf16.msra.mxu0 0
    %3232 = vmatprep.subr.bf16.mxu0 0
    %3233 = vmatpush1.bf16.msra.mxu0 0
    %3234 = vmatprep.subr.bf16.mxu0 0
    %3235 = vmatpush1.bf16.msra.mxu0 0
    %3236 = vmatprep.subr.bf16.mxu0 0
    %3237 = vmatpush1.bf16.msra.mxu0 0
    %3238 = vmatprep.subr.bf16.mxu0 0
    %3239 = vmatpush1.bf16.msra.mxu0 0
    %3240 = vmatprep.subr.bf16.mxu0 0
    %3241 = vmatpush1.bf16.msra.mxu0 0
    %3242 = vmatprep.subr.bf16.mxu0 0
    %3243 = vmatpush1.bf16.msra.mxu0 0
    %3244 = vmatprep.subr.bf16.mxu0 0
    %3245 = vmatpush1.bf16.msra.mxu0 0
    %3246 = vmatprep.subr.bf16.mxu0 0
    %3247 = vmatpush1.bf16.msra.mxu0 0
    %3248 = vmatprep.subr.bf16.mxu0 0
    %3249 = vmatpush1.bf16.msra.mxu0 0
    %3250 = vmatprep.mubr.bf16.mxu0 0
    %3251 = vmatmul.mubr.bf16.gmra.mrb[0].mxu0 %v3213
    %v3252 = vpop.f32.mrb[0].mxu0
    %v3253 = vadd.f32 1.0, %v3252
    %v3254 = vpop.f32.mrb[0].mxu0
    %v3255 = vpop.f32.mrb[0].mxu0
    %v3256 = vadd.f32 1.0, %v3255
    %v3257 = vpop.f32.mrb[0].mxu0
    %3258 = vmatprep.mubr.bf16.mxu0 0
    %3259 = vmatmul.mubr.bf16.gmra.mrb[0].mxu0 %v3216
    %v3260 = vpop.f32.mrb[0].mxu0
    %v3261 = vadd.f32 1.0, %v3260
    %v3262 = vpop.f32.mrb[0].mxu0
    %v3263 = vpop.f32.mrb[0].mxu0
    %v3264 = vadd.f32 1.0, %v3263
    %v3265 = vpop.f32.mrb[0].mxu0
    %3266 = vdwg.mxu0
    %vm3267 = vcmp.gt.f32.partialorder %v3253, 0.0
    %vm3268 = vcmp.gt.f32.partialorder %v3256, 0.0
    %vm3269 = vcmp.gt.f32.partialorder %v3261, 0.0
    %vm3270 = vcmp.gt.f32.partialorder %v3264, 0.0
    %v3271 = vmul.f32 %v3253, 0.3
    %v3272 = vmul.f32 %v3256, 0.3
    %v3273 = vmul.f32 %v3261, 0.3
    %v3274 = vmul.f32 %v3264, 0.3
    %v3275 = vsel %vm3267, %v3253, %v3271
    %v3276 = vsel %vm3268, %v3256, %v3272
    %v3277 = vsel %vm3269, %v3261, %v3273
    %v3278 = vsel %vm3270, %v3264, %v3274
    %v3279 = vadd.f32 %v3275, %v2778
    %v3280 = vadd.f32 %v3276, %v2779
    %v3281 = vadd.f32 %v3277, %v2780
    %v3282 = vadd.f32 %v3278, %v2781
    %v3283 = vpack.c.bf16 %v3280, %v3279
    %v3284 = vpack.c.bf16 %v3282, %v3281
    %v3285 = vld [vmem:[%s1 + $0xd8] sm:$0xf]
    %v3286 = vld [vmem:[%s1 + $0xdc] sm:$0xf]
    %v3289 = vunpack.c.l.b16 %v3285
    %v3290 = vunpack.c.l.b16 %v3286
    %v3291 = vpack.c.b16 %v3290, %v3289
    %v3294 = vsel %vm2792, %v3283, 0
    %v3297 = vsel %vm2792, %v3284, 0
    %3299 = vmatprep.subr.bf16.mxu0 0
    %3300 = vmatpush1.bf16.msra.mxu0 %v3291
    %3301 = vmatprep.subr.bf16.mxu0 0
    %3302 = vmatpush1.bf16.msra.mxu0 0
    %3303 = vmatprep.subr.bf16.mxu0 0
    %3304 = vmatpush1.bf16.msra.mxu0 0
    %3305 = vmatprep.subr.bf16.mxu0 0
    %3306 = vmatpush1.bf16.msra.mxu0 0
    %3307 = vmatprep.subr.bf16.mxu0 0
    %3308 = vmatpush1.bf16.msra.mxu0 0
    %3309 = vmatprep.subr.bf16.mxu0 0
    %3310 = vmatpush1.bf16.msra.mxu0 0
    %3311 = vmatprep.subr.bf16.mxu0 0
    %3312 = vmatpush1.bf16.msra.mxu0 0
    %3313 = vmatprep.subr.bf16.mxu0 0
    %3314 = vmatpush1.bf16.msra.mxu0 0
    %3315 = vmatprep.subr.bf16.mxu0 0
    %3316 = vmatpush1.bf16.msra.mxu0 0
    %3317 = vmatprep.subr.bf16.mxu0 0
    %3318 = vmatpush1.bf16.msra.mxu0 0
    %3319 = vmatprep.subr.bf16.mxu0 0
    %3320 = vmatpush1.bf16.msra.mxu0 0
    %3321 = vmatprep.subr.bf16.mxu0 0
    %3322 = vmatpush1.bf16.msra.mxu0 0
    %3323 = vmatprep.subr.bf16.mxu0 0
    %3324 = vmatpush1.bf16.msra.mxu0 0
    %3325 = vmatprep.subr.bf16.mxu0 0
    %3326 = vmatpush1.bf16.msra.mxu0 0
    %3327 = vmatprep.subr.bf16.mxu0 0
    %3328 = vmatpush1.bf16.msra.mxu0 0
    %3329 = vmatprep.subr.bf16.mxu0 0
    %3330 = vmatpush1.bf16.msra.mxu0 0
    %3331 = vmatprep.mubr.bf16.mxu0 0
    %3332 = vmatmul.mubr.bf16.gmra.mrb[0].mxu0 %v3294
    %v3333 = vpop.f32.mrb[0].mxu0
    %v3334 = vadd.f32 1.0, %v3333
    %v3335 = vpop.f32.mrb[0].mxu0
    %v3336 = vpop.f32.mrb[0].mxu0
    %v3337 = vadd.f32 1.0, %v3336
    %v3338 = vpop.f32.mrb[0].mxu0
    %3339 = vmatprep.mubr.bf16.mxu0 0
    %3340 = vmatmul.mubr.bf16.gmra.mrb[0].mxu0 %v3297
    %v3341 = vpop.f32.mrb[0].mxu0
    %v3342 = vadd.f32 1.0, %v3341
    %v3343 = vpop.f32.mrb[0].mxu0
    %v3344 = vpop.f32.mrb[0].mxu0
    %v3345 = vadd.f32 1.0, %v3344
    %v3346 = vpop.f32.mrb[0].mxu0
    %3347 = vdwg.mxu0
    %vm3348 = vcmp.gt.f32.partialorder %v3334, 0.0
    %vm3349 = vcmp.gt.f32.partialorder %v3337, 0.0
    %vm3350 = vcmp.gt.f32.partialorder %v3342, 0.0
    %vm3351 = vcmp.gt.f32.partialorder %v3345, 0.0
    %v3352 = vmul.f32 %v3334, 0.3
    %v3353 = vmul.f32 %v3337, 0.3
    %v3354 = vmul.f32 %v3342, 0.3
    %v3355 = vmul.f32 %v3345, 0.3
    %v3356 = vsel %vm3348, %v3334, %v3352
    %v3357 = vsel %vm3349, %v3337, %v3353
    %v3358 = vsel %vm3350, %v3342, %v3354
    %v3359 = vsel %vm3351, %v3345, %v3355
    %v3364 = vcombine.high %v3356, %v3356
    %v3365 = vcombine.high %v3357, %v3357
    %v3366 = vcombine.high %v3358, %v3358
    %v3367 = vcombine.high %v3359, %v3359
    %3372 = vst.msk [vmem:[%s2872 + $0x1] sm:$0xf] %vm69, %v3356
    %3373 = vst.msk [vmem:[%s2872 + $0x9] sm:$0xf] %vm69, %v3364
    %3374 = vst.msk [vmem:[%s2872 + $0x11] sm:$0xf] %vm69, %v3357
    %3375 = vst.msk [vmem:[%s2872 + $0x19] sm:$0xf] %vm69, %v3365
    %3376 = vst.msk [vmem:[%s2872 + $0x31] sm:$0xf] %vm69, %v3358
    %3377 = vst.msk [vmem:[%s2872 + $0x39] sm:$0xf] %vm69, %v3366
    %3378 = vst.msk [vmem:[%s2872 + $0x41] sm:$0xf] %vm69, %v3359
    %3379 = vst.msk [vmem:[%s2872 + $0x49] sm:$0xf] %vm69, %v3367
    %s3380 = scalar_lea.vmem %s2, 48
    %v3381 = vld [vmem:[%s3380] sm:$0xff]
    %v3382 = vld [vmem:[%s3380 + $0x8] sm:$0x1]
    %v3383 = vld [vmem:[#allocation3] sm:$0xf]
    %v3384 = vld [vmem:[#allocation3 + $0x8] sm:$0xf]
    %v3385 = vld [vmem:[#allocation3 + $0x10] sm:$0xf]
    %v3386 = vld [vmem:[#allocation3 + $0x18] sm:$0xf]
    %v3387 = vld [vmem:[#allocation3 + $0x30] sm:$0xf]
    %v3388 = vld [vmem:[#allocation3 + $0x38] sm:$0xf]
    %v3389 = vld [vmem:[#allocation3 + $0x40] sm:$0xf]
    %v3390 = vld [vmem:[#allocation3 + $0x48] sm:$0xf]
    %v3391 = vlaneseq
    %v3392 = vshrl.u32 %v3391, 7
    %v3393 = vsub.s32 0, %v3392
    %v3394 = vrot.slane %v3381, %v3393
    %v3395 = vmul.f32 %v3383, %v3394
    %v3396 = vmul.f32 %v3384, %v3394
    %v3397 = vmul.f32 %v3385, %v3394
    %v3398 = vmul.f32 %v3386, %v3394
    %v3399 = vmul.f32 %v3387, %v3394
    %v3400 = vmul.f32 %v3388, %v3394
    %v3401 = vmul.f32 %v3389, %v3394
    %v3402 = vmul.f32 %v3390, %v3394
    %v3403 = vld [vmem:[#allocation3 + $0x1] sm:$0xf]
    %v3404 = vld [vmem:[#allocation3 + $0x9] sm:$0xf]
    %v3405 = vld [vmem:[#allocation3 + $0x11] sm:$0xf]
    %v3406 = vld [vmem:[#allocation3 + $0x19] sm:$0xf]
    %v3407 = vld [vmem:[#allocation3 + $0x31] sm:$0xf]
    %v3408 = vld [vmem:[#allocation3 + $0x39] sm:$0xf]
    %v3409 = vld [vmem:[#allocation3 + $0x41] sm:$0xf]
    %v3410 = vld [vmem:[#allocation3 + $0x49] sm:$0xf]
    %v3411 = vlaneseq
    %v3412 = vshrl.u32 %v3411, 7
    %v3413 = vsub.s32 1, %v3412
    %v3414 = vrot.slane %v3381, %v3413
    %v3415 = vmul.f32 %v3403, %v3414
    %v3416 = vmul.f32 %v3404, %v3414
    %v3417 = vmul.f32 %v3405, %v3414
    %v3418 = vmul.f32 %v3406, %v3414
    %v3419 = vmul.f32 %v3407, %v3414
    %v3420 = vmul.f32 %v3408, %v3414
    %v3421 = vmul.f32 %v3409, %v3414
    %v3422 = vmul.f32 %v3410, %v3414
    %v3423 = vadd.f32 %v3395, %v3415
    %v3424 = vadd.f32 %v3396, %v3416
    %v3425 = vadd.f32 %v3397, %v3417
    %v3426 = vadd.f32 %v3398, %v3418
    %v3427 = vadd.f32 %v3399, %v3419
    %v3428 = vadd.f32 %v3400, %v3420
    %v3429 = vadd.f32 %v3401, %v3421
    %v3430 = vadd.f32 %v3402, %v3422
    %v3431 = vld [vmem:[#allocation3 + $0x2] sm:$0xf]
    %v3432 = vld [vmem:[#allocation3 + $0xa] sm:$0xf]
    %v3433 = vld [vmem:[#allocation3 + $0x12] sm:$0xf]
    %v3434 = vld [vmem:[#allocation3 + $0x1a] sm:$0xf]
    %v3435 = vld [vmem:[#allocation3 + $0x32] sm:$0xf]
    %v3436 = vld [vmem:[#allocation3 + $0x3a] sm:$0xf]
    %v3437 = vld [vmem:[#allocation3 + $0x42] sm:$0xf]
    %v3438 = vld [vmem:[#allocation3 + $0x4a] sm:$0xf]
    %v3439 = vlaneseq
    %v3440 = vshrl.u32 %v3439, 7
    %v3441 = vsub.s32 2, %v3440
    %v3442 = vrot.slane %v3381, %v3441
    %v3443 = vmul.f32 %v3431, %v3442
    %v3444 = vmul.f32 %v3432, %v3442
    %v3445 = vmul.f32 %v3433, %v3442
    %v3446 = vmul.f32 %v3434, %v3442
    %v3447 = vmul.f32 %v3435, %v3442
    %v3448 = vmul.f32 %v3436, %v3442
    %v3449 = vmul.f32 %v3437, %v3442
    %v3450 = vmul.f32 %v3438, %v3442
    %v3451 = vadd.f32 %v3423, %v3443
    %v3452 = vadd.f32 %v3424, %v3444
    %v3453 = vadd.f32 %v3425, %v3445
    %v3454 = vadd.f32 %v3426, %v3446
    %v3455 = vadd.f32 %v3427, %v3447
    %v3456 = vadd.f32 %v3428, %v3448
    %v3457 = vadd.f32 %v3429, %v3449
    %v3458 = vadd.f32 %v3430, %v3450
    %v3459 = vld [vmem:[%s2872] sm:$0xf]
    %v3460 = vld [vmem:[%s2872 + $0x8] sm:$0xf]
    %v3461 = vld [vmem:[%s2872 + $0x10] sm:$0xf]
    %v3462 = vld [vmem:[%s2872 + $0x18] sm:$0xf]
    %v3463 = vld [vmem:[%s2872 + $0x30] sm:$0xf]
    %v3464 = vld [vmem:[%s2872 + $0x38] sm:$0xf]
    %v3465 = vld [vmem:[%s2872 + $0x40] sm:$0xf]
    %v3466 = vld [vmem:[%s2872 + $0x48] sm:$0xf]
    %v3467 = vlaneseq
    %v3468 = vshrl.u32 %v3467, 7
    %v3469 = vsub.s32 3, %v3468
    %v3470 = vrot.slane %v3381, %v3469
    %v3471 = vmul.f32 %v3459, %v3470
    %v3472 = vmul.f32 %v3460, %v3470
    %v3473 = vmul.f32 %v3461, %v3470
    %v3474 = vmul.f32 %v3462, %v3470
    %v3475 = vmul.f32 %v3463, %v3470
    %v3476 = vmul.f32 %v3464, %v3470
    %v3477 = vmul.f32 %v3465, %v3470
    %v3478 = vmul.f32 %v3466, %v3470
    %v3479 = vadd.f32 %v3451, %v3471
    %v3480 = vadd.f32 %v3452, %v3472
    %v3481 = vadd.f32 %v3453, %v3473
    %v3482 = vadd.f32 %v3454, %v3474
    %v3483 = vadd.f32 %v3455, %v3475
    %v3484 = vadd.f32 %v3456, %v3476
    %v3485 = vadd.f32 %v3457, %v3477
    %v3486 = vadd.f32 %v3458, %v3478
    %v3487 = vld [vmem:[%s2872 + $0x1] sm:$0xf]
    %v3488 = vld [vmem:[%s2872 + $0x9] sm:$0xf]
    %v3489 = vld [vmem:[%s2872 + $0x11] sm:$0xf]
    %v3490 = vld [vmem:[%s2872 + $0x19] sm:$0xf]
    %v3491 = vld [vmem:[%s2872 + $0x31] sm:$0xf]
    %v3492 = vld [vmem:[%s2872 + $0x39] sm:$0xf]
    %v3493 = vld [vmem:[%s2872 + $0x41] sm:$0xf]
    %v3494 = vld [vmem:[%s2872 + $0x49] sm:$0xf]
    %v3495 = vlaneseq
    %v3496 = vshrl.u32 %v3495, 7
    %v3497 = vsub.s32 4, %v3496
    %v3498 = vrot.slane %v3381, %v3497
    %v3499 = vmul.f32 %v3487, %v3498
    %v3500 = vmul.f32 %v3488, %v3498
    %v3501 = vmul.f32 %v3489, %v3498
    %v3502 = vmul.f32 %v3490, %v3498
    %v3503 = vmul.f32 %v3491, %v3498
    %v3504 = vmul.f32 %v3492, %v3498
    %v3505 = vmul.f32 %v3493, %v3498
    %v3506 = vmul.f32 %v3494, %v3498
    %v3507 = vadd.f32 %v3479, %v3499
    %v3508 = vadd.f32 %v3480, %v3500
    %v3509 = vadd.f32 %v3481, %v3501
    %v3510 = vadd.f32 %v3482, %v3502
    %v3511 = vadd.f32 %v3483, %v3503
    %v3512 = vadd.f32 %v3484, %v3504
    %v3513 = vadd.f32 %v3485, %v3505
    %v3514 = vadd.f32 %v3486, %v3506
    %v3515 = vld [vmem:[%s2872 + $0x2] sm:$0xf]
    %v3516 = vld [vmem:[%s2872 + $0xa] sm:$0xf]
    %v3517 = vld [vmem:[%s2872 + $0x12] sm:$0xf]
    %v3518 = vld [vmem:[%s2872 + $0x1a] sm:$0xf]
    %v3519 = vld [vmem:[%s2872 + $0x32] sm:$0xf]
    %v3520 = vld [vmem:[%s2872 + $0x3a] sm:$0xf]
    %v3521 = vld [vmem:[%s2872 + $0x42] sm:$0xf]
    %v3522 = vld [vmem:[%s2872 + $0x4a] sm:$0xf]
    %v3523 = vlaneseq
    %v3524 = vshrl.u32 %v3523, 7
    %v3525 = vsub.s32 5, %v3524
    %v3526 = vrot.slane %v3381, %v3525
    %v3527 = vmul.f32 %v3515, %v3526
    %v3528 = vmul.f32 %v3516, %v3526
    %v3529 = vmul.f32 %v3517, %v3526
    %v3530 = vmul.f32 %v3518, %v3526
    %v3531 = vmul.f32 %v3519, %v3526
    %v3532 = vmul.f32 %v3520, %v3526
    %v3533 = vmul.f32 %v3521, %v3526
    %v3534 = vmul.f32 %v3522, %v3526
    %v3535 = vadd.f32 %v3507, %v3527
    %v3536 = vadd.f32 %v3508, %v3528
    %v3537 = vadd.f32 %v3509, %v3529
    %v3538 = vadd.f32 %v3510, %v3530
    %v3539 = vadd.f32 %v3511, %v3531
    %v3540 = vadd.f32 %v3512, %v3532
    %v3541 = vadd.f32 %v3513, %v3533
    %v3542 = vadd.f32 %v3514, %v3534
    %v3543 = vld [vmem:[%s3044] sm:$0xf]
    %v3544 = vld [vmem:[%s3044 + $0x8] sm:$0xf]
    %v3545 = vld [vmem:[%s3044 + $0x10] sm:$0xf]
    %v3546 = vld [vmem:[%s3044 + $0x18] sm:$0xf]
    %v3547 = vld [vmem:[%s3044 + $0x30] sm:$0xf]
    %v3548 = vld [vmem:[%s3044 + $0x38] sm:$0xf]
    %v3549 = vld [vmem:[%s3044 + $0x40] sm:$0xf]
    %v3550 = vld [vmem:[%s3044 + $0x48] sm:$0xf]
    %v3551 = vlaneseq
    %v3552 = vshrl.u32 %v3551, 7
    %v3553 = vsub.s32 6, %v3552
    %v3554 = vrot.slane %v3381, %v3553
    %v3555 = vmul.f32 %v3543, %v3554
    %v3556 = vmul.f32 %v3544, %v3554
    %v3557 = vmul.f32 %v3545, %v3554
    %v3558 = vmul.f32 %v3546, %v3554
    %v3559 = vmul.f32 %v3547, %v3554
    %v3560 = vmul.f32 %v3548, %v3554
    %v3561 = vmul.f32 %v3549, %v3554
    %v3562 = vmul.f32 %v3550, %v3554
    %v3563 = vadd.f32 %v3535, %v3555
    %v3564 = vadd.f32 %v3536, %v3556
    %v3565 = vadd.f32 %v3537, %v3557
    %v3566 = vadd.f32 %v3538, %v3558
    %v3567 = vadd.f32 %v3539, %v3559
    %v3568 = vadd.f32 %v3540, %v3560
    %v3569 = vadd.f32 %v3541, %v3561
    %v3570 = vadd.f32 %v3542, %v3562
    %v3571 = vld [vmem:[%s3044 + $0x1] sm:$0xf]
    %v3572 = vld [vmem:[%s3044 + $0x9] sm:$0xf]
    %v3573 = vld [vmem:[%s3044 + $0x11] sm:$0xf]
    %v3574 = vld [vmem:[%s3044 + $0x19] sm:$0xf]
    %v3575 = vld [vmem:[%s3044 + $0x31] sm:$0xf]
    %v3576 = vld [vmem:[%s3044 + $0x39] sm:$0xf]
    %v3577 = vld [vmem:[%s3044 + $0x41] sm:$0xf]
    %v3578 = vld [vmem:[%s3044 + $0x49] sm:$0xf]
    %v3579 = vlaneseq
    %v3580 = vshrl.u32 %v3579, 7
    %v3581 = vsub.s32 7, %v3580
    %v3582 = vrot.slane %v3381, %v3581
    %v3583 = vmul.f32 %v3571, %v3582
    %v3584 = vmul.f32 %v3572, %v3582
    %v3585 = vmul.f32 %v3573, %v3582
    %v3586 = vmul.f32 %v3574, %v3582
    %v3587 = vmul.f32 %v3575, %v3582
    %v3588 = vmul.f32 %v3576, %v3582
    %v3589 = vmul.f32 %v3577, %v3582
    %v3590 = vmul.f32 %v3578, %v3582
    %v3591 = vadd.f32 %v3563, %v3583
    %v3592 = vadd.f32 %v3564, %v3584
    %v3593 = vadd.f32 %v3565, %v3585
    %v3594 = vadd.f32 %v3566, %v3586
    %v3595 = vadd.f32 %v3567, %v3587
    %v3596 = vadd.f32 %v3568, %v3588
    %v3597 = vadd.f32 %v3569, %v3589
    %v3598 = vadd.f32 %v3570, %v3590
    %v3599 = vld [vmem:[%s3044 + $0x2] sm:$0xf]
    %v3600 = vld [vmem:[%s3044 + $0xa] sm:$0xf]
    %v3601 = vld [vmem:[%s3044 + $0x12] sm:$0xf]
    %v3602 = vld [vmem:[%s3044 + $0x1a] sm:$0xf]
    %v3603 = vld [vmem:[%s3044 + $0x32] sm:$0xf]
    %v3604 = vld [vmem:[%s3044 + $0x3a] sm:$0xf]
    %v3605 = vld [vmem:[%s3044 + $0x42] sm:$0xf]
    %v3606 = vld [vmem:[%s3044 + $0x4a] sm:$0xf]
    %v3607 = vlaneseq
    %v3608 = vshrl.u32 %v3607, 7
    %v3609 = vsub.s32 0, %v3608
    %v3610 = vrot.slane %v3382, %v3609
    %v3611 = vmul.f32 %v3599, %v3610
    %v3612 = vmul.f32 %v3600, %v3610
    %v3613 = vmul.f32 %v3601, %v3610
    %v3614 = vmul.f32 %v3602, %v3610
    %v3615 = vmul.f32 %v3603, %v3610
    %v3616 = vmul.f32 %v3604, %v3610
    %v3617 = vmul.f32 %v3605, %v3610
    %v3618 = vmul.f32 %v3606, %v3610
    %v3619 = vadd.f32 %v3591, %v3611
    %v3620 = vadd.f32 %v3592, %v3612
    %v3621 = vadd.f32 %v3593, %v3613
    %v3622 = vadd.f32 %v3594, %v3614
    %v3623 = vadd.f32 %v3595, %v3615
    %v3624 = vadd.f32 %v3596, %v3616
    %v3625 = vadd.f32 %v3597, %v3617
    %v3626 = vadd.f32 %v3598, %v3618
    %v3627 = vadd.f32 %v3619, 1.0
    %v3628 = vadd.f32 %v3620, 1.0
    %v3629 = vadd.f32 %v3621, 1.0
    %v3630 = vadd.f32 %v3622, 1.0
    %v3631 = vadd.f32 %v3623, 1.0
    %v3632 = vadd.f32 %v3624, 1.0
    %v3633 = vadd.f32 %v3625, 1.0
    %v3634 = vadd.f32 %v3626, 1.0
    %vm3635 = vcmp.gt.f32.partialorder %v3627, 0.0
    %vm3636 = vcmp.gt.f32.partialorder %v3628, 0.0
    %vm3637 = vcmp.gt.f32.partialorder %v3629, 0.0
    %vm3638 = vcmp.gt.f32.partialorder %v3630, 0.0
    %vm3639 = vcmp.gt.f32.partialorder %v3631, 0.0
    %vm3640 = vcmp.gt.f32.partialorder %v3632, 0.0
    %vm3641 = vcmp.gt.f32.partialorder %v3633, 0.0
    %vm3642 = vcmp.gt.f32.partialorder %v3634, 0.0
    %v3643 = vmul.f32 %v3627, 0.3
    %v3644 = vmul.f32 %v3628, 0.3
    %v3645 = vmul.f32 %v3629, 0.3
    %v3646 = vmul.f32 %v3630, 0.3
    %v3647 = vmul.f32 %v3631, 0.3
    %v3648 = vmul.f32 %v3632, 0.3
    %v3649 = vmul.f32 %v3633, 0.3
    %v3650 = vmul.f32 %v3634, 0.3
    %v3651 = vsel %vm3635, %v3627, %v3643
    %v3652 = vsel %vm3636, %v3628, %v3644
    %v3653 = vsel %vm3637, %v3629, %v3645
    %v3654 = vsel %vm3638, %v3630, %v3646
    %v3655 = vsel %vm3639, %v3631, %v3647
    %v3656 = vsel %vm3640, %v3632, %v3648
    %v3657 = vsel %vm3641, %v3633, %v3649
    %v3658 = vsel %vm3642, %v3634, %v3650
    %v3659 = vmax.f32 %v3651, %v3652
    %v3660 = vmax.f32 %v3653, %v3654
    %v3661 = vmax.f32 %v3655, %v3656
    %v3662 = vmax.f32 %v3657, %v3658
    %v3667 = vrot.slane %v3659, 1
    %v3668 = vrot.slane %v3660, 1
    %v3669 = vrot.slane %v3661, 1
    %v3670 = vrot.slane %v3662, 1
    %v3675 = vmax.f32 %v3659, %v3667
    %v3676 = vmax.f32 %v3660, %v3668
    %v3677 = vmax.f32 %v3661, %v3669
    %v3678 = vmax.f32 %v3662, %v3670
    %v3683 = vrot.slane %v3675, 1
    %v3684 = vrot.slane %v3676, 1
    %v3685 = vrot.slane %v3677, 1
    %v3686 = vrot.slane %v3678, 1
    %v3691 = vsel %vm2612, %v3675, %v3683
    %v3692 = vsel %vm2612, %v3676, %v3684
    %v3693 = vsel %vm2612, %v3677, %v3685
    %v3694 = vsel %vm2612, %v3678, %v3686
    %v3699 = vcombine.low %v3691, %v3692
    %v3700 = vcombine.low %v3693, %v3694
    %v3702 = vunpack.c.l.s4 1983009808
    %v3703 = vunpack.c.0.s8 %v3702
    %v3704 = vlaneseq
    %v3705 = vshrl.u32 %v3704, 7
    %v3706 = vsub.s32 %v3703, %v3705
    %v3707 = vrot.slane %v3699, %v3706
    %v3709 = vunpack.c.l.s4 1983009808
    %v3710 = vunpack.c.0.s8 %v3709
    %v3711 = vlaneseq
    %v3712 = vshrl.u32 %v3711, 7
    %v3713 = vsub.s32 %v3710, %v3712
    %v3714 = vrot.slane %v3700, %v3713
    %v3715 = vcombine.low %v3707, %v3714
    %v3717 = vpack.c.bf16 %v3715, %v3715
    %v3718 = vld [vmem:[%s1 + $0xe0] sm:$0xf]
    %v3719 = vld [vmem:[%s1 + $0xe4] sm:$0xf]
    %v3720 = vld [vmem:[%s1 + $0xe8] sm:$0xf]
    %v3721 = vld [vmem:[%s1 + $0xec] sm:$0xf]
    %v3722 = vld [vmem:[%s1 + $0xf0] sm:$0xf]
    %v3723 = vld [vmem:[%s1 + $0xf4] sm:$0xf]
    %v3724 = vld [vmem:[%s1 + $0xf8] sm:$0xf]
    %v3725 = vld [vmem:[%s1 + $0xfc] sm:$0xf]
    %v3734 = vunpack.c.l.b16 %v3718
    %v3735 = vunpack.c.l.b16 %v3719
    %v3736 = vunpack.c.l.b16 %v3720
    %v3737 = vunpack.c.l.b16 %v3721
    %v3738 = vunpack.c.l.b16 %v3722
    %v3739 = vunpack.c.l.b16 %v3723
    %v3740 = vunpack.c.l.b16 %v3724
    %v3741 = vunpack.c.l.b16 %v3725
    %v3742 = vpack.c.b16 %v3735, %v3734
    %v3743 = vpack.c.b16 %v3737, %v3736
    %v3744 = vpack.c.b16 %v3739, %v3738
    %v3745 = vpack.c.b16 %v3741, %v3740
    %v3751 = vsel %vm3211, %v3717, 0
    %3753 = vmatprep.subr.bf16.mxu0 0
    %3754 = vmatpush1.bf16.msra.mxu0 %v3742
    %3755 = vmatprep.subr.bf16.mxu0 0
    %3756 = vmatpush1.bf16.msra.mxu0 %v3743
    %3757 = vmatprep.subr.bf16.mxu0 0
    %3758 = vmatpush1.bf16.msra.mxu0 %v3744
    %3759 = vmatprep.subr.bf16.mxu0 0
    %3760 = vmatpush1.bf16.msra.mxu0 %v3745
    %3761 = vmatprep.subr.bf16.mxu0 0
    %3762 = vmatpush1.bf16.msra.mxu0 0
    %3763 = vmatprep.subr.bf16.mxu0 0
    %3764 = vmatpush1.bf16.msra.mxu0 0
    %3765 = vmatprep.subr.bf16.mxu0 0
    %3766 = vmatpush1.bf16.msra.mxu0 0
    %3767 = vmatprep.subr.bf16.mxu0 0
    %3768 = vmatpush1.bf16.msra.mxu0 0
    %3769 = vmatprep.subr.bf16.mxu0 0
    %3770 = vmatpush1.bf16.msra.mxu0 0
    %3771 = vmatprep.subr.bf16.mxu0 0
    %3772 = vmatpush1.bf16.msra.mxu0 0
    %3773 = vmatprep.subr.bf16.mxu0 0
    %3774 = vmatpush1.bf16.msra.mxu0 0
    %3775 = vmatprep.subr.bf16.mxu0 0
    %3776 = vmatpush1.bf16.msra.mxu0 0
    %3777 = vmatprep.subr.bf16.mxu0 0
    %3778 = vmatpush1.bf16.msra.mxu0 0
    %3779 = vmatprep.subr.bf16.mxu0 0
    %3780 = vmatpush1.bf16.msra.mxu0 0
    %3781 = vmatprep.subr.bf16.mxu0 0
    %3782 = vmatpush1.bf16.msra.mxu0 0
    %3783 = vmatprep.subr.bf16.mxu0 0
    %3784 = vmatpush1.bf16.msra.mxu0 0
    %3785 = vmatprep.mubr.bf16.mxu0 0
    %3786 = vmatmul.mubr.bf16.gmra.mrb[0].mxu0 %v3751
    %v3787 = vpop.f32.mrb[0].mxu0
    %v3788 = vadd.f32 1.0, %v3787
    %v3789 = vpop.f32.mrb[0].mxu0
    %v3790 = vpop.f32.mrb[0].mxu0
    %v3791 = vpop.f32.mrb[0].mxu0
    %3792 = vdwg.mxu0
    %vm3793 = vcmp.gt.f32.partialorder %v3788, 0.0
    %v3794 = vmul.f32 %v3788, 0.3
    %v3795 = vsel %vm3793, %v3788, %v3794
    %v3796 = vpack.c.bf16 %v3795, %v3795
    %v3797 = vld [vmem:[%s1 + $0x100] sm:$0xf]
    %v3798 = vld [vmem:[%s1 + $0x104] sm:$0xf]
    %v3801 = vunpack.c.l.b16 %v3797
    %v3802 = vunpack.c.l.b16 %v3798
    %v3803 = vpack.c.b16 %v3802, %v3801
    %v3806 = vsel %vm2792, %v3796, 0
    %3808 = vmatprep.subr.bf16.mxu0 0
    %3809 = vmatpush1.bf16.msra.mxu0 %v3803
    %3810 = vmatprep.subr.bf16.mxu0 0
    %3811 = vmatpush1.bf16.msra.mxu0 0
    %3812 = vmatprep.subr.bf16.mxu0 0
    %3813 = vmatpush1.bf16.msra.mxu0 0
    %3814 = vmatprep.subr.bf16.mxu0 0
    %3815 = vmatpush1.bf16.msra.mxu0 0
    %3816 = vmatprep.subr.bf16.mxu0 0
    %3817 = vmatpush1.bf16.msra.mxu0 0
    %3818 = vmatprep.subr.bf16.mxu0 0
    %3819 = vmatpush1.bf16.msra.mxu0 0
    %3820 = vmatprep.subr.bf16.mxu0 0
    %3821 = vmatpush1.bf16.msra.mxu0 0
    %3822 = vmatprep.subr.bf16.mxu0 0
    %3823 = vmatpush1.bf16.msra.mxu0 0
    %3824 = vmatprep.subr.bf16.mxu0 0
    %3825 = vmatpush1.bf16.msra.mxu0 0
    %3826 = vmatprep.subr.bf16.mxu0 0
    %3827 = vmatpush1.bf16.msra.mxu0 0
    %3828 = vmatprep.subr.bf16.mxu0 0
    %3829 = vmatpush1.bf16.msra.mxu0 0
    %3830 = vmatprep.subr.bf16.mxu0 0
    %3831 = vmatpush1.bf16.msra.mxu0 0
    %3832 = vmatprep.subr.bf16.mxu0 0
    %3833 = vmatpush1.bf16.msra.mxu0 0
    %3834 = vmatprep.subr.bf16.mxu0 0
    %3835 = vmatpush1.bf16.msra.mxu0 0
    %3836 = vmatprep.subr.bf16.mxu0 0
    %3837 = vmatpush1.bf16.msra.mxu0 0
    %3838 = vmatprep.subr.bf16.mxu0 0
    %3839 = vmatpush1.bf16.msra.mxu0 0
    %3840 = vmatprep.mubr.bf16.mxu0 0
    %3841 = vmatmul.mubr.bf16.gmra.mrb[0].mxu0 %v3806
    %v3842 = vpop.f32.mrb[0].mxu0
    %v3843 = vadd.f32 1.0, %v3842
    %v3844 = vpop.f32.mrb[0].mxu0
    %v3845 = vpop.f32.mrb[0].mxu0
    %v3846 = vpop.f32.mrb[0].mxu0
    %3847 = vdwg.mxu0
    %vm3848 = vcmp.gt.f32.partialorder %v3843, 0.0
    %v3849 = vmul.f32 %v3843, 0.3
    %v3850 = vsel %vm3848, %v3843, %v3849
    %v3852 = vcombine.high %v3850, %v3850
    %v3854 = vunpack.c.l.s4 1983009808
    %v3855 = vunpack.c.0.s8 %v3854
    %v3856 = vlaneseq
    %v3857 = vshrl.u32 %v3856, 7
    %v3858 = vsub.s32 %v3855, %v3857
    %v3859 = vrot.slane %v3850, %v3858
    %v3861 = vunpack.c.l.s4 1983009808
    %v3862 = vunpack.c.0.s8 %v3861
    %v3863 = vlaneseq
    %v3864 = vshrl.u32 %v3863, 7
    %v3865 = vsub.s32 %v3862, %v3864
    %v3866 = vrot.slane %v3852, %v3865
    %v3867 = vcombine.high %v3859, %v3859
    %v3868 = vcombine.high %v3866, %v3866
    %s3873 = scalar_lea.vmem [#allocation4], 4
    %vm3874 = vcmask 517120
    %3875 = vst.msk [vmem:[%s3873 + $0x1] sm:$0x3] %vm3874, %v3859
    %3876 = vst.msk [vmem:[%s3873 + $0x5] sm:$0x3] %vm3874, %v3867
    %3877 = vst.msk [vmem:[%s3873 + $0x11] sm:$0x3] %vm3874, %v3866
    %3878 = vst.msk [vmem:[%s3873 + $0x15] sm:$0x3] %vm3874, %v3868
    %s3879 = scalar_lea.vmem %s2, 64
    %v3880 = vld [vmem:[%s3879] sm:$0xff]
    %v3881 = vld [vmem:[%s3879 + $0x8] sm:$0x1]
    %v3882 = vld [vmem:[#allocation4] sm:$0x3]
    %v3883 = vld [vmem:[#allocation4 + $0x4] sm:$0x3]
    %v3884 = vld [vmem:[#allocation4 + $0x10] sm:$0x3]
    %v3885 = vld [vmem:[#allocation4 + $0x14] sm:$0x3]
    %v3886 = vlaneseq
    %v3887 = vshrl.u32 %v3886, 7
    %v3888 = vsub.s32 0, %v3887
    %v3889 = vrot.slane %v3880, %v3888
    %v3890 = vmul.f32 %v3882, %v3889
    %v3891 = vmul.f32 %v3883, %v3889
    %v3892 = vmul.f32 %v3884, %v3889
    %v3893 = vmul.f32 %v3885, %v3889
    %v3894 = vld [vmem:[#allocation4 + $0x1] sm:$0x3]
    %v3895 = vld [vmem:[#allocation4 + $0x5] sm:$0x3]
    %v3896 = vld [vmem:[#allocation4 + $0x11] sm:$0x3]
    %v3897 = vld [vmem:[#allocation4 + $0x15] sm:$0x3]
    %v3898 = vlaneseq
    %v3899 = vshrl.u32 %v3898, 7
    %v3900 = vsub.s32 1, %v3899
    %v3901 = vrot.slane %v3880, %v3900
    %v3902 = vmul.f32 %v3894, %v3901
    %v3903 = vmul.f32 %v3895, %v3901
    %v3904 = vmul.f32 %v3896, %v3901
    %v3905 = vmul.f32 %v3897, %v3901
    %v3906 = vadd.f32 %v3890, %v3902
    %v3907 = vadd.f32 %v3891, %v3903
    %v3908 = vadd.f32 %v3892, %v3904
    %v3909 = vadd.f32 %v3893, %v3905
    %v3910 = vld [vmem:[#allocation4 + $0x2] sm:$0x3]
    %v3911 = vld [vmem:[#allocation4 + $0x6] sm:$0x3]
    %v3912 = vld [vmem:[#allocation4 + $0x12] sm:$0x3]
    %v3913 = vld [vmem:[#allocation4 + $0x16] sm:$0x3]
    %v3914 = vlaneseq
    %v3915 = vshrl.u32 %v3914, 7
    %v3916 = vsub.s32 2, %v3915
    %v3917 = vrot.slane %v3880, %v3916
    %v3918 = vmul.f32 %v3910, %v3917
    %v3919 = vmul.f32 %v3911, %v3917
    %v3920 = vmul.f32 %v3912, %v3917
    %v3921 = vmul.f32 %v3913, %v3917
    %v3922 = vadd.f32 %v3906, %v3918
    %v3923 = vadd.f32 %v3907, %v3919
    %v3924 = vadd.f32 %v3908, %v3920
    %v3925 = vadd.f32 %v3909, %v3921
    %v3926 = vld [vmem:[%s3873] sm:$0x3]
    %v3927 = vld [vmem:[%s3873 + $0x4] sm:$0x3]
    %v3928 = vld [vmem:[%s3873 + $0x10] sm:$0x3]
    %v3929 = vld [vmem:[%s3873 + $0x14] sm:$0x3]
    %v3930 = vlaneseq
    %v3931 = vshrl.u32 %v3930, 7
    %v3932 = vsub.s32 3, %v3931
    %v3933 = vrot.slane %v3880, %v3932
    %v3934 = vmul.f32 %v3926, %v3933
    %v3935 = vmul.f32 %v3927, %v3933
    %v3936 = vmul.f32 %v3928, %v3933
    %v3937 = vmul.f32 %v3929, %v3933
    %v3938 = vadd.f32 %v3922, %v3934
    %v3939 = vadd.f32 %v3923, %v3935
    %v3940 = vadd.f32 %v3924, %v3936
    %v3941 = vadd.f32 %v3925, %v3937
    %v3942 = vld [vmem:[%s3873 + $0x1] sm:$0x3]
    %v3943 = vld [vmem:[%s3873 + $0x5] sm:$0x3]
    %v3944 = vld [vmem:[%s3873 + $0x11] sm:$0x3]
    %v3945 = vld [vmem:[%s3873 + $0x15] sm:$0x3]
    %v3946 = vlaneseq
    %v3947 = vshrl.u32 %v3946, 7
    %v3948 = vsub.s32 4, %v3947
    %v3949 = vrot.slane %v3880, %v3948
    %v3950 = vmul.f32 %v3942, %v3949
    %v3951 = vmul.f32 %v3943, %v3949
    %v3952 = vmul.f32 %v3944, %v3949
    %v3953 = vmul.f32 %v3945, %v3949
    %v3954 = vadd.f32 %v3938, %v3950
    %v3955 = vadd.f32 %v3939, %v3951
    %v3956 = vadd.f32 %v3940, %v3952
    %v3957 = vadd.f32 %v3941, %v3953
    %v3958 = vld [vmem:[%s3873 + $0x2] sm:$0x3]
    %v3959 = vld [vmem:[%s3873 + $0x6] sm:$0x3]
    %v3960 = vld [vmem:[%s3873 + $0x12] sm:$0x3]
    %v3961 = vld [vmem:[%s3873 + $0x16] sm:$0x3]
    %v3962 = vlaneseq
    %v3963 = vshrl.u32 %v3962, 7
    %v3964 = vsub.s32 5, %v3963
    %v3965 = vrot.slane %v3880, %v3964
    %v3966 = vmul.f32 %v3958, %v3965
    %v3967 = vmul.f32 %v3959, %v3965
    %v3968 = vmul.f32 %v3960, %v3965
    %v3969 = vmul.f32 %v3961, %v3965
    %v3970 = vadd.f32 %v3954, %v3966
    %v3971 = vadd.f32 %v3955, %v3967
    %v3972 = vadd.f32 %v3956, %v3968
    %v3973 = vadd.f32 %v3957, %v3969
    %s3974 = scalar_lea.vmem [#allocation4], 8
    %v3975 = vld [vmem:[%s3974] sm:$0x3]
    %v3976 = vld [vmem:[%s3974 + $0x4] sm:$0x3]
    %v3977 = vld [vmem:[%s3974 + $0x10] sm:$0x3]
    %v3978 = vld [vmem:[%s3974 + $0x14] sm:$0x3]
    %v3979 = vlaneseq
    %v3980 = vshrl.u32 %v3979, 7
    %v3981 = vsub.s32 6, %v3980
    %v3982 = vrot.slane %v3880, %v3981
    %v3983 = vmul.f32 %v3975, %v3982
    %v3984 = vmul.f32 %v3976, %v3982
    %v3985 = vmul.f32 %v3977, %v3982
    %v3986 = vmul.f32 %v3978, %v3982
    %v3987 = vadd.f32 %v3970, %v3983
    %v3988 = vadd.f32 %v3971, %v3984
    %v3989 = vadd.f32 %v3972, %v3985
    %v3990 = vadd.f32 %v3973, %v3986
    %v3991 = vld [vmem:[%s3974 + $0x1] sm:$0x3]
    %v3992 = vld [vmem:[%s3974 + $0x5] sm:$0x3]
    %v3993 = vld [vmem:[%s3974 + $0x11] sm:$0x3]
    %v3994 = vld [vmem:[%s3974 + $0x15] sm:$0x3]
    %v3995 = vlaneseq
    %v3996 = vshrl.u32 %v3995, 7
    %v3997 = vsub.s32 7, %v3996
    %v3998 = vrot.slane %v3880, %v3997
    %v3999 = vmul.f32 %v3991, %v3998
    %v4000 = vmul.f32 %v3992, %v3998
    %v4001 = vmul.f32 %v3993, %v3998
    %v4002 = vmul.f32 %v3994, %v3998
    %v4003 = vadd.f32 %v3987, %v3999
    %v4004 = vadd.f32 %v3988, %v4000
    %v4005 = vadd.f32 %v3989, %v4001
    %v4006 = vadd.f32 %v3990, %v4002
    %v4007 = vld [vmem:[%s3974 + $0x2] sm:$0x3]
    %v4008 = vld [vmem:[%s3974 + $0x6] sm:$0x3]
    %v4009 = vld [vmem:[%s3974 + $0x12] sm:$0x3]
    %v4010 = vld [vmem:[%s3974 + $0x16] sm:$0x3]
    %v4011 = vlaneseq
    %v4012 = vshrl.u32 %v4011, 7
    %v4013 = vsub.s32 0, %v4012
    %v4014 = vrot.slane %v3881, %v4013
    %v4015 = vmul.f32 %v4007, %v4014
    %v4016 = vmul.f32 %v4008, %v4014
    %v4017 = vmul.f32 %v4009, %v4014
    %v4018 = vmul.f32 %v4010, %v4014
    %v4019 = vadd.f32 %v4003, %v4015
    %v4020 = vadd.f32 %v4004, %v4016
    %v4021 = vadd.f32 %v4005, %v4017
    %v4022 = vadd.f32 %v4006, %v4018
    %v4023 = vadd.f32 %v4019, 1.0
    %v4024 = vadd.f32 %v4020, 1.0
    %v4025 = vadd.f32 %v4021, 1.0
    %v4026 = vadd.f32 %v4022, 1.0
    %vm4027 = vcmp.gt.f32.partialorder %v4023, 0.0
    %vm4028 = vcmp.gt.f32.partialorder %v4024, 0.0
    %vm4029 = vcmp.gt.f32.partialorder %v4025, 0.0
    %vm4030 = vcmp.gt.f32.partialorder %v4026, 0.0
    %v4031 = vmul.f32 %v4023, 0.3
    %v4032 = vmul.f32 %v4024, 0.3
    %v4033 = vmul.f32 %v4025, 0.3
    %v4034 = vmul.f32 %v4026, 0.3
    %v4035 = vsel %vm4027, %v4023, %v4031
    %v4036 = vsel %vm4028, %v4024, %v4032
    %v4037 = vsel %vm4029, %v4025, %v4033
    %v4038 = vsel %vm4030, %v4026, %v4034
    %v4043 = vcombine.low %v4035, %v4036
    %v4044 = vcombine.low %v4037, %v4038
    %v4046 = vunpack.c.l.s4 1983009808
    %v4047 = vunpack.c.0.s8 %v4046
    %v4048 = vlaneseq
    %v4049 = vshrl.u32 %v4048, 7
    %v4050 = vsub.s32 %v4047, %v4049
    %v4051 = vrot.slane %v4043, %v4050
    %v4053 = vunpack.c.l.s4 1983009808
    %v4054 = vunpack.c.0.s8 %v4053
    %v4055 = vlaneseq
    %v4056 = vshrl.u32 %v4055, 7
    %v4057 = vsub.s32 %v4054, %v4056
    %v4058 = vrot.slane %v4044, %v4057
    %v4059 = vcombine.low %v4051, %v4058
    %v4061 = vpack.c.bf16 %v4059, %v4059
    %v4062 = vld [vmem:[%s1 + $0x108] sm:$0xf]
    %v4063 = vld [vmem:[%s1 + $0x10c] sm:$0xf]
    %v4064 = vld [vmem:[%s1 + $0x110] sm:$0xf]
    %v4065 = vld [vmem:[%s1 + $0x114] sm:$0xf]
    %v4066 = vld [vmem:[%s1 + $0x118] sm:$0xf]
    %v4067 = vld [vmem:[%s1 + $0x11c] sm:$0xf]
    %v4068 = vld [vmem:[%s1 + $0x120] sm:$0xf]
    %v4069 = vld [vmem:[%s1 + $0x124] sm:$0xf]
    %v4078 = vunpack.c.l.b16 %v4062
    %v4079 = vunpack.c.l.b16 %v4063
    %v4080 = vunpack.c.l.b16 %v4064
    %v4081 = vunpack.c.l.b16 %v4065
    %v4082 = vunpack.c.l.b16 %v4066
    %v4083 = vunpack.c.l.b16 %v4067
    %v4084 = vunpack.c.l.b16 %v4068
    %v4085 = vunpack.c.l.b16 %v4069
    %v4086 = vpack.c.b16 %v4079, %v4078
    %v4087 = vpack.c.b16 %v4081, %v4080
    %v4088 = vpack.c.b16 %v4083, %v4082
    %v4089 = vpack.c.b16 %v4085, %v4084
    %v4095 = vsel %vm3211, %v4061, 0
    %4097 = vmatprep.subr.bf16.mxu0 0
    %4098 = vmatpush1.bf16.msra.mxu0 %v4086
    %4099 = vmatprep.subr.bf16.mxu0 0
    %4100 = vmatpush1.bf16.msra.mxu0 %v4087
    %4101 = vmatprep.subr.bf16.mxu0 0
    %4102 = vmatpush1.bf16.msra.mxu0 %v4088
    %4103 = vmatprep.subr.bf16.mxu0 0
    %4104 = vmatpush1.bf16.msra.mxu0 %v4089
    %4105 = vmatprep.subr.bf16.mxu0 0
    %4106 = vmatpush1.bf16.msra.mxu0 0
    %4107 = vmatprep.subr.bf16.mxu0 0
    %4108 = vmatpush1.bf16.msra.mxu0 0
    %4109 = vmatprep.subr.bf16.mxu0 0
    %4110 = vmatpush1.bf16.msra.mxu0 0
    %4111 = vmatprep.subr.bf16.mxu0 0
    %4112 = vmatpush1.bf16.msra.mxu0 0
    %4113 = vmatprep.subr.bf16.mxu0 0
    %4114 = vmatpush1.bf16.msra.mxu0 0
    %4115 = vmatprep.subr.bf16.mxu0 0
    %4116 = vmatpush1.bf16.msra.mxu0 0
    %4117 = vmatprep.subr.bf16.mxu0 0
    %4118 = vmatpush1.bf16.msra.mxu0 0
    %4119 = vmatprep.subr.bf16.mxu0 0
    %4120 = vmatpush1.bf16.msra.mxu0 0
    %4121 = vmatprep.subr.bf16.mxu0 0
    %4122 = vmatpush1.bf16.msra.mxu0 0
    %4123 = vmatprep.subr.bf16.mxu0 0
    %4124 = vmatpush1.bf16.msra.mxu0 0
    %4125 = vmatprep.subr.bf16.mxu0 0
    %4126 = vmatpush1.bf16.msra.mxu0 0
    %4127 = vmatprep.subr.bf16.mxu0 0
    %4128 = vmatpush1.bf16.msra.mxu0 0
    %4129 = vmatprep.mubr.bf16.mxu0 0
    %4130 = vmatmul.mubr.bf16.gmra.mrb[0].mxu0 %v4095
    %v4131 = vpop.f32.mrb[0].mxu0
    %v4132 = vadd.f32 1.0, %v4131
    %v4133 = vpop.f32.mrb[0].mxu0
    %v4134 = vpop.f32.mrb[0].mxu0
    %v4135 = vpop.f32.mrb[0].mxu0
    %4136 = vdwg.mxu0
    %vm4137 = vcmp.gt.f32.partialorder %v4132, 0.0
    %v4138 = vmul.f32 %v4132, 0.3
    %v4139 = vsel %vm4137, %v4132, %v4138
    %v4140 = vadd.f32 %v4139, %v3795
    %v4141 = vpack.c.bf16 %v4140, %v4140
    %v4142 = vld [vmem:[%s1 + $0x128] sm:$0xf]
    %v4143 = vld [vmem:[%s1 + $0x12c] sm:$0xf]
    %v4146 = vunpack.c.l.b16 %v4142
    %v4147 = vunpack.c.l.b16 %v4143
    %v4148 = vpack.c.b16 %v4147, %v4146
    %v4151 = vsel %vm2792, %v4141, 0
    %4153 = vmatprep.subr.bf16.mxu0 0
    %4154 = vmatpush1.bf16.msra.mxu0 %v4148
    %4155 = vmatprep.subr.bf16.mxu0 0
    %4156 = vmatpush1.bf16.msra.mxu0 0
    %4157 = vmatprep.subr.bf16.mxu0 0
    %4158 = vmatpush1.bf16.msra.mxu0 0
    %4159 = vmatprep.subr.bf16.mxu0 0
    %4160 = vmatpush1.bf16.msra.mxu0 0
    %4161 = vmatprep.subr.bf16.mxu0 0
    %4162 = vmatpush1.bf16.msra.mxu0 0
    %4163 = vmatprep.subr.bf16.mxu0 0
    %4164 = vmatpush1.bf16.msra.mxu0 0
    %4165 = vmatprep.subr.bf16.mxu0 0
    %4166 = vmatpush1.bf16.msra.mxu0 0
    %4167 = vmatprep.subr.bf16.mxu0 0
    %4168 = vmatpush1.bf16.msra.mxu0 0
    %4169 = vmatprep.subr.bf16.mxu0 0
    %4170 = vmatpush1.bf16.msra.mxu0 0
    %4171 = vmatprep.subr.bf16.mxu0 0
    %4172 = vmatpush1.bf16.msra.mxu0 0
    %4173 = vmatprep.subr.bf16.mxu0 0
    %4174 = vmatpush1.bf16.msra.mxu0 0
    %4175 = vmatprep.subr.bf16.mxu0 0
    %4176 = vmatpush1.bf16.msra.mxu0 0
    %4177 = vmatprep.subr.bf16.mxu0 0
    %4178 = vmatpush1.bf16.msra.mxu0 0
    %4179 = vmatprep.subr.bf16.mxu0 0
    %4180 = vmatpush1.bf16.msra.mxu0 0
    %4181 = vmatprep.subr.bf16.mxu0 0
    %4182 = vmatpush1.bf16.msra.mxu0 0
    %4183 = vmatprep.subr.bf16.mxu0 0
    %4184 = vmatpush1.bf16.msra.mxu0 0
    %4185 = vmatprep.mubr.bf16.mxu0 0
    %4186 = vmatmul.mubr.bf16.gmra.mrb[0].mxu0 %v4151
    %v4187 = vpop.f32.mrb[0].mxu0
    %v4188 = vadd.f32 1.0, %v4187
    %v4189 = vpop.f32.mrb[0].mxu0
    %v4190 = vpop.f32.mrb[0].mxu0
    %v4191 = vpop.f32.mrb[0].mxu0
    %4192 = vdwg.mxu0
    %vm4193 = vcmp.gt.f32.partialorder %v4188, 0.0
    %v4194 = vmul.f32 %v4188, 0.3
    %v4195 = vsel %vm4193, %v4188, %v4194
    %v4197 = vcombine.high %v4195, %v4195
    %v4199 = vunpack.c.l.s4 1983009808
    %v4200 = vunpack.c.0.s8 %v4199
    %v4201 = vlaneseq
    %v4202 = vshrl.u32 %v4201, 7
    %v4203 = vsub.s32 %v4200, %v4202
    %v4204 = vrot.slane %v4195, %v4203
    %v4206 = vunpack.c.l.s4 1983009808
    %v4207 = vunpack.c.0.s8 %v4206
    %v4208 = vlaneseq
    %v4209 = vshrl.u32 %v4208, 7
    %v4210 = vsub.s32 %v4207, %v4209
    %v4211 = vrot.slane %v4197, %v4210
    %v4212 = vcombine.high %v4204, %v4204
    %v4213 = vcombine.high %v4211, %v4211
    %4218 = vst.msk [vmem:[%s3873 + $0x1] sm:$0x3] %vm3874, %v4204
    %4219 = vst.msk [vmem:[%s3873 + $0x5] sm:$0x3] %vm3874, %v4212
    %4220 = vst.msk [vmem:[%s3873 + $0x11] sm:$0x3] %vm3874, %v4211
    %4221 = vst.msk [vmem:[%s3873 + $0x15] sm:$0x3] %vm3874, %v4213
    %s4222 = scalar_lea.vmem %s2, 80
    %v4223 = vld [vmem:[%s4222] sm:$0xff]
    %v4224 = vld [vmem:[%s4222 + $0x8] sm:$0x1]
    %v4225 = vld [vmem:[#allocation4] sm:$0x3]
    %v4226 = vld [vmem:[#allocation4 + $0x4] sm:$0x3]
    %v4227 = vld [vmem:[#allocation4 + $0x10] sm:$0x3]
    %v4228 = vld [vmem:[#allocation4 + $0x14] sm:$0x3]
    %v4229 = vlaneseq
    %v4230 = vshrl.u32 %v4229, 7
    %v4231 = vsub.s32 0, %v4230
    %v4232 = vrot.slane %v4223, %v4231
    %v4233 = vmul.f32 %v4225, %v4232
    %v4234 = vmul.f32 %v4226, %v4232
    %v4235 = vmul.f32 %v4227, %v4232
    %v4236 = vmul.f32 %v4228, %v4232
    %v4237 = vld [vmem:[#allocation4 + $0x1] sm:$0x3]
    %v4238 = vld [vmem:[#allocation4 + $0x5] sm:$0x3]
    %v4239 = vld [vmem:[#allocation4 + $0x11] sm:$0x3]
    %v4240 = vld [vmem:[#allocation4 + $0x15] sm:$0x3]
    %v4241 = vlaneseq
    %v4242 = vshrl.u32 %v4241, 7
    %v4243 = vsub.s32 1, %v4242
    %v4244 = vrot.slane %v4223, %v4243
    %v4245 = vmul.f32 %v4237, %v4244
    %v4246 = vmul.f32 %v4238, %v4244
    %v4247 = vmul.f32 %v4239, %v4244
    %v4248 = vmul.f32 %v4240, %v4244
    %v4249 = vadd.f32 %v4233, %v4245
    %v4250 = vadd.f32 %v4234, %v4246
    %v4251 = vadd.f32 %v4235, %v4247
    %v4252 = vadd.f32 %v4236, %v4248
    %v4253 = vld [vmem:[#allocation4 + $0x2] sm:$0x3]
    %v4254 = vld [vmem:[#allocation4 + $0x6] sm:$0x3]
    %v4255 = vld [vmem:[#allocation4 + $0x12] sm:$0x3]
    %v4256 = vld [vmem:[#allocation4 + $0x16] sm:$0x3]
    %v4257 = vlaneseq
    %v4258 = vshrl.u32 %v4257, 7
    %v4259 = vsub.s32 2, %v4258
    %v4260 = vrot.slane %v4223, %v4259
    %v4261 = vmul.f32 %v4253, %v4260
    %v4262 = vmul.f32 %v4254, %v4260
    %v4263 = vmul.f32 %v4255, %v4260
    %v4264 = vmul.f32 %v4256, %v4260
    %v4265 = vadd.f32 %v4249, %v4261
    %v4266 = vadd.f32 %v4250, %v4262
    %v4267 = vadd.f32 %v4251, %v4263
    %v4268 = vadd.f32 %v4252, %v4264
    %v4269 = vld [vmem:[%s3873] sm:$0x3]
    %v4270 = vld [vmem:[%s3873 + $0x4] sm:$0x3]
    %v4271 = vld [vmem:[%s3873 + $0x10] sm:$0x3]
    %v4272 = vld [vmem:[%s3873 + $0x14] sm:$0x3]
    %v4273 = vlaneseq
    %v4274 = vshrl.u32 %v4273, 7
    %v4275 = vsub.s32 3, %v4274
    %v4276 = vrot.slane %v4223, %v4275
    %v4277 = vmul.f32 %v4269, %v4276
    %v4278 = vmul.f32 %v4270, %v4276
    %v4279 = vmul.f32 %v4271, %v4276
    %v4280 = vmul.f32 %v4272, %v4276
    %v4281 = vadd.f32 %v4265, %v4277
    %v4282 = vadd.f32 %v4266, %v4278
    %v4283 = vadd.f32 %v4267, %v4279
    %v4284 = vadd.f32 %v4268, %v4280
    %v4285 = vld [vmem:[%s3873 + $0x1] sm:$0x3]
    %v4286 = vld [vmem:[%s3873 + $0x5] sm:$0x3]
    %v4287 = vld [vmem:[%s3873 + $0x11] sm:$0x3]
    %v4288 = vld [vmem:[%s3873 + $0x15] sm:$0x3]
    %v4289 = vlaneseq
    %v4290 = vshrl.u32 %v4289, 7
    %v4291 = vsub.s32 4, %v4290
    %v4292 = vrot.slane %v4223, %v4291
    %v4293 = vmul.f32 %v4285, %v4292
    %v4294 = vmul.f32 %v4286, %v4292
    %v4295 = vmul.f32 %v4287, %v4292
    %v4296 = vmul.f32 %v4288, %v4292
    %v4297 = vadd.f32 %v4281, %v4293
    %v4298 = vadd.f32 %v4282, %v4294
    %v4299 = vadd.f32 %v4283, %v4295
    %v4300 = vadd.f32 %v4284, %v4296
    %v4301 = vld [vmem:[%s3873 + $0x2] sm:$0x3]
    %v4302 = vld [vmem:[%s3873 + $0x6] sm:$0x3]
    %v4303 = vld [vmem:[%s3873 + $0x12] sm:$0x3]
    %v4304 = vld [vmem:[%s3873 + $0x16] sm:$0x3]
    %v4305 = vlaneseq
    %v4306 = vshrl.u32 %v4305, 7
    %v4307 = vsub.s32 5, %v4306
    %v4308 = vrot.slane %v4223, %v4307
    %v4309 = vmul.f32 %v4301, %v4308
    %v4310 = vmul.f32 %v4302, %v4308
    %v4311 = vmul.f32 %v4303, %v4308
    %v4312 = vmul.f32 %v4304, %v4308
    %v4313 = vadd.f32 %v4297, %v4309
    %v4314 = vadd.f32 %v4298, %v4310
    %v4315 = vadd.f32 %v4299, %v4311
    %v4316 = vadd.f32 %v4300, %v4312
    %v4317 = vld [vmem:[%s3974] sm:$0x3]
    %v4318 = vld [vmem:[%s3974 + $0x4] sm:$0x3]
    %v4319 = vld [vmem:[%s3974 + $0x10] sm:$0x3]
    %v4320 = vld [vmem:[%s3974 + $0x14] sm:$0x3]
    %v4321 = vlaneseq
    %v4322 = vshrl.u32 %v4321, 7
    %v4323 = vsub.s32 6, %v4322
    %v4324 = vrot.slane %v4223, %v4323
    %v4325 = vmul.f32 %v4317, %v4324
    %v4326 = vmul.f32 %v4318, %v4324
    %v4327 = vmul.f32 %v4319, %v4324
    %v4328 = vmul.f32 %v4320, %v4324
    %v4329 = vadd.f32 %v4313, %v4325
    %v4330 = vadd.f32 %v4314, %v4326
    %v4331 = vadd.f32 %v4315, %v4327
    %v4332 = vadd.f32 %v4316, %v4328
    %v4333 = vld [vmem:[%s3974 + $0x1] sm:$0x3]
    %v4334 = vld [vmem:[%s3974 + $0x5] sm:$0x3]
    %v4335 = vld [vmem:[%s3974 + $0x11] sm:$0x3]
    %v4336 = vld [vmem:[%s3974 + $0x15] sm:$0x3]
    %v4337 = vlaneseq
    %v4338 = vshrl.u32 %v4337, 7
    %v4339 = vsub.s32 7, %v4338
    %v4340 = vrot.slane %v4223, %v4339
    %v4341 = vmul.f32 %v4333, %v4340
    %v4342 = vmul.f32 %v4334, %v4340
    %v4343 = vmul.f32 %v4335, %v4340
    %v4344 = vmul.f32 %v4336, %v4340
    %v4345 = vadd.f32 %v4329, %v4341
    %v4346 = vadd.f32 %v4330, %v4342
    %v4347 = vadd.f32 %v4331, %v4343
    %v4348 = vadd.f32 %v4332, %v4344
    %v4349 = vld [vmem:[%s3974 + $0x2] sm:$0x3]
    %v4350 = vld [vmem:[%s3974 + $0x6] sm:$0x3]
    %v4351 = vld [vmem:[%s3974 + $0x12] sm:$0x3]
    %v4352 = vld [vmem:[%s3974 + $0x16] sm:$0x3]
    %v4353 = vlaneseq
    %v4354 = vshrl.u32 %v4353, 7
    %v4355 = vsub.s32 0, %v4354
    %v4356 = vrot.slane %v4224, %v4355
    %v4357 = vmul.f32 %v4349, %v4356
    %v4358 = vmul.f32 %v4350, %v4356
    %v4359 = vmul.f32 %v4351, %v4356
    %v4360 = vmul.f32 %v4352, %v4356
    %v4361 = vadd.f32 %v4345, %v4357
    %v4362 = vadd.f32 %v4346, %v4358
    %v4363 = vadd.f32 %v4347, %v4359
    %v4364 = vadd.f32 %v4348, %v4360
    %v4365 = vadd.f32 %v4361, 1.0
    %v4366 = vadd.f32 %v4362, 1.0
    %v4367 = vadd.f32 %v4363, 1.0
    %v4368 = vadd.f32 %v4364, 1.0
    %vm4369 = vcmp.gt.f32.partialorder %v4365, 0.0
    %vm4370 = vcmp.gt.f32.partialorder %v4366, 0.0
    %vm4371 = vcmp.gt.f32.partialorder %v4367, 0.0
    %vm4372 = vcmp.gt.f32.partialorder %v4368, 0.0
    %v4373 = vmul.f32 %v4365, 0.3
    %v4374 = vmul.f32 %v4366, 0.3
    %v4375 = vmul.f32 %v4367, 0.3
    %v4376 = vmul.f32 %v4368, 0.3
    %v4377 = vsel %vm4369, %v4365, %v4373
    %v4378 = vsel %vm4370, %v4366, %v4374
    %v4379 = vsel %vm4371, %v4367, %v4375
    %v4380 = vsel %vm4372, %v4368, %v4376
    %v4383 = vrot.slane %v4377, 1
    %v4384 = vrot.slane %v4379, 1
    %v4387 = vadd.f32 %v4377, %v4383
    %v4388 = vadd.f32 %v4379, %v4384
    %v4389 = vadd.f32 %v4387, %v4378
    %v4390 = vadd.f32 %v4388, %v4380
    %v4393 = vrot.slane %v4378, 1
    %v4394 = vrot.slane %v4380, 1
    %v4397 = vadd.f32 %v4389, %v4393
    %v4398 = vadd.f32 %v4390, %v4394
    %v4399 = vmul.f32 %v4397, 0.25
    %v4400 = vmul.f32 %v4398, 0.25
    %v4401 = vpack.c.bf16 %v4399, %v4399
    %v4402 = vpack.c.bf16 %v4400, %v4400
    %v4403 = vld [vmem:[%s1 + $0x130] sm:$0xf]
    %v4404 = vld [vmem:[%s1 + $0x134] sm:$0xf]
    %v4405 = vld [vmem:[%s1 + $0x138] sm:$0xf]
    %v4406 = vld [vmem:[%s1 + $0x13c] sm:$0xf]
    %v4407 = vld [vmem:[%s1 + $0x140] sm:$0xf]
    %v4408 = vld [vmem:[%s1 + $0x144] sm:$0xf]
    %v4409 = vld [vmem:[%s1 + $0x148] sm:$0xf]
    %v4410 = vld [vmem:[%s1 + $0x14c] sm:$0xf]
    %v4413 = vunpack.c.l.b16 %v4401
    %v4414 = vunpack.c.l.b16 %v4402
    %v4415 = vrot.slane %v4414, 7
    %vm4416 = vcmask 1041409
    %v4417 = vsel %vm4416, %v4415, %v4413
    %v4418 = vpack.c.b16 %v4417, %v4417
    %v4427 = vunpack.c.l.b16 %v4403
    %v4428 = vunpack.c.l.b16 %v4404
    %v4429 = vunpack.c.l.b16 %v4405
    %v4430 = vunpack.c.l.b16 %v4406
    %v4431 = vunpack.c.l.b16 %v4407
    %v4432 = vunpack.c.l.b16 %v4408
    %v4433 = vunpack.c.l.b16 %v4409
    %v4434 = vunpack.c.l.b16 %v4410
    %v4435 = vpack.c.b16 %v4428, %v4427
    %v4436 = vpack.c.b16 %v4430, %v4429
    %v4437 = vpack.c.b16 %v4432, %v4431
    %v4438 = vpack.c.b16 %v4434, %v4433
    %v4444 = vsel %vm3211, %v4418, 0
    %4446 = vmatprep.subr.bf16.mxu0 0
    %4447 = vmatpush1.bf16.msra.mxu0 %v4435
    %4448 = vmatprep.subr.bf16.mxu0 0
    %4449 = vmatpush1.bf16.msra.mxu0 %v4436
    %4450 = vmatprep.subr.bf16.mxu0 0
    %4451 = vmatpush1.bf16.msra.mxu0 %v4437
    %4452 = vmatprep.subr.bf16.mxu0 0
    %4453 = vmatpush1.bf16.msra.mxu0 %v4438
    %4454 = vmatprep.subr.bf16.mxu0 0
    %4455 = vmatpush1.bf16.msra.mxu0 0
    %4456 = vmatprep.subr.bf16.mxu0 0
    %4457 = vmatpush1.bf16.msra.mxu0 0
    %4458 = vmatprep.subr.bf16.mxu0 0
    %4459 = vmatpush1.bf16.msra.mxu0 0
    %4460 = vmatprep.subr.bf16.mxu0 0
    %4461 = vmatpush1.bf16.msra.mxu0 0
    %4462 = vmatprep.subr.bf16.mxu0 0
    %4463 = vmatpush1.bf16.msra.mxu0 0
    %4464 = vmatprep.subr.bf16.mxu0 0
    %4465 = vmatpush1.bf16.msra.mxu0 0
    %4466 = vmatprep.subr.bf16.mxu0 0
    %4467 = vmatpush1.bf16.msra.mxu0 0
    %4468 = vmatprep.subr.bf16.mxu0 0
    %4469 = vmatpush1.bf16.msra.mxu0 0
    %4470 = vmatprep.subr.bf16.mxu0 0
    %4471 = vmatpush1.bf16.msra.mxu0 0
    %4472 = vmatprep.subr.bf16.mxu0 0
    %4473 = vmatpush1.bf16.msra.mxu0 0
    %4474 = vmatprep.subr.bf16.mxu0 0
    %4475 = vmatpush1.bf16.msra.mxu0 0
    %4476 = vmatprep.subr.bf16.mxu0 0
    %4477 = vmatpush1.bf16.msra.mxu0 0
    %4478 = vmatprep.mubr.bf16.mxu0 0
    %4479 = vmatmul.mubr.bf16.gmra.mrb[0].mxu0 %v4444
    %v4480 = vpop.f32.mrb[0].mxu0
    %v4481 = vadd.f32 1.0, %v4480
    %v4482 = vpop.f32.mrb[0].mxu0
    %v4483 = vpop.f32.mrb[0].mxu0
    %v4484 = vpop.f32.mrb[0].mxu0
    %4485 = vdwg.mxu0
    %vm4486 = vcmp.gt.f32.partialorder %v4481, 0.0
    %v4487 = vmul.f32 %v4481, 0.3
    %v4488 = vsel %vm4486, %v4481, %v4487
    %v4489 = vpack.c.bf16 %v4488, %v4488
    %v4490 = vld [vmem:[%s1 + $0x150] sm:$0xf]
    %v4491 = vld [vmem:[%s1 + $0x154] sm:$0xf]
    %v4492 = vld [vmem:[%s1 + $0x158] sm:$0xf]
    %v4496 = vunpack.c.l.b16 %v4490
    %v4497 = vunpack.c.l.b16 %v4491
    %v4498 = vunpack.c.l.b16 %v4492
    %v4499 = vpack.c.b16 %v4497, %v4496
    %v4500 = vpack.c.b16 %v4498, %v4498
    %v4503 = vsel %vm598, %v4489, 0
    %vm4505 = vcmask 1043456
    %v4507 = vsel %vm4505, %v4500, 0
    %4509 = vmatprep.subr.bf16.mxu0 0
    %4510 = vmatpush1.bf16.msra.mxu0 %v4499
    %4511 = vmatprep.subr.bf16.mxu0 0
    %4512 = vmatpush1.bf16.msra.mxu0 %v4507
    %4513 = vmatprep.subr.bf16.mxu0 0
    %4514 = vmatpush1.bf16.msra.mxu0 0
    %4515 = vmatprep.subr.bf16.mxu0 0
    %4516 = vmatpush1.bf16.msra.mxu0 0
    %4517 = vmatprep.subr.bf16.mxu0 0
    %4518 = vmatpush1.bf16.msra.mxu0 0
    %4519 = vmatprep.subr.bf16.mxu0 0
    %4520 = vmatpush1.bf16.msra.mxu0 0
    %4521 = vmatprep.subr.bf16.mxu0 0
    %4522 = vmatpush1.bf16.msra.mxu0 0
    %4523 = vmatprep.subr.bf16.mxu0 0
    %4524 = vmatpush1.bf16.msra.mxu0 0
    %4525 = vmatprep.subr.bf16.mxu0 0
    %4526 = vmatpush1.bf16.msra.mxu0 0
    %4527 = vmatprep.subr.bf16.mxu0 0
    %4528 = vmatpush1.bf16.msra.mxu0 0
    %4529 = vmatprep.subr.bf16.mxu0 0
    %4530 = vmatpush1.bf16.msra.mxu0 0
    %4531 = vmatprep.subr.bf16.mxu0 0
    %4532 = vmatpush1.bf16.msra.mxu0 0
    %4533 = vmatprep.subr.bf16.mxu0 0
    %4534 = vmatpush1.bf16.msra.mxu0 0
    %4535 = vmatprep.subr.bf16.mxu0 0
    %4536 = vmatpush1.bf16.msra.mxu0 0
    %4537 = vmatprep.subr.bf16.mxu0 0
    %4538 = vmatpush1.bf16.msra.mxu0 0
    %4539 = vmatprep.subr.bf16.mxu0 0
    %4540 = vmatpush1.bf16.msra.mxu0 0
    %4541 = vmatprep.mubr.bf16.mxu0 0
    %4542 = vmatmul.mubr.bf16.gmra.mrb[0].mxu0 %v4503
    %v4543 = vpop.f32.mrb[0].mxu0
    %v4544 = vadd.f32 1.0, %v4543
    %v4545 = vpop.f32.mrb[0].mxu0
    %v4546 = vpop.f32.mrb[0].mxu0
    %v4547 = vpop.f32.mrb[0].mxu0
    %4548 = vdwg.mxu0
    %vm4549 = vcmp.gt.f32.partialorder %v4544, 0.0
    %v4550 = vmul.f32 %v4544, 0.3
    %v4551 = vsel %vm4549, %v4544, %v4550
    %v4552 = vpack.c.bf16 %v4551, %v4551
    %v4553 = vld [vmem:[%s1 + $0x15c] sm:$0xf]
    %v4554 = vld [vmem:[%s1 + $0x160] sm:$0xf]
    %v4557 = vunpack.c.l.b16 %v4553
    %v4558 = vunpack.c.l.b16 %v4554
    %v4559 = vpack.c.b16 %v4558, %v4557
    %v4562 = vsel %vm2792, %v4552, 0
    %4564 = vmatprep.subr.bf16.mxu0 0
    %4565 = vmatpush1.bf16.msra.mxu0 %v4559
    %4566 = vmatprep.subr.bf16.mxu0 0
    %4567 = vmatpush1.bf16.msra.mxu0 0
    %4568 = vmatprep.subr.bf16.mxu0 0
    %4569 = vmatpush1.bf16.msra.mxu0 0
    %4570 = vmatprep.subr.bf16.mxu0 0
    %4571 = vmatpush1.bf16.msra.mxu0 0
    %4572 = vmatprep.subr.bf16.mxu0 0
    %4573 = vmatpush1.bf16.msra.mxu0 0
    %4574 = vmatprep.subr.bf16.mxu0 0
    %4575 = vmatpush1.bf16.msra.mxu0 0
    %4576 = vmatprep.subr.bf16.mxu0 0
    %4577 = vmatpush1.bf16.msra.mxu0 0
    %4578 = vmatprep.subr.bf16.mxu0 0
    %4579 = vmatpush1.bf16.msra.mxu0 0
    %4580 = vmatprep.subr.bf16.mxu0 0
    %4581 = vmatpush1.bf16.msra.mxu0 0
    %4582 = vmatprep.subr.bf16.mxu0 0
    %4583 = vmatpush1.bf16.msra.mxu0 0
    %4584 = vmatprep.subr.bf16.mxu0 0
    %4585 = vmatpush1.bf16.msra.mxu0 0
    %4586 = vmatprep.subr.bf16.mxu0 0
    %4587 = vmatpush1.bf16.msra.mxu0 0
    %4588 = vmatprep.subr.bf16.mxu0 0
    %4589 = vmatpush1.bf16.msra.mxu0 0
    %4590 = vmatprep.subr.bf16.mxu0 0
    %4591 = vmatpush1.bf16.msra.mxu0 0
    %4592 = vmatprep.subr.bf16.mxu0 0
    %4593 = vmatpush1.bf16.msra.mxu0 0
    %4594 = vmatprep.subr.bf16.mxu0 0
    %4595 = vmatpush1.bf16.msra.mxu0 0
    %4596 = vmatprep.mubr.bf16.mxu0 0
    %4597 = vmatmul.mubr.bf16.gmra.mrb[0].mxu0 %v4562
    %v4598 = vpop.f32.mrb[0].mxu0
    %v4599 = vadd.f32 0.0, %v4598
    %v4600 = vpop.f32.mrb[0].mxu0
    %v4601 = vpop.f32.mrb[0].mxu0
    %v4602 = vpop.f32.mrb[0].mxu0
    %4603 = vdwg.mxu0
    %vm4604 = vcmask 74752
    %4605 = vst.msk [vmem:[#allocation5] sm:$0x3] %vm4604, %v4599
    // Predicated region
    $region14: #{net_forward.1} parent=1 // pred_check
      _
    $region15: #{net_forward.1} parent=1 // pred_check_branch
      %4607 = sbr.rel (0) target = $region17
    $region16: #{net_forward.1} parent=1 // pred_region
      %s4609 = ssub.s32 32, 32
      %4610 = vsyncadd [#allocation6], %s4609
      %s4612 = sshll.u32 [#allocation5], 4
      %s4613 = int_to_ptr.vmem [resolvable:$true] %s4612
      %4615 = dma.vmem_to_hbm [thread:$0]  %s4613, 32, %s3, [#allocation6]
    $region17: #{net_forward.1} parent=1 // pred_fallthru
      _
    // Predicated region
    $region18: #{net_forward.1} parent=1 // pred_check
      _
    $region19: #{net_forward.1} parent=1 // pred_check_branch
      %4617 = sbr.rel (0) target = $region21
    $region20: #{net_forward.1} parent=1 // pred_region
      %4618 = dma.done [#allocation6], 32
    $region21: #{net_forward.1} parent=1 // pred_fallthru
      _
    %4619 = vsyncpa [#allocation6], 1

</llo_original>
